<compile_context>
chip_gen: v5e
topology: v5e:2x2
jax: 0.10.0
libtpu: 0.0.40
codegen_flags: <defaults>
</compile_context>

<pallas_src>
import numpy as np

import jax
import jax.numpy as jnp
from jax import lax
from jax.experimental import pallas as pl
from jax.experimental.pallas import tpu as pltpu


# ---------------------------------------------------------------------------
# Fused per-B-image-block kernel:
#   conv1 -> relu -> pool -> conv2 -> relu -> pool -> fc1 -> fc2 -> fc3
# All slabs are laid out with rows = spatial_row * B + image, so every slice
# below starts at a multiple of B (=8): aligned sublane slices only.
# ---------------------------------------------------------------------------
def _lenet_fused_kernel(x_ref, w1_ref, b1_ref, s1_ref, t1_ref,
                        w2_ref, b2_ref, s2_ref, t2_ref,
                        wf1_ref, bf1_ref, wf2_ref, bf2_ref, wf3_ref, bf3_ref,
                        out_ref):
    f32 = jnp.float32
    bf16 = jnp.bfloat16
    B = out_ref.shape[0]          # images per grid step
    K = 5

    def mm(a, b):                 # bf16 x bf16 MXU matmul, f32 accumulation
        return jnp.dot(a, b, preferred_element_type=f32)

    # ---- conv1 (3->6, 5x5, valid): ONE matmul on the host-expanded LHS ----
    # x_ref: (28B, 480) bf16, lanes = kh*96 + w*3 + c ; w1_ref: (480, 168).
    acc1 = mm(x_ref[...], w1_ref[...])                       # (28B, 168) f32
    acc1 = jnp.maximum(acc1 + b1_ref[...], 0.0)              # bias + ReLU (f32 VPU)

    # ---- 2x2 max-pool via exact 0/1 selection matmuls + VPU max -----------
    a1b = acc1.astype(bf16)
    r1 = jnp.maximum(mm(s1_ref[0], a1b), mm(s1_ref[1], a1b))  # rows  (14B, 168)
    r1b = r1.astype(bf16)
    z1 = jnp.maximum(mm(r1b, t1_ref[0]), mm(r1b, t1_ref[1]))  # cols  (14B, 84)

    # ---- conv2 (6->16, 5x5, valid): K aligned row-block slices ------------
    # z1 rows are (p*B + i); the kh-shift is an aligned slice at offset kh*B.
    acc2 = mm(z1[0:10 * B, :].astype(bf16), w2_ref[0])
    for kh in range(1, K):
        acc2 = acc2 + mm(z1[kh * B:(kh + 10) * B, :].astype(bf16), w2_ref[kh])
    acc2 = jnp.maximum(acc2 + b2_ref[...], 0.0)               # (10B, 160)

    a2b = acc2.astype(bf16)
    r2 = jnp.maximum(mm(s2_ref[0], a2b), mm(s2_ref[1], a2b))  # (5B, 160)
    r2b = r2.astype(bf16)
    z2 = jnp.maximum(mm(r2b, t2_ref[0]), mm(r2b, t2_ref[1]))  # (5B, 80)

    # ---- fc1 (400->120) as 5 aligned (B, 80) row-block matmuls ------------
    f1 = mm(z2[0:B, :].astype(bf16), wf1_ref[0])
    for h in range(1, 5):
        f1 = f1 + mm(z2[h * B:(h + 1) * B, :].astype(bf16), wf1_ref[h])
    f1 = jnp.maximum(f1 + bf1_ref[...], 0.0)                  # (B, 128), pad lanes 0

    # ---- fc2 (120->84) + ReLU, fc3 (84->10); lane-dense (B, 128) store ----
    f2 = jnp.maximum(mm(f1.astype(bf16), wf2_ref[...]) + bf2_ref[...], 0.0)
    f3 = mm(f2.astype(bf16), wf3_ref[...]) + bf3_ref[...]
    out_ref[...] = f3.astype(out_ref.dtype)


# ---------------------------------------------------------------------------
# One-time host-side weight packing (banded conv weights, batch-interleaved
# pool selectors, permuted / zero-padded FC weights).  bf16 for all matmul
# operands, f32 for biases.
# ---------------------------------------------------------------------------
def _conv_band(w_oihw, w_in):
    """band[kh, w*IC + c, ow*OC + o] = w[o, c, kh, w - ow] (0 <= w-ow < K)."""
    oc, ic, k, _ = w_oihw.shape
    ow_n = w_in - k + 1
    w = np.asarray(w_oihw, np.float32)
    band = np.zeros((k, w_in * ic, ow_n * oc), np.float32)
    for kh in range(k):
        for kw in range(k):
            for ow in range(ow_n):
                col = ow + kw
                band[kh, col * ic:(col + 1) * ic,
                     ow * oc:(ow + 1) * oc] = w[:, :, kh, kw].T
    return band


def _row_pool_selector(n_pairs, b):
    """0/1 matrices: out row p*b+i = {even,odd} input row (2p{,+1})*b + i."""
    sel = np.zeros((2, n_pairs * b, 2 * n_pairs * b), np.float32)
    for p in range(n_pairs):
        for i in range(b):
            sel[0, p * b + i, (2 * p) * b + i] = 1.0
            sel[1, p * b + i, (2 * p + 1) * b + i] = 1.0
    return sel


def _col_pool_selector(out_w, c):
    """0/1 matrices: out lane j*c+o = {even,odd} input lane (2j{,+1})*c + o."""
    sel = np.zeros((2, 2 * out_w * c, out_w * c), np.float32)
    for j in range(out_w):
        for o in range(c):
            sel[0, (2 * j) * c + o, j * c + o] = 1.0
            sel[1, (2 * j + 1) * c + o, j * c + o] = 1.0
    return sel


def pack_params(params, *, block_b=8):
    """Repack PyTorch-layout params into the kernel's operand tuple (once)."""
    B = block_b
    assert B % 8 == 0, "block_b must be a multiple of 8 (sublane alignment)"

    # conv1 -> single (480, 168) weight matching the host-expanded LHS lanes.
    w1 = _conv_band(params["conv1_w"], 32).reshape(5 * 96, 168)
    b1 = np.tile(np.asarray(params["conv1_b"], np.float32), 28)[None, :]
    s1 = _row_pool_selector(14, B)                            # (2, 14B, 28B)
    t1 = _col_pool_selector(14, 6)                            # (2, 168, 84)

    w2 = _conv_band(params["conv2_w"], 14)                    # (5, 84, 160)
    b2 = np.tile(np.asarray(params["conv2_b"], np.float32), 10)[None, :]
    s2 = _row_pool_selector(5, B)                             # (2, 5B, 10B)
    t2 = _col_pool_selector(5, 16)                            # (2, 160, 80)

    # fc1: fold PyTorch's (C,H,W) flatten order into a (h, w*16+c) row layout.
    fc1_w = np.asarray(params["fc1_w"], np.float32).reshape(120, 16, 5, 5)
    wf1 = np.zeros((5, 80, 128), np.float32)
    wf1[:, :, :120] = np.transpose(fc1_w, (2, 3, 1, 0)).reshape(5, 80, 120)
    bf1 = np.zeros((1, 128), np.float32)
    bf1[0, :120] = np.asarray(params["fc1_b"], np.float32)

    wf2 = np.zeros((128, 128), np.float32)
    wf2[:120, :84] = np.asarray(params["fc2_w"], np.float32).T
    bf2 = np.zeros((1, 128), np.float32)
    bf2[0, :84] = np.asarray(params["fc2_b"], np.float32)

    wf3 = np.zeros((128, 128), np.float32)
    wf3[:84, :10] = np.asarray(params["fc3_w"], np.float32).T
    bf3 = np.zeros((1, 128), np.float32)
    bf3[0, :10] = np.asarray(params["fc3_b"], np.float32)

    bf = lambda a: jnp.asarray(a, jnp.bfloat16)   # MXU operands
    fp = lambda a: jnp.asarray(a, jnp.float32)    # biases (f32 VPU epilogue)
    return (bf(w1), fp(b1), bf(s1), bf(t1),
            bf(w2), fp(b2), bf(s2), bf(t2),
            bf(wf1), fp(bf1), bf(wf2), fp(bf2), bf(wf3), fp(bf3))


# ---------------------------------------------------------------------------
# Forward pass: one pallas_call, B images per grid step.
# ---------------------------------------------------------------------------
def net_forward(x, packed):
    """x: (N, 3, 32, 32) float32 NCHW.  Returns (N, 10) float32 logits."""
    n = x.shape[0]
    assert x.shape[1:] == (3, 32, 32)
    B = packed[2].shape[1] // 14          # images per grid step (from s1 shape)
    n_pad = -(-n // B) * B
    g = n_pad // B                        # grid length (keep even on v7x for 2 TCs)

    # Host-side repack (review #1/#6): NCHW -> NHWC(32,96); pad batch to B;
    # expand the 5 kh-shifted copies along lanes; interleave B images so slab
    # rows are (spatial_row * B + image); cast activations to bf16 once here.
    xh = jnp.transpose(x, (0, 2, 3, 1)).reshape(n, 32, 96)
    if n_pad != n:
        xh = jnp.concatenate(
            [xh, jnp.zeros((n_pad - n, 32, 96), xh.dtype)], axis=0)
    xe = jnp.concatenate([xh[:, kh:kh + 28, :] for kh in range(5)], axis=-1)
    xs = (xe.reshape(g, B, 28, 480)
            .transpose(0, 2, 1, 3)
            .reshape(g, 28 * B, 480)
            .astype(jnp.bfloat16))

    def const_spec(a):
        nd = a.ndim
        return pl.BlockSpec(a.shape, lambda i, _n=nd: (0,) * _n)

    in_specs = ([pl.BlockSpec((None, 28 * B, 480), lambda i: (i, 0, 0))]
                + [const_spec(a) for a in packed])
    out_specs = pl.BlockSpec((None, B, 128), lambda i: (i, 0, 0))

    # MXU work actually issued per grid step (incl. banded zeros / selectors).
    macs_per_step = (28 * B * 480 * 168                       # conv1
                     + 2 * 14 * B * 28 * B * 168              # pool1 rows
                     + 2 * 14 * B * 168 * 84                  # pool1 cols
                     + 5 * 10 * B * 84 * 160                  # conv2
                     + 2 * 5 * B * 10 * B * 160               # pool2 rows
                     + 2 * 5 * B * 160 * 80                   # pool2 cols
                     + 5 * B * 80 * 128                       # fc1
                     + 2 * B * 128 * 128)                     # fc2 + fc3
    flops = 2 * g * macs_per_step
    bytes_accessed = (int(xs.size) * 2
                      + sum(int(a.size) * a.dtype.itemsize for a in packed)
                      + g * B * 128 * 4)

    out = pl.pallas_call(
        _lenet_fused_kernel,
        out_shape=jax.ShapeDtypeStruct((g, B, 128), jnp.float32),
        grid=(g,),
        in_specs=in_specs,
        out_specs=out_specs,
        compiler_params=pltpu.CompilerParams(
            dimension_semantics=("parallel",)),
        cost_estimate=pl.CostEstimate(flops=int(flops), transcendentals=0,
                                      bytes_accessed=int(bytes_accessed)),
    )(xs, *packed)
    return out.reshape(n_pad, 128)[:n, :10]


# ---------------------------------------------------------------------------
# Pure-JAX reference (for correctness verification)
# ---------------------------------------------------------------------------
def net_forward_ref(x, params):
    dn = ("NCHW", "OIHW", "NCHW")
    hp = lax.Precision.HIGHEST
    h = lax.conv_general_dilated(x, params["conv1_w"], (1, 1), "VALID",
                                 dimension_numbers=dn, precision=hp)
    h = jax.nn.relu(h + params["conv1_b"][None, :, None, None])
    h = lax.reduce_window(h, -jnp.inf, lax.max, (1, 1, 2, 2), (1, 1, 2, 2), "VALID")
    h = lax.conv_general_dilated(h, params["conv2_w"], (1, 1), "VALID",
                                 dimension_numbers=dn, precision=hp)
    h = jax.nn.relu(h + params["conv2_b"][None, :, None, None])
    h = lax.reduce_window(h, -jnp.inf, lax.max, (1, 1, 2, 2), (1, 1, 2, 2), "VALID")
    h = h.reshape(h.shape[0], -1)
    h = jax.nn.relu(jnp.dot(h, params["fc1_w"].T, precision=hp) + params["fc1_b"])
    h = jax.nn.relu(jnp.dot(h, params["fc2_w"].T, precision=hp) + params["fc2_b"])
    return jnp.dot(h, params["fc3_w"].T, precision=hp) + params["fc3_b"]


# ---------------------------------------------------------------------------
# Deterministic parameter init (PyTorch default: U(-1/sqrt(fan_in), 1/sqrt(fan_in)))
# ---------------------------------------------------------------------------
def init_params(key):
    ks = jax.random.split(key, 10)

    def u(k, shape, fan_in):
        bound = 1.0 / jnp.sqrt(jnp.float32(fan_in))
        return jax.random.uniform(k, shape, jnp.float32, -bound, bound)

    return {
        "conv1_w": u(ks[0], (6, 3, 5, 5), 3 * 25),
        "conv1_b": u(ks[1], (6,), 3 * 25),
        "conv2_w": u(ks[2], (16, 6, 5, 5), 6 * 25),
        "conv2_b": u(ks[3], (16,), 6 * 25),
        "fc1_w":   u(ks[4], (120, 400), 400),
        "fc1_b":   u(ks[5], (120,), 400),
        "fc2_w":   u(ks[6], (84, 120), 120),
        "fc2_b":   u(ks[7], (84,), 120),
        "fc3_w":   u(ks[8], (10, 84), 84),
        "fc3_b":   u(ks[9], (10,), 84),
    }


if __name__ == "__main__":
    key = jax.random.PRNGKey(0)
    pkey, xkey = jax.random.split(key)
    params = init_params(pkey)
    packed = pack_params(params, block_b=8)   # one-time host-side weight repack

    # Spatial size 32x32 is forced by the 16*5*5 flatten in the reference net.
    x = jax.random.normal(xkey, (2, 3, 32, 32), jnp.float32)

    out = jax.block_until_ready(jax.jit(net_forward)(x, packed))
    assert out.shape == (2, 10) and out.dtype == jnp.float32

    ref = jax.block_until_ready(jax.jit(net_forward_ref)(x, params))
    # bf16 MXU operands vs the f32 HIGHEST reference: observed error O(1e-3).
    np.testing.assert_allclose(np.asarray(out), np.asarray(ref), atol=2e-2, rtol=0)
    print("KERNEL_OK")
</pallas_src>

<mosaic_0001>
module attributes {stable_mosaic.version = 11 : i64} {
  func.func @_lenet_fused_kernel(%arg0: i32, %arg1: memref<1x224x480xbf16, #tpu.memory_space<vmem>>, %arg2: memref<480x168xbf16, #tpu.memory_space<vmem>>, %arg3: memref<1x168xf32, #tpu.memory_space<vmem>>, %arg4: memref<2x112x224xbf16, #tpu.memory_space<vmem>>, %arg5: memref<2x168x84xbf16, #tpu.memory_space<vmem>>, %arg6: memref<5x84x160xbf16, #tpu.memory_space<vmem>>, %arg7: memref<1x160xf32, #tpu.memory_space<vmem>>, %arg8: memref<2x40x80xbf16, #tpu.memory_space<vmem>>, %arg9: memref<2x160x80xbf16, #tpu.memory_space<vmem>>, %arg10: memref<5x80x128xbf16, #tpu.memory_space<vmem>>, %arg11: memref<1x128xf32, #tpu.memory_space<vmem>>, %arg12: memref<128x128xbf16, #tpu.memory_space<vmem>>, %arg13: memref<1x128xf32, #tpu.memory_space<vmem>>, %arg14: memref<128x128xbf16, #tpu.memory_space<vmem>>, %arg15: memref<1x128xf32, #tpu.memory_space<vmem>>, %arg16: memref<1x8x128xf32, #tpu.memory_space<vmem>>) attributes {dimension_semantics = [#tpu.dimension_semantics<parallel>], iteration_bounds = array<i64: 1>, scalar_prefetch = 0 : i64, scratch_operands = 0 : i64, tpu.core_type = #tpu.core_type<tc>, window_params = [{transform_indices = @transform_0, window_bounds = array<i64: 1, 224, 480>}, {pipeline_mode = #tpu.pipeline_mode<synchronous>, transform_indices = @transform_1, window_bounds = array<i64: 480, 168>}, {pipeline_mode = #tpu.pipeline_mode<synchronous>, transform_indices = @transform_2, window_bounds = array<i64: 1, 168>}, {pipeline_mode = #tpu.pipeline_mode<synchronous>, transform_indices = @transform_3, window_bounds = array<i64: 2, 112, 224>}, {pipeline_mode = #tpu.pipeline_mode<synchronous>, transform_indices = @transform_4, window_bounds = array<i64: 2, 168, 84>}, {pipeline_mode = #tpu.pipeline_mode<synchronous>, transform_indices = @transform_5, window_bounds = array<i64: 5, 84, 160>}, {pipeline_mode = #tpu.pipeline_mode<synchronous>, transform_indices = @transform_6, window_bounds = array<i64: 1, 160>}, {pipeline_mode = #tpu.pipeline_mode<synchronous>, transform_indices = @transform_7, window_bounds = array<i64: 2, 40, 80>}, {pipeline_mode = #tpu.pipeline_mode<synchronous>, transform_indices = @transform_8, window_bounds = array<i64: 2, 160, 80>}, {pipeline_mode = #tpu.pipeline_mode<synchronous>, transform_indices = @transform_9, window_bounds = array<i64: 5, 80, 128>}, {pipeline_mode = #tpu.pipeline_mode<synchronous>, transform_indices = @transform_10, window_bounds = array<i64: 1, 128>}, {pipeline_mode = #tpu.pipeline_mode<synchronous>, transform_indices = @transform_11, window_bounds = array<i64: 128, 128>}, {pipeline_mode = #tpu.pipeline_mode<synchronous>, transform_indices = @transform_12, window_bounds = array<i64: 1, 128>}, {pipeline_mode = #tpu.pipeline_mode<synchronous>, transform_indices = @transform_13, window_bounds = array<i64: 128, 128>}, {pipeline_mode = #tpu.pipeline_mode<synchronous>, transform_indices = @transform_14, window_bounds = array<i64: 1, 128>}, {transform_indices = @transform_15, window_bounds = array<i64: 1, 8, 128>}]} {
    %c0 = arith.constant 0 : index
    %c0_0 = arith.constant 0 : index
    %c0_1 = arith.constant 0 : index
    %0 = vector.load %arg1[%c0, %c0_0, %c0_1] : memref<1x224x480xbf16, #tpu.memory_space<vmem>>, vector<1x224x480xbf16>
    %1 = vector.shape_cast %0 : vector<1x224x480xbf16> to vector<224x480xbf16>
    %c0_2 = arith.constant 0 : index
    %c0_3 = arith.constant 0 : index
    %2 = vector.load %arg2[%c0_2, %c0_3] : memref<480x168xbf16, #tpu.memory_space<vmem>>, vector<480x168xbf16>
    %cst = arith.constant dense<0.000000e+00> : vector<224x168xf32>
    %3 = tpu.matmul %1, %2, %cst {dimension_numbers = #tpu.dot_dimension_numbers<[1], [0], [0], [1], [0, 0, 1, 1], [], []>} : vector<224x480xbf16>, vector<480x168xbf16>, vector<224x168xf32> -> vector<224x168xf32>
    %c0_4 = arith.constant 0 : index
    %c0_5 = arith.constant 0 : index
    %4 = vector.load %arg3[%c0_4, %c0_5] : memref<1x168xf32, #tpu.memory_space<vmem>>, vector<1x168xf32>
    %5 = vector.broadcast %4 : vector<1x168xf32> to vector<224x168xf32>
    %6 = arith.addf %3, %5 : vector<224x168xf32>
    %cst_6 = arith.constant 0.000000e+00 : f32
    %7 = vector.broadcast %cst_6 : f32 to vector<224x168xf32>
    %8 = arith.maximumf %6, %7 : vector<224x168xf32>
    %9 = arith.truncf %8 : vector<224x168xf32> to vector<224x168xbf16>
    %c0_7 = arith.constant 0 : index
    %c0_8 = arith.constant 0 : index
    %c0_9 = arith.constant 0 : index
    %10 = vector.load %arg4[%c0_7, %c0_8, %c0_9] : memref<2x112x224xbf16, #tpu.memory_space<vmem>>, vector<1x112x224xbf16>
    %11 = vector.shape_cast %10 : vector<1x112x224xbf16> to vector<112x224xbf16>
    %cst_10 = arith.constant dense<0.000000e+00> : vector<112x168xf32>
    %12 = tpu.matmul %11, %9, %cst_10 {dimension_numbers = #tpu.dot_dimension_numbers<[1], [0], [0], [1], [0, 0, 1, 1], [], []>} : vector<112x224xbf16>, vector<224x168xbf16>, vector<112x168xf32> -> vector<112x168xf32>
    %c1 = arith.constant 1 : index
    %c0_11 = arith.constant 0 : index
    %c0_12 = arith.constant 0 : index
    %13 = vector.load %arg4[%c1, %c0_11, %c0_12] : memref<2x112x224xbf16, #tpu.memory_space<vmem>>, vector<1x112x224xbf16>
    %14 = vector.shape_cast %13 : vector<1x112x224xbf16> to vector<112x224xbf16>
    %cst_13 = arith.constant dense<0.000000e+00> : vector<112x168xf32>
    %15 = tpu.matmul %14, %9, %cst_13 {dimension_numbers = #tpu.dot_dimension_numbers<[1], [0], [0], [1], [0, 0, 1, 1], [], []>} : vector<112x224xbf16>, vector<224x168xbf16>, vector<112x168xf32> -> vector<112x168xf32>
    %16 = arith.maximumf %12, %15 : vector<112x168xf32>
    %17 = arith.truncf %16 : vector<112x168xf32> to vector<112x168xbf16>
    %c0_14 = arith.constant 0 : index
    %c0_15 = arith.constant 0 : index
    %c0_16 = arith.constant 0 : index
    %18 = vector.load %arg5[%c0_14, %c0_15, %c0_16] : memref<2x168x84xbf16, #tpu.memory_space<vmem>>, vector<1x168x84xbf16>
    %19 = vector.shape_cast %18 : vector<1x168x84xbf16> to vector<168x84xbf16>
    %cst_17 = arith.constant dense<0.000000e+00> : vector<112x84xf32>
    %20 = tpu.matmul %17, %19, %cst_17 {dimension_numbers = #tpu.dot_dimension_numbers<[1], [0], [0], [1], [0, 0, 1, 1], [], []>} : vector<112x168xbf16>, vector<168x84xbf16>, vector<112x84xf32> -> vector<112x84xf32>
    %c1_18 = arith.constant 1 : index
    %c0_19 = arith.constant 0 : index
    %c0_20 = arith.constant 0 : index
    %21 = vector.load %arg5[%c1_18, %c0_19, %c0_20] : memref<2x168x84xbf16, #tpu.memory_space<vmem>>, vector<1x168x84xbf16>
    %22 = vector.shape_cast %21 : vector<1x168x84xbf16> to vector<168x84xbf16>
    %cst_21 = arith.constant dense<0.000000e+00> : vector<112x84xf32>
    %23 = tpu.matmul %17, %22, %cst_21 {dimension_numbers = #tpu.dot_dimension_numbers<[1], [0], [0], [1], [0, 0, 1, 1], [], []>} : vector<112x168xbf16>, vector<168x84xbf16>, vector<112x84xf32> -> vector<112x84xf32>
    %24 = arith.maximumf %20, %23 : vector<112x84xf32>
    %25 = vector.extract_strided_slice %24 {offsets = [0, 0], sizes = [80, 84], strides = [1, 1]} : vector<112x84xf32> to vector<80x84xf32>
    %26 = arith.truncf %25 : vector<80x84xf32> to vector<80x84xbf16>
    %c0_22 = arith.constant 0 : index
    %c0_23 = arith.constant 0 : index
    %c0_24 = arith.constant 0 : index
    %27 = vector.load %arg6[%c0_22, %c0_23, %c0_24] : memref<5x84x160xbf16, #tpu.memory_space<vmem>>, vector<1x84x160xbf16>
    %28 = vector.shape_cast %27 : vector<1x84x160xbf16> to vector<84x160xbf16>
    %cst_25 = arith.constant dense<0.000000e+00> : vector<80x160xf32>
    %29 = tpu.matmul %26, %28, %cst_25 {dimension_numbers = #tpu.dot_dimension_numbers<[1], [0], [0], [1], [0, 0, 1, 1], [], []>} : vector<80x84xbf16>, vector<84x160xbf16>, vector<80x160xf32> -> vector<80x160xf32>
    %30 = vector.extract_strided_slice %24 {offsets = [8, 0], sizes = [80, 84], strides = [1, 1]} : vector<112x84xf32> to vector<80x84xf32>
    %31 = arith.truncf %30 : vector<80x84xf32> to vector<80x84xbf16>
    %c1_26 = arith.constant 1 : index
    %c0_27 = arith.constant 0 : index
    %c0_28 = arith.constant 0 : index
    %32 = vector.load %arg6[%c1_26, %c0_27, %c0_28] : memref<5x84x160xbf16, #tpu.memory_space<vmem>>, vector<1x84x160xbf16>
    %33 = vector.shape_cast %32 : vector<1x84x160xbf16> to vector<84x160xbf16>
    %cst_29 = arith.constant dense<0.000000e+00> : vector<80x160xf32>
    %34 = tpu.matmul %31, %33, %cst_29 {dimension_numbers = #tpu.dot_dimension_numbers<[1], [0], [0], [1], [0, 0, 1, 1], [], []>} : vector<80x84xbf16>, vector<84x160xbf16>, vector<80x160xf32> -> vector<80x160xf32>
    %35 = arith.addf %29, %34 : vector<80x160xf32>
    %36 = vector.extract_strided_slice %24 {offsets = [16, 0], sizes = [80, 84], strides = [1, 1]} : vector<112x84xf32> to vector<80x84xf32>
    %37 = arith.truncf %36 : vector<80x84xf32> to vector<80x84xbf16>
    %c2 = arith.constant 2 : index
    %c0_30 = arith.constant 0 : index
    %c0_31 = arith.constant 0 : index
    %38 = vector.load %arg6[%c2, %c0_30, %c0_31] : memref<5x84x160xbf16, #tpu.memory_space<vmem>>, vector<1x84x160xbf16>
    %39 = vector.shape_cast %38 : vector<1x84x160xbf16> to vector<84x160xbf16>
    %cst_32 = arith.constant dense<0.000000e+00> : vector<80x160xf32>
    %40 = tpu.matmul %37, %39, %cst_32 {dimension_numbers = #tpu.dot_dimension_numbers<[1], [0], [0], [1], [0, 0, 1, 1], [], []>} : vector<80x84xbf16>, vector<84x160xbf16>, vector<80x160xf32> -> vector<80x160xf32>
    %41 = arith.addf %35, %40 : vector<80x160xf32>
    %42 = vector.extract_strided_slice %24 {offsets = [24, 0], sizes = [80, 84], strides = [1, 1]} : vector<112x84xf32> to vector<80x84xf32>
    %43 = arith.truncf %42 : vector<80x84xf32> to vector<80x84xbf16>
    %c3 = arith.constant 3 : index
    %c0_33 = arith.constant 0 : index
    %c0_34 = arith.constant 0 : index
    %44 = vector.load %arg6[%c3, %c0_33, %c0_34] : memref<5x84x160xbf16, #tpu.memory_space<vmem>>, vector<1x84x160xbf16>
    %45 = vector.shape_cast %44 : vector<1x84x160xbf16> to vector<84x160xbf16>
    %cst_35 = arith.constant dense<0.000000e+00> : vector<80x160xf32>
    %46 = tpu.matmul %43, %45, %cst_35 {dimension_numbers = #tpu.dot_dimension_numbers<[1], [0], [0], [1], [0, 0, 1, 1], [], []>} : vector<80x84xbf16>, vector<84x160xbf16>, vector<80x160xf32> -> vector<80x160xf32>
    %47 = arith.addf %41, %46 : vector<80x160xf32>
    %48 = vector.extract_strided_slice %24 {offsets = [32, 0], sizes = [80, 84], strides = [1, 1]} : vector<112x84xf32> to vector<80x84xf32>
    %49 = arith.truncf %48 : vector<80x84xf32> to vector<80x84xbf16>
    %c4 = arith.constant 4 : index
    %c0_36 = arith.constant 0 : index
    %c0_37 = arith.constant 0 : index
    %50 = vector.load %arg6[%c4, %c0_36, %c0_37] : memref<5x84x160xbf16, #tpu.memory_space<vmem>>, vector<1x84x160xbf16>
    %51 = vector.shape_cast %50 : vector<1x84x160xbf16> to vector<84x160xbf16>
    %cst_38 = arith.constant dense<0.000000e+00> : vector<80x160xf32>
    %52 = tpu.matmul %49, %51, %cst_38 {dimension_numbers = #tpu.dot_dimension_numbers<[1], [0], [0], [1], [0, 0, 1, 1], [], []>} : vector<80x84xbf16>, vector<84x160xbf16>, vector<80x160xf32> -> vector<80x160xf32>
    %53 = arith.addf %47, %52 : vector<80x160xf32>
    %c0_39 = arith.constant 0 : index
    %c0_40 = arith.constant 0 : index
    %54 = vector.load %arg7[%c0_39, %c0_40] : memref<1x160xf32, #tpu.memory_space<vmem>>, vector<1x160xf32>
    %55 = vector.broadcast %54 : vector<1x160xf32> to vector<80x160xf32>
    %56 = arith.addf %53, %55 : vector<80x160xf32>
    %cst_41 = arith.constant 0.000000e+00 : f32
    %57 = vector.broadcast %cst_41 : f32 to vector<80x160xf32>
    %58 = arith.maximumf %56, %57 : vector<80x160xf32>
    %59 = arith.truncf %58 : vector<80x160xf32> to vector<80x160xbf16>
    %c0_42 = arith.constant 0 : index
    %c0_43 = arith.constant 0 : index
    %c0_44 = arith.constant 0 : index
    %60 = vector.load %arg8[%c0_42, %c0_43, %c0_44] : memref<2x40x80xbf16, #tpu.memory_space<vmem>>, vector<1x40x80xbf16>
    %61 = vector.shape_cast %60 : vector<1x40x80xbf16> to vector<40x80xbf16>
    %cst_45 = arith.constant dense<0.000000e+00> : vector<40x160xf32>
    %62 = tpu.matmul %61, %59, %cst_45 {dimension_numbers = #tpu.dot_dimension_numbers<[1], [0], [0], [1], [0, 0, 1, 1], [], []>} : vector<40x80xbf16>, vector<80x160xbf16>, vector<40x160xf32> -> vector<40x160xf32>
    %c1_46 = arith.constant 1 : index
    %c0_47 = arith.constant 0 : index
    %c0_48 = arith.constant 0 : index
    %63 = vector.load %arg8[%c1_46, %c0_47, %c0_48] : memref<2x40x80xbf16, #tpu.memory_space<vmem>>, vector<1x40x80xbf16>
    %64 = vector.shape_cast %63 : vector<1x40x80xbf16> to vector<40x80xbf16>
    %cst_49 = arith.constant dense<0.000000e+00> : vector<40x160xf32>
    %65 = tpu.matmul %64, %59, %cst_49 {dimension_numbers = #tpu.dot_dimension_numbers<[1], [0], [0], [1], [0, 0, 1, 1], [], []>} : vector<40x80xbf16>, vector<80x160xbf16>, vector<40x160xf32> -> vector<40x160xf32>
    %66 = arith.maximumf %62, %65 : vector<40x160xf32>
    %67 = arith.truncf %66 : vector<40x160xf32> to vector<40x160xbf16>
    %c0_50 = arith.constant 0 : index
    %c0_51 = arith.constant 0 : index
    %c0_52 = arith.constant 0 : index
    %68 = vector.load %arg9[%c0_50, %c0_51, %c0_52] : memref<2x160x80xbf16, #tpu.memory_space<vmem>>, vector<1x160x80xbf16>
    %69 = vector.shape_cast %68 : vector<1x160x80xbf16> to vector<160x80xbf16>
    %cst_53 = arith.constant dense<0.000000e+00> : vector<40x80xf32>
    %70 = tpu.matmul %67, %69, %cst_53 {dimension_numbers = #tpu.dot_dimension_numbers<[1], [0], [0], [1], [0, 0, 1, 1], [], []>} : vector<40x160xbf16>, vector<160x80xbf16>, vector<40x80xf32> -> vector<40x80xf32>
    %c1_54 = arith.constant 1 : index
    %c0_55 = arith.constant 0 : index
    %c0_56 = arith.constant 0 : index
    %71 = vector.load %arg9[%c1_54, %c0_55, %c0_56] : memref<2x160x80xbf16, #tpu.memory_space<vmem>>, vector<1x160x80xbf16>
    %72 = vector.shape_cast %71 : vector<1x160x80xbf16> to vector<160x80xbf16>
    %cst_57 = arith.constant dense<0.000000e+00> : vector<40x80xf32>
    %73 = tpu.matmul %67, %72, %cst_57 {dimension_numbers = #tpu.dot_dimension_numbers<[1], [0], [0], [1], [0, 0, 1, 1], [], []>} : vector<40x160xbf16>, vector<160x80xbf16>, vector<40x80xf32> -> vector<40x80xf32>
    %74 = arith.maximumf %70, %73 : vector<40x80xf32>
    %75 = vector.extract_strided_slice %74 {offsets = [0, 0], sizes = [8, 80], strides = [1, 1]} : vector<40x80xf32> to vector<8x80xf32>
    %76 = arith.truncf %75 : vector<8x80xf32> to vector<8x80xbf16>
    %c0_58 = arith.constant 0 : index
    %c0_59 = arith.constant 0 : index
    %c0_60 = arith.constant 0 : index
    %77 = vector.load %arg10[%c0_58, %c0_59, %c0_60] : memref<5x80x128xbf16, #tpu.memory_space<vmem>>, vector<1x80x128xbf16>
    %78 = vector.shape_cast %77 : vector<1x80x128xbf16> to vector<80x128xbf16>
    %cst_61 = arith.constant dense<0.000000e+00> : vector<8x128xf32>
    %79 = tpu.matmul %76, %78, %cst_61 {dimension_numbers = #tpu.dot_dimension_numbers<[1], [0], [0], [1], [0, 0, 1, 1], [], []>} : vector<8x80xbf16>, vector<80x128xbf16>, vector<8x128xf32> -> vector<8x128xf32>
    %80 = vector.extract_strided_slice %74 {offsets = [8, 0], sizes = [8, 80], strides = [1, 1]} : vector<40x80xf32> to vector<8x80xf32>
    %81 = arith.truncf %80 : vector<8x80xf32> to vector<8x80xbf16>
    %c1_62 = arith.constant 1 : index
    %c0_63 = arith.constant 0 : index
    %c0_64 = arith.constant 0 : index
    %82 = vector.load %arg10[%c1_62, %c0_63, %c0_64] : memref<5x80x128xbf16, #tpu.memory_space<vmem>>, vector<1x80x128xbf16>
    %83 = vector.shape_cast %82 : vector<1x80x128xbf16> to vector<80x128xbf16>
    %cst_65 = arith.constant dense<0.000000e+00> : vector<8x128xf32>
    %84 = tpu.matmul %81, %83, %cst_65 {dimension_numbers = #tpu.dot_dimension_numbers<[1], [0], [0], [1], [0, 0, 1, 1], [], []>} : vector<8x80xbf16>, vector<80x128xbf16>, vector<8x128xf32> -> vector<8x128xf32>
    %85 = arith.addf %79, %84 : vector<8x128xf32>
    %86 = vector.extract_strided_slice %74 {offsets = [16, 0], sizes = [8, 80], strides = [1, 1]} : vector<40x80xf32> to vector<8x80xf32>
    %87 = arith.truncf %86 : vector<8x80xf32> to vector<8x80xbf16>
    %c2_66 = arith.constant 2 : index
    %c0_67 = arith.constant 0 : index
    %c0_68 = arith.constant 0 : index
    %88 = vector.load %arg10[%c2_66, %c0_67, %c0_68] : memref<5x80x128xbf16, #tpu.memory_space<vmem>>, vector<1x80x128xbf16>
    %89 = vector.shape_cast %88 : vector<1x80x128xbf16> to vector<80x128xbf16>
    %cst_69 = arith.constant dense<0.000000e+00> : vector<8x128xf32>
    %90 = tpu.matmul %87, %89, %cst_69 {dimension_numbers = #tpu.dot_dimension_numbers<[1], [0], [0], [1], [0, 0, 1, 1], [], []>} : vector<8x80xbf16>, vector<80x128xbf16>, vector<8x128xf32> -> vector<8x128xf32>
    %91 = arith.addf %85, %90 : vector<8x128xf32>
    %92 = vector.extract_strided_slice %74 {offsets = [24, 0], sizes = [8, 80], strides = [1, 1]} : vector<40x80xf32> to vector<8x80xf32>
    %93 = arith.truncf %92 : vector<8x80xf32> to vector<8x80xbf16>
    %c3_70 = arith.constant 3 : index
    %c0_71 = arith.constant 0 : index
    %c0_72 = arith.constant 0 : index
    %94 = vector.load %arg10[%c3_70, %c0_71, %c0_72] : memref<5x80x128xbf16, #tpu.memory_space<vmem>>, vector<1x80x128xbf16>
    %95 = vector.shape_cast %94 : vector<1x80x128xbf16> to vector<80x128xbf16>
    %cst_73 = arith.constant dense<0.000000e+00> : vector<8x128xf32>
    %96 = tpu.matmul %93, %95, %cst_73 {dimension_numbers = #tpu.dot_dimension_numbers<[1], [0], [0], [1], [0, 0, 1, 1], [], []>} : vector<8x80xbf16>, vector<80x128xbf16>, vector<8x128xf32> -> vector<8x128xf32>
    %97 = arith.addf %91, %96 : vector<8x128xf32>
    %98 = vector.extract_strided_slice %74 {offsets = [32, 0], sizes = [8, 80], strides = [1, 1]} : vector<40x80xf32> to vector<8x80xf32>
    %99 = arith.truncf %98 : vector<8x80xf32> to vector<8x80xbf16>
    %c4_74 = arith.constant 4 : index
    %c0_75 = arith.constant 0 : index
    %c0_76 = arith.constant 0 : index
    %100 = vector.load %arg10[%c4_74, %c0_75, %c0_76] : memref<5x80x128xbf16, #tpu.memory_space<vmem>>, vector<1x80x128xbf16>
    %101 = vector.shape_cast %100 : vector<1x80x128xbf16> to vector<80x128xbf16>
    %cst_77 = arith.constant dense<0.000000e+00> : vector<8x128xf32>
    %102 = tpu.matmul %99, %101, %cst_77 {dimension_numbers = #tpu.dot_dimension_numbers<[1], [0], [0], [1], [0, 0, 1, 1], [], []>} : vector<8x80xbf16>, vector<80x128xbf16>, vector<8x128xf32> -> vector<8x128xf32>
    %103 = arith.addf %97, %102 : vector<8x128xf32>
    %c0_78 = arith.constant 0 : index
    %c0_79 = arith.constant 0 : index
    %104 = vector.load %arg11[%c0_78, %c0_79] : memref<1x128xf32, #tpu.memory_space<vmem>>, vector<1x128xf32>
    %105 = vector.broadcast %104 : vector<1x128xf32> to vector<8x128xf32>
    %106 = arith.addf %103, %105 : vector<8x128xf32>
    %cst_80 = arith.constant 0.000000e+00 : f32
    %107 = vector.broadcast %cst_80 : f32 to vector<8x128xf32>
    %108 = arith.maximumf %106, %107 : vector<8x128xf32>
    %109 = arith.truncf %108 : vector<8x128xf32> to vector<8x128xbf16>
    %c0_81 = arith.constant 0 : index
    %c0_82 = arith.constant 0 : index
    %110 = vector.load %arg12[%c0_81, %c0_82] : memref<128x128xbf16, #tpu.memory_space<vmem>>, vector<128x128xbf16>
    %cst_83 = arith.constant dense<0.000000e+00> : vector<8x128xf32>
    %111 = tpu.matmul %109, %110, %cst_83 {dimension_numbers = #tpu.dot_dimension_numbers<[1], [0], [0], [1], [0, 0, 1, 1], [], []>} : vector<8x128xbf16>, vector<128x128xbf16>, vector<8x128xf32> -> vector<8x128xf32>
    %c0_84 = arith.constant 0 : index
    %c0_85 = arith.constant 0 : index
    %112 = vector.load %arg13[%c0_84, %c0_85] : memref<1x128xf32, #tpu.memory_space<vmem>>, vector<1x128xf32>
    %113 = vector.broadcast %112 : vector<1x128xf32> to vector<8x128xf32>
    %114 = arith.addf %111, %113 : vector<8x128xf32>
    %cst_86 = arith.constant 0.000000e+00 : f32
    %115 = vector.broadcast %cst_86 : f32 to vector<8x128xf32>
    %116 = arith.maximumf %114, %115 : vector<8x128xf32>
    %117 = arith.truncf %116 : vector<8x128xf32> to vector<8x128xbf16>
    %c0_87 = arith.constant 0 : index
    %c0_88 = arith.constant 0 : index
    %118 = vector.load %arg14[%c0_87, %c0_88] : memref<128x128xbf16, #tpu.memory_space<vmem>>, vector<128x128xbf16>
    %cst_89 = arith.constant dense<0.000000e+00> : vector<8x128xf32>
    %119 = tpu.matmul %117, %118, %cst_89 {dimension_numbers = #tpu.dot_dimension_numbers<[1], [0], [0], [1], [0, 0, 1, 1], [], []>} : vector<8x128xbf16>, vector<128x128xbf16>, vector<8x128xf32> -> vector<8x128xf32>
    %c0_90 = arith.constant 0 : index
    %c0_91 = arith.constant 0 : index
    %120 = vector.load %arg15[%c0_90, %c0_91] : memref<1x128xf32, #tpu.memory_space<vmem>>, vector<1x128xf32>
    %121 = vector.broadcast %120 : vector<1x128xf32> to vector<8x128xf32>
    %122 = arith.addf %119, %121 : vector<8x128xf32>
    %c0_92 = arith.constant 0 : index
    %c0_93 = arith.constant 0 : index
    %c0_94 = arith.constant 0 : index
    %123 = vector.load %arg16[%c0_92, %c0_93, %c0_94] : memref<1x8x128xf32, #tpu.memory_space<vmem>>, vector<1x8x128xf32>
    %124 = vector.shape_cast %123 : vector<1x8x128xf32> to vector<8x128xf32>
    %125 = vector.shape_cast %122 : vector<8x128xf32> to vector<1x8x128xf32>
    tpu.vector_store %arg16[%c0_92, %c0_93, %c0_94], %125 {strides = array<i32>} : memref<1x8x128xf32, #tpu.memory_space<vmem>>, vector<1x8x128xf32>,
    return
  }
  func.func @transform_0(%arg0: i32) -> (i32, i32, i32) {
    %c0_i32 = arith.constant 0 : i32
    %c0_i32_0 = arith.constant 0 : i32
    %c0_i32_1 = arith.constant 0 : i32
    return %arg0, %c0_i32, %c0_i32_0 : i32, i32, i32
  }
  func.func @transform_1(%arg0: i32) -> (i32, i32) {
    %c0_i32 = arith.constant 0 : i32
    %c0_i32_0 = arith.constant 0 : i32
    %c0_i32_1 = arith.constant 0 : i32
    return %c0_i32, %c0_i32_0 : i32, i32
  }
  func.func @transform_2(%arg0: i32) -> (i32, i32) {
    %c0_i32 = arith.constant 0 : i32
    %c0_i32_0 = arith.constant 0 : i32
    %c0_i32_1 = arith.constant 0 : i32
    return %c0_i32, %c0_i32_0 : i32, i32
  }
  func.func @transform_3(%arg0: i32) -> (i32, i32, i32) {
    %c0_i32 = arith.constant 0 : i32
    %c0_i32_0 = arith.constant 0 : i32
    %c0_i32_1 = arith.constant 0 : i32
    %c0_i32_2 = arith.constant 0 : i32
    return %c0_i32, %c0_i32_0, %c0_i32_1 : i32, i32, i32
  }
  func.func @transform_4(%arg0: i32) -> (i32, i32, i32) {
    %c0_i32 = arith.constant 0 : i32
    %c0_i32_0 = arith.constant 0 : i32
    %c0_i32_1 = arith.constant 0 : i32
    %c0_i32_2 = arith.constant 0 : i32
    return %c0_i32, %c0_i32_0, %c0_i32_1 : i32, i32, i32
  }
  func.func @transform_5(%arg0: i32) -> (i32, i32, i32) {
    %c0_i32 = arith.constant 0 : i32
    %c0_i32_0 = arith.constant 0 : i32
    %c0_i32_1 = arith.constant 0 : i32
    %c0_i32_2 = arith.constant 0 : i32
    return %c0_i32, %c0_i32_0, %c0_i32_1 : i32, i32, i32
  }
  func.func @transform_6(%arg0: i32) -> (i32, i32) {
    %c0_i32 = arith.constant 0 : i32
    %c0_i32_0 = arith.constant 0 : i32
    %c0_i32_1 = arith.constant 0 : i32
    return %c0_i32, %c0_i32_0 : i32, i32
  }
  func.func @transform_7(%arg0: i32) -> (i32, i32, i32) {
    %c0_i32 = arith.constant 0 : i32
    %c0_i32_0 = arith.constant 0 : i32
    %c0_i32_1 = arith.constant 0 : i32
    %c0_i32_2 = arith.constant 0 : i32
    return %c0_i32, %c0_i32_0, %c0_i32_1 : i32, i32, i32
  }
  func.func @transform_8(%arg0: i32) -> (i32, i32, i32) {
    %c0_i32 = arith.constant 0 : i32
    %c0_i32_0 = arith.constant 0 : i32
    %c0_i32_1 = arith.constant 0 : i32
    %c0_i32_2 = arith.constant 0 : i32
    return %c0_i32, %c0_i32_0, %c0_i32_1 : i32, i32, i32
  }
  func.func @transform_9(%arg0: i32) -> (i32, i32, i32) {
    %c0_i32 = arith.constant 0 : i32
    %c0_i32_0 = arith.constant 0 : i32
    %c0_i32_1 = arith.constant 0 : i32
    %c0_i32_2 = arith.constant 0 : i32
    return %c0_i32, %c0_i32_0, %c0_i32_1 : i32, i32, i32
  }
  func.func @transform_10(%arg0: i32) -> (i32, i32) {
    %c0_i32 = arith.constant 0 : i32
    %c0_i32_0 = arith.constant 0 : i32
    %c0_i32_1 = arith.constant 0 : i32
    return %c0_i32, %c0_i32_0 : i32, i32
  }
  func.func @transform_11(%arg0: i32) -> (i32, i32) {
    %c0_i32 = arith.constant 0 : i32
    %c0_i32_0 = arith.constant 0 : i32
    %c0_i32_1 = arith.constant 0 : i32
    return %c0_i32, %c0_i32_0 : i32, i32
  }
  func.func @transform_12(%arg0: i32) -> (i32, i32) {
    %c0_i32 = arith.constant 0 : i32
    %c0_i32_0 = arith.constant 0 : i32
    %c0_i32_1 = arith.constant 0 : i32
    return %c0_i32, %c0_i32_0 : i32, i32
  }
  func.func @transform_13(%arg0: i32) -> (i32, i32) {
    %c0_i32 = arith.constant 0 : i32
    %c0_i32_0 = arith.constant 0 : i32
    %c0_i32_1 = arith.constant 0 : i32
    return %c0_i32, %c0_i32_0 : i32, i32
  }
  func.func @transform_14(%arg0: i32) -> (i32, i32) {
    %c0_i32 = arith.constant 0 : i32
    %c0_i32_0 = arith.constant 0 : i32
    %c0_i32_1 = arith.constant 0 : i32
    return %c0_i32, %c0_i32_0 : i32, i32
  }
  func.func @transform_15(%arg0: i32) -> (i32, i32, i32) {
    %c0_i32 = arith.constant 0 : i32
    %c0_i32_0 = arith.constant 0 : i32
    %c0_i32_1 = arith.constant 0 : i32
    return %arg0, %c0_i32, %c0_i32_0 : i32, i32, i32
  }
}

</mosaic_0001>

<llo_original>
// kernel: net_forward.1
$region0: #{net_forward.1}
  #allocation0 [shape = 'u32[]', space=smem, size = 0x4, offset = 0x4, fixed_abs, tag = 'smem constant byte address 0x4 - core index']
  #allocation1 [shape = 'u32[72,128]{1,0:T(1,128)}', space=vmem, size = 0x9000, scoped, tag = 'internal scratch']
  %s0 = inlined_call_operand.vmem [shape: bf16[1,224,480], index: 0, kind: input, shape index: {}]
  %s1 = inlined_call_operand.vmem [shape: bf16[480,168], index: 1, kind: input, shape index: {}]
  %s2 = inlined_call_operand.vmem [shape: f32[1,168], index: 2, kind: input, shape index: {}]
  %s3 = inlined_call_operand.vmem [shape: bf16[2,112,224], index: 3, kind: input, shape index: {}]
  %s4 = inlined_call_operand.vmem [shape: bf16[2,168,84], index: 4, kind: input, shape index: {}]
  %s5 = inlined_call_operand.vmem [shape: bf16[5,84,160], index: 5, kind: input, shape index: {}]
  %s6 = inlined_call_operand.vmem [shape: f32[1,160], index: 6, kind: input, shape index: {}]
  %s7 = inlined_call_operand.vmem [shape: bf16[2,40,80], index: 7, kind: input, shape index: {}]
  %s8 = inlined_call_operand.vmem [shape: bf16[2,160,80], index: 8, kind: input, shape index: {}]
  %s9 = inlined_call_operand.vmem [shape: bf16[5,80,128], index: 9, kind: input, shape index: {}]
  %s10 = inlined_call_operand.vmem [shape: f32[1,128], index: 10, kind: input, shape index: {}]
  %s11 = inlined_call_operand.vmem [shape: bf16[128,128], index: 11, kind: input, shape index: {}]
  %s12 = inlined_call_operand.vmem [shape: f32[1,128], index: 12, kind: input, shape index: {}]
  %s13 = inlined_call_operand.vmem [shape: bf16[128,128], index: 13, kind: input, shape index: {}]
  %s14 = inlined_call_operand.vmem [shape: f32[1,128], index: 14, kind: input, shape index: {}]
  %s15 = inlined_call_operand.vmem [shape: f32[1,8,128], index: 15, kind: output, shape index: {}]
  %s16 = sld [smem:[#allocation0]]
  $region70: #{net_forward.1} parent=0
    _
  %s18 = ssub.s32 1, %s16
  %s19 = scalar_select 0, %s18, %s16
  // Predicated region
  $region2: #{net_forward.1} parent=0 // pred_check
    _
  $region3: #{net_forward.1} parent=0 // pred_check_branch
    %21 = sbr.rel (0) target = $region5
  $region4: #{net_forward.1} parent=0 // pred_region
    _
  $region5: #{net_forward.1} parent=0 // pred_fallthru
    _
  // Predicated region
  $region6: #{net_forward.1} parent=0 // pred_check
    _
  $region7: #{net_forward.1} parent=0 // pred_check_branch
    %23 = sbr.rel (0) target = $region9
  $region8: #{net_forward.1} parent=0 // pred_region
    _
  $region9: #{net_forward.1} parent=0 // pred_fallthru
    _
  // Predicated region
  $region10: #{net_forward.1} parent=0 // pred_check
    _
  $region11: #{net_forward.1} parent=0 // pred_check_branch
    %25 = sbr.rel (0) target = $region13
  $region12: #{net_forward.1} parent=0 // pred_region
    _
  $region13: #{net_forward.1} parent=0 // pred_fallthru
    _
  // Predicated region
  $region14: #{net_forward.1} parent=0 // pred_check
    _
  $region15: #{net_forward.1} parent=0 // pred_check_branch
    %27 = sbr.rel (0) target = $region17
  $region16: #{net_forward.1} parent=0 // pred_region
    _
  $region17: #{net_forward.1} parent=0 // pred_fallthru
    _
  // Predicated region
  $region18: #{net_forward.1} parent=0 // pred_check
    _
  $region19: #{net_forward.1} parent=0 // pred_check_branch
    %29 = sbr.rel (0) target = $region21
  $region20: #{net_forward.1} parent=0 // pred_region
    _
  $region21: #{net_forward.1} parent=0 // pred_fallthru
    _
  // Predicated region
  $region22: #{net_forward.1} parent=0 // pred_check
    _
  $region23: #{net_forward.1} parent=0 // pred_check_branch
    %31 = sbr.rel (0) target = $region25
  $region24: #{net_forward.1} parent=0 // pred_region
    _
  $region25: #{net_forward.1} parent=0 // pred_fallthru
    _
  // Predicated region
  $region26: #{net_forward.1} parent=0 // pred_check
    _
  $region27: #{net_forward.1} parent=0 // pred_check_branch
    %33 = sbr.rel (0) target = $region29
  $region28: #{net_forward.1} parent=0 // pred_region
    _
  $region29: #{net_forward.1} parent=0 // pred_fallthru
    _
  // Predicated region
  $region30: #{net_forward.1} parent=0 // pred_check
    _
  $region31: #{net_forward.1} parent=0 // pred_check_branch
    %35 = sbr.rel (0) target = $region33
  $region32: #{net_forward.1} parent=0 // pred_region
    _
  $region33: #{net_forward.1} parent=0 // pred_fallthru
    _
  // Predicated region
  $region34: #{net_forward.1} parent=0 // pred_check
    _
  $region35: #{net_forward.1} parent=0 // pred_check_branch
    %37 = sbr.rel (0) target = $region37
  $region36: #{net_forward.1} parent=0 // pred_region
    _
  $region37: #{net_forward.1} parent=0 // pred_fallthru
    _
  // Predicated region
  $region38: #{net_forward.1} parent=0 // pred_check
    _
  $region39: #{net_forward.1} parent=0 // pred_check_branch
    %39 = sbr.rel (0) target = $region41
  $region40: #{net_forward.1} parent=0 // pred_region
    _
  $region41: #{net_forward.1} parent=0 // pred_fallthru
    _
  // Predicated region
  $region42: #{net_forward.1} parent=0 // pred_check
    _
  $region43: #{net_forward.1} parent=0 // pred_check_branch
    %41 = sbr.rel (0) target = $region45
  $region44: #{net_forward.1} parent=0 // pred_region
    _
  $region45: #{net_forward.1} parent=0 // pred_fallthru
    _
  // Predicated region
  $region46: #{net_forward.1} parent=0 // pred_check
    _
  $region47: #{net_forward.1} parent=0 // pred_check_branch
    %43 = sbr.rel (0) target = $region49
  $region48: #{net_forward.1} parent=0 // pred_region
    _
  $region49: #{net_forward.1} parent=0 // pred_fallthru
    _
  // Predicated region
  $region50: #{net_forward.1} parent=0 // pred_check
    _
  $region51: #{net_forward.1} parent=0 // pred_check_branch
    %45 = sbr.rel (0) target = $region53
  $region52: #{net_forward.1} parent=0 // pred_region
    _
  $region53: #{net_forward.1} parent=0 // pred_fallthru
    _
  // Predicated region
  $region54: #{net_forward.1} parent=0 // pred_check
    _
  $region55: #{net_forward.1} parent=0 // pred_check_branch
    %47 = sbr.rel (0) target = $region57
  $region56: #{net_forward.1} parent=0 // pred_region
    _
  $region57: #{net_forward.1} parent=0 // pred_fallthru
    _
  // Predicated region
  $region58: #{net_forward.1} parent=0 // pred_check
    _
  $region59: #{net_forward.1} parent=0 // pred_check_branch
    %49 = sbr.rel (0) target = $region61
  $region60: #{net_forward.1} parent=0 // pred_region
    _
  $region61: #{net_forward.1} parent=0 // pred_fallthru
    _
  %v51 = vld [vmem:[%s0] sm:$0xff]
  %v52 = vld [vmem:[%s0 + $0x8] sm:$0xff]
  %v53 = vld [vmem:[%s0 + $0x10] sm:$0xff]
  %v54 = vld [vmem:[%s0 + $0x18] sm:$0xff]
  %v55 = vld [vmem:[%s0 + $0x20] sm:$0xff]
  %v56 = vld [vmem:[%s0 + $0x28] sm:$0xff]
  %v57 = vld [vmem:[%s0 + $0x30] sm:$0xff]
  %v58 = vld [vmem:[%s0 + $0x38] sm:$0xff]
  %v59 = vld [vmem:[%s0 + $0x40] sm:$0xff]
  %v60 = vld [vmem:[%s0 + $0x48] sm:$0xff]
  %v61 = vld [vmem:[%s0 + $0x50] sm:$0xff]
  %v62 = vld [vmem:[%s0 + $0x58] sm:$0xff]
  %v63 = vld [vmem:[%s0 + $0x60] sm:$0xff]
  %v64 = vld [vmem:[%s0 + $0x68] sm:$0xff]
  %v65 = vld [vmem:[%s0 + $0x70] sm:$0xff]
  %v66 = vld [vmem:[%s0 + $0x78] sm:$0xff]
  %v67 = vld [vmem:[%s0 + $0x80] sm:$0xff]
  %v68 = vld [vmem:[%s0 + $0x88] sm:$0xff]
  %v69 = vld [vmem:[%s0 + $0x90] sm:$0xff]
  %v70 = vld [vmem:[%s0 + $0x98] sm:$0xff]
  %v71 = vld [vmem:[%s0 + $0xa0] sm:$0xff]
  %v72 = vld [vmem:[%s0 + $0xa8] sm:$0xff]
  %v73 = vld [vmem:[%s0 + $0xb0] sm:$0xff]
  %v74 = vld [vmem:[%s0 + $0xb8] sm:$0xff]
  %v75 = vld [vmem:[%s0 + $0xc0] sm:$0xff]
  %v76 = vld [vmem:[%s0 + $0xc8] sm:$0xff]
  %v77 = vld [vmem:[%s0 + $0xd0] sm:$0xff]
  %v78 = vld [vmem:[%s0 + $0xd8] sm:$0xff]
  %v79 = vld [vmem:[%s0 + $0xe0] sm:$0xff]
  %v80 = vld [vmem:[%s0 + $0xe8] sm:$0xff]
  %v81 = vld [vmem:[%s0 + $0xf0] sm:$0xff]
  %v82 = vld [vmem:[%s0 + $0xf8] sm:$0xff]
  %v83 = vld [vmem:[%s0 + $0x100] sm:$0xff]
  %v84 = vld [vmem:[%s0 + $0x108] sm:$0xff]
  %v85 = vld [vmem:[%s0 + $0x110] sm:$0xff]
  %v86 = vld [vmem:[%s0 + $0x118] sm:$0xff]
  %v87 = vld [vmem:[%s0 + $0x120] sm:$0xff]
  %v88 = vld [vmem:[%s0 + $0x128] sm:$0xff]
  %v89 = vld [vmem:[%s0 + $0x130] sm:$0xff]
  %v90 = vld [vmem:[%s0 + $0x138] sm:$0xff]
  %v91 = vld [vmem:[%s0 + $0x140] sm:$0xff]
  %v92 = vld [vmem:[%s0 + $0x148] sm:$0xff]
  %v93 = vld [vmem:[%s0 + $0x150] sm:$0xff]
  %v94 = vld [vmem:[%s0 + $0x158] sm:$0xff]
  %v95 = vld [vmem:[%s0 + $0x160] sm:$0xff]
  %v96 = vld [vmem:[%s0 + $0x168] sm:$0xff]
  %v97 = vld [vmem:[%s0 + $0x170] sm:$0xff]
  %v98 = vld [vmem:[%s0 + $0x178] sm:$0xff]
  %v99 = vld [vmem:[%s0 + $0x180] sm:$0xff]
  %v100 = vld [vmem:[%s0 + $0x188] sm:$0xff]
  %v101 = vld [vmem:[%s0 + $0x190] sm:$0xff]
  %v102 = vld [vmem:[%s0 + $0x198] sm:$0xff]
  %v103 = vld [vmem:[%s0 + $0x1a0] sm:$0xff]
  %v104 = vld [vmem:[%s0 + $0x1a8] sm:$0xff]
  %v105 = vld [vmem:[%s0 + $0x1b0] sm:$0xff]
  %v106 = vld [vmem:[%s0 + $0x1b8] sm:$0xff]
  %v107 = vld [vmem:[%s1] sm:$0xff]
  %v108 = vld [vmem:[%s1 + $0x8] sm:$0xff]
  %v109 = vld [vmem:[%s1 + $0x10] sm:$0xff]
  %v110 = vld [vmem:[%s1 + $0x18] sm:$0xff]
  %v111 = vld [vmem:[%s1 + $0x20] sm:$0xff]
  %v112 = vld [vmem:[%s1 + $0x28] sm:$0xff]
  %v113 = vld [vmem:[%s1 + $0x30] sm:$0xff]
  %v114 = vld [vmem:[%s1 + $0x38] sm:$0xff]
  %v115 = vld [vmem:[%s1 + $0x40] sm:$0xff]
  %v116 = vld [vmem:[%s1 + $0x48] sm:$0xff]
  %v117 = vld [vmem:[%s1 + $0x50] sm:$0xff]
  %v118 = vld [vmem:[%s1 + $0x58] sm:$0xff]
  %v119 = vld [vmem:[%s1 + $0x60] sm:$0xff]
  %v120 = vld [vmem:[%s1 + $0x68] sm:$0xff]
  %v121 = vld [vmem:[%s1 + $0x70] sm:$0xff]
  %v122 = vld [vmem:[%s1 + $0x78] sm:$0xff]
  %v123 = vld [vmem:[%s1 + $0x80] sm:$0xff]
  %v124 = vld [vmem:[%s1 + $0x88] sm:$0xff]
  %v125 = vld [vmem:[%s1 + $0x90] sm:$0xff]
  %v126 = vld [vmem:[%s1 + $0x98] sm:$0xff]
  %v127 = vld [vmem:[%s1 + $0xa0] sm:$0xff]
  %v128 = vld [vmem:[%s1 + $0xa8] sm:$0xff]
  %v129 = vld [vmem:[%s1 + $0xb0] sm:$0xff]
  %v130 = vld [vmem:[%s1 + $0xb8] sm:$0xff]
  %v131 = vld [vmem:[%s1 + $0xc0] sm:$0xff]
  %v132 = vld [vmem:[%s1 + $0xc8] sm:$0xff]
  %v133 = vld [vmem:[%s1 + $0xd0] sm:$0xff]
  %v134 = vld [vmem:[%s1 + $0xd8] sm:$0xff]
  %v135 = vld [vmem:[%s1 + $0xe0] sm:$0xff]
  %v136 = vld [vmem:[%s1 + $0xe8] sm:$0xff]
  %v137 = vld [vmem:[%s1 + $0xf0] sm:$0xff]
  %v138 = vld [vmem:[%s1 + $0xf8] sm:$0xff]
  %v139 = vld [vmem:[%s1 + $0x100] sm:$0xff]
  %v140 = vld [vmem:[%s1 + $0x108] sm:$0xff]
  %v141 = vld [vmem:[%s1 + $0x110] sm:$0xff]
  %v142 = vld [vmem:[%s1 + $0x118] sm:$0xff]
  %v143 = vld [vmem:[%s1 + $0x120] sm:$0xff]
  %v144 = vld [vmem:[%s1 + $0x128] sm:$0xff]
  %v145 = vld [vmem:[%s1 + $0x130] sm:$0xff]
  %v146 = vld [vmem:[%s1 + $0x138] sm:$0xff]
  %v147 = vld [vmem:[%s1 + $0x140] sm:$0xff]
  %v148 = vld [vmem:[%s1 + $0x148] sm:$0xff]
  %v149 = vld [vmem:[%s1 + $0x150] sm:$0xff]
  %v150 = vld [vmem:[%s1 + $0x158] sm:$0xff]
  %v151 = vld [vmem:[%s1 + $0x160] sm:$0xff]
  %v152 = vld [vmem:[%s1 + $0x168] sm:$0xff]
  %v153 = vld [vmem:[%s1 + $0x170] sm:$0xff]
  %v154 = vld [vmem:[%s1 + $0x178] sm:$0xff]
  %v155 = vld [vmem:[%s1 + $0x180] sm:$0xff]
  %v156 = vld [vmem:[%s1 + $0x188] sm:$0xff]
  %v157 = vld [vmem:[%s1 + $0x190] sm:$0xff]
  %v158 = vld [vmem:[%s1 + $0x198] sm:$0xff]
  %v159 = vld [vmem:[%s1 + $0x1a0] sm:$0xff]
  %v160 = vld [vmem:[%s1 + $0x1a8] sm:$0xff]
  %v161 = vld [vmem:[%s1 + $0x1b0] sm:$0xff]
  %v162 = vld [vmem:[%s1 + $0x1b8] sm:$0xff]
  %v163 = vld [vmem:[%s1 + $0x1c0] sm:$0xff]
  %v164 = vld [vmem:[%s1 + $0x1c8] sm:$0xff]
  %v165 = vld [vmem:[%s1 + $0x1d0] sm:$0xff]
  %v166 = vld [vmem:[%s1 + $0x1d8] sm:$0xff]
  %v167 = vld [vmem:[%s2] sm:$0x3]
  %v169 = vperm.slane %v167, 0
  %v170 = vperm.slane %v167, 1
  %v229 = vunpack.c.l.b16 %v51
  %v230 = vunpack.c.h.b16 %v51
  %v231 = vunpack.c.l.b16 %v52
  %v232 = vunpack.c.h.b16 %v52
  %v233 = vunpack.c.l.b16 %v53
  %v234 = vunpack.c.h.b16 %v53
  %v235 = vunpack.c.l.b16 %v54
  %v236 = vunpack.c.h.b16 %v54
  %v237 = vunpack.c.l.b16 %v55
  %v238 = vunpack.c.h.b16 %v55
  %v239 = vunpack.c.l.b16 %v56
  %v240 = vunpack.c.h.b16 %v56
  %v241 = vunpack.c.l.b16 %v57
  %v242 = vunpack.c.h.b16 %v57
  %v243 = vunpack.c.l.b16 %v58
  %v244 = vunpack.c.h.b16 %v58
  %v245 = vunpack.c.l.b16 %v59
  %v246 = vunpack.c.h.b16 %v59
  %v247 = vunpack.c.l.b16 %v60
  %v248 = vunpack.c.h.b16 %v60
  %v249 = vunpack.c.l.b16 %v61
  %v250 = vunpack.c.h.b16 %v61
  %v251 = vunpack.c.l.b16 %v62
  %v252 = vunpack.c.h.b16 %v62
  %v253 = vunpack.c.l.b16 %v63
  %v254 = vunpack.c.h.b16 %v63
  %v255 = vunpack.c.l.b16 %v64
  %v256 = vunpack.c.h.b16 %v64
  %v257 = vunpack.c.l.b16 %v65
  %v258 = vunpack.c.h.b16 %v65
  %v259 = vunpack.c.l.b16 %v66
  %v260 = vunpack.c.h.b16 %v66
  %v261 = vunpack.c.l.b16 %v67
  %v262 = vunpack.c.h.b16 %v67
  %v263 = vunpack.c.l.b16 %v68
  %v264 = vunpack.c.h.b16 %v68
  %v265 = vunpack.c.l.b16 %v69
  %v266 = vunpack.c.h.b16 %v69
  %v267 = vunpack.c.l.b16 %v70
  %v268 = vunpack.c.h.b16 %v70
  %v269 = vunpack.c.l.b16 %v71
  %v270 = vunpack.c.h.b16 %v71
  %v271 = vunpack.c.l.b16 %v72
  %v272 = vunpack.c.h.b16 %v72
  %v273 = vunpack.c.l.b16 %v73
  %v274 = vunpack.c.h.b16 %v73
  %v275 = vunpack.c.l.b16 %v74
  %v276 = vunpack.c.h.b16 %v74
  %v277 = vunpack.c.l.b16 %v75
  %v278 = vunpack.c.h.b16 %v75
  %v279 = vunpack.c.l.b16 %v76
  %v280 = vunpack.c.h.b16 %v76
  %v281 = vunpack.c.l.b16 %v77
  %v282 = vunpack.c.h.b16 %v77
  %v283 = vunpack.c.l.b16 %v78
  %v284 = vunpack.c.h.b16 %v78
  %v285 = vunpack.c.l.b16 %v79
  %v286 = vunpack.c.h.b16 %v79
  %v287 = vunpack.c.l.b16 %v80
  %v288 = vunpack.c.h.b16 %v80
  %v289 = vunpack.c.l.b16 %v81
  %v290 = vunpack.c.h.b16 %v81
  %v291 = vunpack.c.l.b16 %v82
  %v292 = vunpack.c.h.b16 %v82
  %v293 = vunpack.c.l.b16 %v83
  %v294 = vunpack.c.h.b16 %v83
  %v295 = vunpack.c.l.b16 %v84
  %v296 = vunpack.c.h.b16 %v84
  %v297 = vunpack.c.l.b16 %v85
  %v298 = vunpack.c.h.b16 %v85
  %v299 = vunpack.c.l.b16 %v86
  %v300 = vunpack.c.h.b16 %v86
  %v301 = vunpack.c.l.b16 %v87
  %v302 = vunpack.c.h.b16 %v87
  %v303 = vunpack.c.l.b16 %v88
  %v304 = vunpack.c.h.b16 %v88
  %v305 = vunpack.c.l.b16 %v89
  %v306 = vunpack.c.h.b16 %v89
  %v307 = vunpack.c.l.b16 %v90
  %v308 = vunpack.c.h.b16 %v90
  %v309 = vunpack.c.l.b16 %v91
  %v310 = vunpack.c.h.b16 %v91
  %v311 = vunpack.c.l.b16 %v92
  %v312 = vunpack.c.h.b16 %v92
  %v313 = vunpack.c.l.b16 %v93
  %v314 = vunpack.c.h.b16 %v93
  %v315 = vunpack.c.l.b16 %v94
  %v316 = vunpack.c.h.b16 %v94
  %v317 = vunpack.c.l.b16 %v95
  %v318 = vunpack.c.h.b16 %v95
  %v319 = vunpack.c.l.b16 %v96
  %v320 = vunpack.c.h.b16 %v96
  %v321 = vunpack.c.l.b16 %v97
  %v322 = vunpack.c.h.b16 %v97
  %v323 = vunpack.c.l.b16 %v98
  %v324 = vunpack.c.h.b16 %v98
  %v325 = vunpack.c.l.b16 %v99
  %v326 = vunpack.c.h.b16 %v99
  %v327 = vunpack.c.l.b16 %v100
  %v328 = vunpack.c.h.b16 %v100
  %v329 = vunpack.c.l.b16 %v101
  %v330 = vunpack.c.h.b16 %v101
  %v331 = vunpack.c.l.b16 %v102
  %v332 = vunpack.c.h.b16 %v102
  %v333 = vunpack.c.l.b16 %v103
  %v334 = vunpack.c.h.b16 %v103
  %v335 = vunpack.c.l.b16 %v104
  %v336 = vunpack.c.h.b16 %v104
  %v337 = vunpack.c.l.b16 %v105
  %v338 = vunpack.c.h.b16 %v105
  %v339 = vunpack.c.l.b16 %v106
  %v340 = vunpack.c.h.b16 %v106
  %v341 = vpack.c.b16 %v233, %v229
  %v342 = vpack.c.b16 %v234, %v230
  %v343 = vpack.c.b16 %v235, %v231
  %v344 = vpack.c.b16 %v236, %v232
  %v345 = vpack.c.b16 %v241, %v237
  %v346 = vpack.c.b16 %v242, %v238
  %v347 = vpack.c.b16 %v243, %v239
  %v348 = vpack.c.b16 %v244, %v240
  %v349 = vpack.c.b16 %v249, %v245
  %v350 = vpack.c.b16 %v250, %v246
  %v351 = vpack.c.b16 %v251, %v247
  %v352 = vpack.c.b16 %v252, %v248
  %v353 = vpack.c.b16 %v257, %v253
  %v354 = vpack.c.b16 %v258, %v254
  %v355 = vpack.c.b16 %v259, %v255
  %v356 = vpack.c.b16 %v260, %v256
  %v357 = vpack.c.b16 %v265, %v261
  %v358 = vpack.c.b16 %v266, %v262
  %v359 = vpack.c.b16 %v267, %v263
  %v360 = vpack.c.b16 %v268, %v264
  %v361 = vpack.c.b16 %v273, %v269
  %v362 = vpack.c.b16 %v274, %v270
  %v363 = vpack.c.b16 %v275, %v271
  %v364 = vpack.c.b16 %v276, %v272
  %v365 = vpack.c.b16 %v281, %v277
  %v366 = vpack.c.b16 %v282, %v278
  %v367 = vpack.c.b16 %v283, %v279
  %v368 = vpack.c.b16 %v284, %v280
  %v369 = vpack.c.b16 %v289, %v285
  %v370 = vpack.c.b16 %v290, %v286
  %v371 = vpack.c.b16 %v291, %v287
  %v372 = vpack.c.b16 %v292, %v288
  %v373 = vpack.c.b16 %v297, %v293
  %v374 = vpack.c.b16 %v298, %v294
  %v375 = vpack.c.b16 %v299, %v295
  %v376 = vpack.c.b16 %v300, %v296
  %v377 = vpack.c.b16 %v305, %v301
  %v378 = vpack.c.b16 %v306, %v302
  %v379 = vpack.c.b16 %v307, %v303
  %v380 = vpack.c.b16 %v308, %v304
  %v381 = vpack.c.b16 %v313, %v309
  %v382 = vpack.c.b16 %v314, %v310
  %v383 = vpack.c.b16 %v315, %v311
  %v384 = vpack.c.b16 %v316, %v312
  %v385 = vpack.c.b16 %v321, %v317
  %v386 = vpack.c.b16 %v322, %v318
  %v387 = vpack.c.b16 %v323, %v319
  %v388 = vpack.c.b16 %v324, %v320
  %v389 = vpack.c.b16 %v329, %v325
  %v390 = vpack.c.b16 %v330, %v326
  %v391 = vpack.c.b16 %v331, %v327
  %v392 = vpack.c.b16 %v332, %v328
  %v393 = vpack.c.b16 %v337, %v333
  %v394 = vpack.c.b16 %v338, %v334
  %v395 = vpack.c.b16 %v339, %v335
  %v396 = vpack.c.b16 %v340, %v336
  %v499 = vunpack.c.l.b16 %v107
  %v500 = vunpack.c.h.b16 %v107
  %v501 = vunpack.c.l.b16 %v108
  %v502 = vunpack.c.h.b16 %v108
  %v503 = vunpack.c.l.b16 %v109
  %v504 = vunpack.c.h.b16 %v109
  %v505 = vunpack.c.l.b16 %v110
  %v506 = vunpack.c.h.b16 %v110
  %v507 = vunpack.c.l.b16 %v111
  %v508 = vunpack.c.h.b16 %v111
  %v509 = vunpack.c.l.b16 %v112
  %v510 = vunpack.c.h.b16 %v112
  %v511 = vunpack.c.l.b16 %v113
  %v512 = vunpack.c.h.b16 %v113
  %v513 = vunpack.c.l.b16 %v114
  %v514 = vunpack.c.h.b16 %v114
  %v515 = vunpack.c.l.b16 %v115
  %v516 = vunpack.c.h.b16 %v115
  %v517 = vunpack.c.l.b16 %v116
  %v518 = vunpack.c.h.b16 %v116
  %v519 = vunpack.c.l.b16 %v117
  %v520 = vunpack.c.h.b16 %v117
  %v521 = vunpack.c.l.b16 %v118
  %v522 = vunpack.c.h.b16 %v118
  %v523 = vunpack.c.l.b16 %v119
  %v524 = vunpack.c.h.b16 %v119
  %v525 = vunpack.c.l.b16 %v120
  %v526 = vunpack.c.h.b16 %v120
  %v527 = vunpack.c.l.b16 %v121
  %v528 = vunpack.c.h.b16 %v121
  %v529 = vunpack.c.l.b16 %v122
  %v530 = vunpack.c.h.b16 %v122
  %v531 = vunpack.c.l.b16 %v123
  %v532 = vunpack.c.h.b16 %v123
  %v533 = vunpack.c.l.b16 %v124
  %v534 = vunpack.c.h.b16 %v124
  %v535 = vunpack.c.l.b16 %v125
  %v536 = vunpack.c.h.b16 %v125
  %v537 = vunpack.c.l.b16 %v126
  %v538 = vunpack.c.h.b16 %v126
  %v539 = vunpack.c.l.b16 %v127
  %v540 = vunpack.c.h.b16 %v127
  %v541 = vunpack.c.l.b16 %v128
  %v542 = vunpack.c.h.b16 %v128
  %v543 = vunpack.c.l.b16 %v129
  %v544 = vunpack.c.h.b16 %v129
  %v545 = vunpack.c.l.b16 %v130
  %v546 = vunpack.c.h.b16 %v130
  %v547 = vunpack.c.l.b16 %v131
  %v548 = vunpack.c.h.b16 %v131
  %v549 = vunpack.c.l.b16 %v132
  %v550 = vunpack.c.h.b16 %v132
  %v551 = vunpack.c.l.b16 %v133
  %v552 = vunpack.c.h.b16 %v133
  %v553 = vunpack.c.l.b16 %v134
  %v554 = vunpack.c.h.b16 %v134
  %v555 = vunpack.c.l.b16 %v135
  %v556 = vunpack.c.h.b16 %v135
  %v557 = vunpack.c.l.b16 %v136
  %v558 = vunpack.c.h.b16 %v136
  %v559 = vunpack.c.l.b16 %v137
  %v560 = vunpack.c.h.b16 %v137
  %v561 = vunpack.c.l.b16 %v138
  %v562 = vunpack.c.h.b16 %v138
  %v563 = vunpack.c.l.b16 %v139
  %v564 = vunpack.c.h.b16 %v139
  %v565 = vunpack.c.l.b16 %v140
  %v566 = vunpack.c.h.b16 %v140
  %v567 = vunpack.c.l.b16 %v141
  %v568 = vunpack.c.h.b16 %v141
  %v569 = vunpack.c.l.b16 %v142
  %v570 = vunpack.c.h.b16 %v142
  %v571 = vunpack.c.l.b16 %v143
  %v572 = vunpack.c.h.b16 %v143
  %v573 = vunpack.c.l.b16 %v144
  %v574 = vunpack.c.h.b16 %v144
  %v575 = vunpack.c.l.b16 %v145
  %v576 = vunpack.c.h.b16 %v145
  %v577 = vunpack.c.l.b16 %v146
  %v578 = vunpack.c.h.b16 %v146
  %v579 = vunpack.c.l.b16 %v147
  %v580 = vunpack.c.h.b16 %v147
  %v581 = vunpack.c.l.b16 %v148
  %v582 = vunpack.c.h.b16 %v148
  %v583 = vunpack.c.l.b16 %v149
  %v584 = vunpack.c.h.b16 %v149
  %v585 = vunpack.c.l.b16 %v150
  %v586 = vunpack.c.h.b16 %v150
  %v587 = vunpack.c.l.b16 %v151
  %v588 = vunpack.c.h.b16 %v151
  %v589 = vunpack.c.l.b16 %v152
  %v590 = vunpack.c.h.b16 %v152
  %v591 = vunpack.c.l.b16 %v153
  %v592 = vunpack.c.h.b16 %v153
  %v593 = vunpack.c.l.b16 %v154
  %v594 = vunpack.c.h.b16 %v154
  %v595 = vunpack.c.l.b16 %v155
  %v596 = vunpack.c.h.b16 %v155
  %v597 = vunpack.c.l.b16 %v156
  %v598 = vunpack.c.h.b16 %v156
  %v599 = vunpack.c.l.b16 %v157
  %v600 = vunpack.c.h.b16 %v157
  %v601 = vunpack.c.l.b16 %v158
  %v602 = vunpack.c.h.b16 %v158
  %v603 = vunpack.c.l.b16 %v159
  %v604 = vunpack.c.h.b16 %v159
  %v605 = vunpack.c.l.b16 %v160
  %v606 = vunpack.c.h.b16 %v160
  %v607 = vunpack.c.l.b16 %v161
  %v608 = vunpack.c.h.b16 %v161
  %v609 = vunpack.c.l.b16 %v162
  %v610 = vunpack.c.h.b16 %v162
  %v611 = vunpack.c.l.b16 %v163
  %v612 = vunpack.c.h.b16 %v163
  %v613 = vunpack.c.l.b16 %v164
  %v614 = vunpack.c.h.b16 %v164
  %v615 = vunpack.c.l.b16 %v165
  %v616 = vunpack.c.h.b16 %v165
  %v617 = vunpack.c.l.b16 %v166
  %v618 = vunpack.c.h.b16 %v166
  %v619 = vpack.c.b16 %v501, %v499
  %v620 = vpack.c.b16 %v502, %v500
  %v621 = vpack.c.b16 %v505, %v503
  %v622 = vpack.c.b16 %v506, %v504
  %v623 = vpack.c.b16 %v509, %v507
  %v624 = vpack.c.b16 %v510, %v508
  %v625 = vpack.c.b16 %v513, %v511
  %v626 = vpack.c.b16 %v514, %v512
  %v627 = vpack.c.b16 %v517, %v515
  %v628 = vpack.c.b16 %v518, %v516
  %v629 = vpack.c.b16 %v521, %v519
  %v630 = vpack.c.b16 %v522, %v520
  %v631 = vpack.c.b16 %v525, %v523
  %v632 = vpack.c.b16 %v526, %v524
  %v633 = vpack.c.b16 %v529, %v527
  %v634 = vpack.c.b16 %v530, %v528
  %v635 = vpack.c.b16 %v533, %v531
  %v636 = vpack.c.b16 %v534, %v532
  %v637 = vpack.c.b16 %v537, %v535
  %v638 = vpack.c.b16 %v538, %v536
  %v639 = vpack.c.b16 %v541, %v539
  %v640 = vpack.c.b16 %v542, %v540
  %v641 = vpack.c.b16 %v545, %v543
  %v642 = vpack.c.b16 %v546, %v544
  %v643 = vpack.c.b16 %v549, %v547
  %v644 = vpack.c.b16 %v550, %v548
  %v645 = vpack.c.b16 %v553, %v551
  %v646 = vpack.c.b16 %v554, %v552
  %v647 = vpack.c.b16 %v557, %v555
  %v648 = vpack.c.b16 %v558, %v556
  %v649 = vpack.c.b16 %v561, %v559
  %v650 = vpack.c.b16 %v562, %v560
  %v651 = vpack.c.b16 %v565, %v563
  %v652 = vpack.c.b16 %v566, %v564
  %v653 = vpack.c.b16 %v569, %v567
  %v654 = vpack.c.b16 %v570, %v568
  %v655 = vpack.c.b16 %v573, %v571
  %v656 = vpack.c.b16 %v574, %v572
  %v657 = vpack.c.b16 %v577, %v575
  %v658 = vpack.c.b16 %v578, %v576
  %v659 = vpack.c.b16 %v581, %v579
  %v660 = vpack.c.b16 %v582, %v580
  %v661 = vpack.c.b16 %v585, %v583
  %v662 = vpack.c.b16 %v586, %v584
  %v663 = vpack.c.b16 %v589, %v587
  %v664 = vpack.c.b16 %v590, %v588
  %v665 = vpack.c.b16 %v593, %v591
  %v666 = vpack.c.b16 %v594, %v592
  %v667 = vpack.c.b16 %v597, %v595
  %v668 = vpack.c.b16 %v598, %v596
  %v669 = vpack.c.b16 %v601, %v599
  %v670 = vpack.c.b16 %v602, %v600
  %v671 = vpack.c.b16 %v605, %v603
  %v672 = vpack.c.b16 %v606, %v604
  %v673 = vpack.c.b16 %v609, %v607
  %v674 = vpack.c.b16 %v610, %v608
  %v675 = vpack.c.b16 %v613, %v611
  %v676 = vpack.c.b16 %v614, %v612
  %v677 = vpack.c.b16 %v617, %v615
  %v678 = vpack.c.b16 %v618, %v616
  %vm739 = vcmask 785408
  %v741 = vsel %vm739, %v344, 0
  %v744 = vsel %vm739, %v348, 0
  %v747 = vsel %vm739, %v352, 0
  %v750 = vsel %vm739, %v356, 0
  %v753 = vsel %vm739, %v360, 0
  %v756 = vsel %vm739, %v364, 0
  %v759 = vsel %vm739, %v368, 0
  %v762 = vsel %vm739, %v372, 0
  %v765 = vsel %vm739, %v376, 0
  %v768 = vsel %vm739, %v380, 0
  %v771 = vsel %vm739, %v384, 0
  %v774 = vsel %vm739, %v388, 0
  %v777 = vsel %vm739, %v392, 0
  %v780 = vsel %vm739, %v396, 0
  %782 = vmatpush.bf16.msra.mxu0 %v633
  %783 = vmatpush.bf16.msra.mxu0 %v631
  %784 = vmatpush.bf16.msra.mxu0 %v629
  %785 = vmatpush.bf16.msra.mxu0 %v627
  %786 = vmatpush.bf16.msra.mxu0 %v625
  %787 = vmatpush.bf16.msra.mxu0 %v623
  %788 = vmatpush.bf16.msra.mxu0 %v621
  %789 = vmatpush.bf16.msra.mxu0 %v619
  %790 = vmatmul.bf16.gmra.mxu0 %v341
  %v791 = vpop.f32.mrf.mxu0
  %v792 = vadd.f32 %v169, %v791
  %v793 = vpop.f32.mrf.mxu0
  %v794 = vadd.f32 %v169, %v793
  %795 = vmatmul.bf16.gmra.mxu0 %v345
  %v796 = vpop.f32.mrf.mxu0
  %v797 = vadd.f32 %v169, %v796
  %v798 = vpop.f32.mrf.mxu0
  %v799 = vadd.f32 %v169, %v798
  %800 = vmatmul.bf16.gmra.mxu0 %v349
  %v801 = vpop.f32.mrf.mxu0
  %v802 = vadd.f32 %v169, %v801
  %v803 = vpop.f32.mrf.mxu0
  %v804 = vadd.f32 %v169, %v803
  %805 = vmatmul.bf16.gmra.mxu0 %v353
  %v806 = vpop.f32.mrf.mxu0
  %v807 = vadd.f32 %v169, %v806
  %v808 = vpop.f32.mrf.mxu0
  %v809 = vadd.f32 %v169, %v808
  %810 = vmatmul.bf16.gmra.mxu0 %v357
  %v811 = vpop.f32.mrf.mxu0
  %v812 = vadd.f32 %v169, %v811
  %v813 = vpop.f32.mrf.mxu0
  %v814 = vadd.f32 %v169, %v813
  %815 = vmatmul.bf16.gmra.mxu0 %v361
  %v816 = vpop.f32.mrf.mxu0
  %v817 = vadd.f32 %v169, %v816
  %v818 = vpop.f32.mrf.mxu0
  %v819 = vadd.f32 %v169, %v818
  %820 = vmatmul.bf16.gmra.mxu0 %v365
  %v821 = vpop.f32.mrf.mxu0
  %v822 = vadd.f32 %v169, %v821
  %v823 = vpop.f32.mrf.mxu0
  %v824 = vadd.f32 %v169, %v823
  %825 = vmatmul.bf16.gmra.mxu0 %v369
  %v826 = vpop.f32.mrf.mxu0
  %v827 = vadd.f32 %v169, %v826
  %v828 = vpop.f32.mrf.mxu0
  %v829 = vadd.f32 %v169, %v828
  %830 = vmatmul.bf16.gmra.mxu0 %v373
  %v831 = vpop.f32.mrf.mxu0
  %v832 = vadd.f32 %v169, %v831
  %v833 = vpop.f32.mrf.mxu0
  %v834 = vadd.f32 %v169, %v833
  %835 = vmatmul.bf16.gmra.mxu0 %v377
  %v836 = vpop.f32.mrf.mxu0
  %v837 = vadd.f32 %v169, %v836
  %v838 = vpop.f32.mrf.mxu0
  %v839 = vadd.f32 %v169, %v838
  %840 = vmatmul.bf16.gmra.mxu0 %v381
  %v841 = vpop.f32.mrf.mxu0
  %v842 = vadd.f32 %v169, %v841
  %v843 = vpop.f32.mrf.mxu0
  %v844 = vadd.f32 %v169, %v843
  %845 = vmatmul.bf16.gmra.mxu0 %v385
  %v846 = vpop.f32.mrf.mxu0
  %v847 = vadd.f32 %v169, %v846
  %v848 = vpop.f32.mrf.mxu0
  %v849 = vadd.f32 %v169, %v848
  %850 = vmatmul.bf16.gmra.mxu0 %v389
  %v851 = vpop.f32.mrf.mxu0
  %v852 = vadd.f32 %v169, %v851
  %v853 = vpop.f32.mrf.mxu0
  %v854 = vadd.f32 %v169, %v853
  %855 = vmatmul.bf16.gmra.mxu0 %v393
  %v856 = vpop.f32.mrf.mxu0
  %v857 = vadd.f32 %v169, %v856
  %v858 = vpop.f32.mrf.mxu0
  %v859 = vadd.f32 %v169, %v858
  %860 = vdwg.mxu0
  %861 = vmatpush.bf16.msra.mxu0 %v649
  %862 = vmatpush.bf16.msra.mxu0 %v647
  %863 = vmatpush.bf16.msra.mxu0 %v645
  %864 = vmatpush.bf16.msra.mxu0 %v643
  %865 = vmatpush.bf16.msra.mxu0 %v641
  %866 = vmatpush.bf16.msra.mxu0 %v639
  %867 = vmatpush.bf16.msra.mxu0 %v637
  %868 = vmatpush.bf16.msra.mxu0 %v635
  %869 = vmatmul.bf16.gmra.mxu0 %v342
  %v870 = vpop.f32.mrf.mxu0
  %v871 = vadd.f32 %v792, %v870
  %v872 = vpop.f32.mrf.mxu0
  %v873 = vadd.f32 %v794, %v872
  %874 = vmatmul.bf16.gmra.mxu0 %v346
  %v875 = vpop.f32.mrf.mxu0
  %v876 = vadd.f32 %v797, %v875
  %v877 = vpop.f32.mrf.mxu0
  %v878 = vadd.f32 %v799, %v877
  %879 = vmatmul.bf16.gmra.mxu0 %v350
  %v880 = vpop.f32.mrf.mxu0
  %v881 = vadd.f32 %v802, %v880
  %v882 = vpop.f32.mrf.mxu0
  %v883 = vadd.f32 %v804, %v882
  %884 = vmatmul.bf16.gmra.mxu0 %v354
  %v885 = vpop.f32.mrf.mxu0
  %v886 = vadd.f32 %v807, %v885
  %v887 = vpop.f32.mrf.mxu0
  %v888 = vadd.f32 %v809, %v887
  %889 = vmatmul.bf16.gmra.mxu0 %v358
  %v890 = vpop.f32.mrf.mxu0
  %v891 = vadd.f32 %v812, %v890
  %v892 = vpop.f32.mrf.mxu0
  %v893 = vadd.f32 %v814, %v892
  %894 = vmatmul.bf16.gmra.mxu0 %v362
  %v895 = vpop.f32.mrf.mxu0
  %v896 = vadd.f32 %v817, %v895
  %v897 = vpop.f32.mrf.mxu0
  %v898 = vadd.f32 %v819, %v897
  %899 = vmatmul.bf16.gmra.mxu0 %v366
  %v900 = vpop.f32.mrf.mxu0
  %v901 = vadd.f32 %v822, %v900
  %v902 = vpop.f32.mrf.mxu0
  %v903 = vadd.f32 %v824, %v902
  %904 = vmatmul.bf16.gmra.mxu0 %v370
  %v905 = vpop.f32.mrf.mxu0
  %v906 = vadd.f32 %v827, %v905
  %v907 = vpop.f32.mrf.mxu0
  %v908 = vadd.f32 %v829, %v907
  %909 = vmatmul.bf16.gmra.mxu0 %v374
  %v910 = vpop.f32.mrf.mxu0
  %v911 = vadd.f32 %v832, %v910
  %v912 = vpop.f32.mrf.mxu0
  %v913 = vadd.f32 %v834, %v912
  %914 = vmatmul.bf16.gmra.mxu0 %v378
  %v915 = vpop.f32.mrf.mxu0
  %v916 = vadd.f32 %v837, %v915
  %v917 = vpop.f32.mrf.mxu0
  %v918 = vadd.f32 %v839, %v917
  %919 = vmatmul.bf16.gmra.mxu0 %v382
  %v920 = vpop.f32.mrf.mxu0
  %v921 = vadd.f32 %v842, %v920
  %v922 = vpop.f32.mrf.mxu0
  %v923 = vadd.f32 %v844, %v922
  %924 = vmatmul.bf16.gmra.mxu0 %v386
  %v925 = vpop.f32.mrf.mxu0
  %v926 = vadd.f32 %v847, %v925
  %v927 = vpop.f32.mrf.mxu0
  %v928 = vadd.f32 %v849, %v927
  %929 = vmatmul.bf16.gmra.mxu0 %v390
  %v930 = vpop.f32.mrf.mxu0
  %v931 = vadd.f32 %v852, %v930
  %v932 = vpop.f32.mrf.mxu0
  %v933 = vadd.f32 %v854, %v932
  %934 = vmatmul.bf16.gmra.mxu0 %v394
  %v935 = vpop.f32.mrf.mxu0
  %v936 = vadd.f32 %v857, %v935
  %v937 = vpop.f32.mrf.mxu0
  %v938 = vadd.f32 %v859, %v937
  %939 = vdwg.mxu0
  %940 = vmatpush.bf16.msra.mxu0 %v665
  %941 = vmatpush.bf16.msra.mxu0 %v663
  %942 = vmatpush.bf16.msra.mxu0 %v661
  %943 = vmatpush.bf16.msra.mxu0 %v659
  %944 = vmatpush.bf16.msra.mxu0 %v657
  %945 = vmatpush.bf16.msra.mxu0 %v655
  %946 = vmatpush.bf16.msra.mxu0 %v653
  %947 = vmatpush.bf16.msra.mxu0 %v651
  %948 = vmatmul.bf16.gmra.mxu0 %v343
  %v949 = vpop.f32.mrf.mxu0
  %v950 = vadd.f32 %v871, %v949
  %v951 = vpop.f32.mrf.mxu0
  %v952 = vadd.f32 %v873, %v951
  %953 = vmatmul.bf16.gmra.mxu0 %v347
  %v954 = vpop.f32.mrf.mxu0
  %v955 = vadd.f32 %v876, %v954
  %v956 = vpop.f32.mrf.mxu0
  %v957 = vadd.f32 %v878, %v956
  %958 = vmatmul.bf16.gmra.mxu0 %v351
  %v959 = vpop.f32.mrf.mxu0
  %v960 = vadd.f32 %v881, %v959
  %v961 = vpop.f32.mrf.mxu0
  %v962 = vadd.f32 %v883, %v961
  %963 = vmatmul.bf16.gmra.mxu0 %v355
  %v964 = vpop.f32.mrf.mxu0
  %v965 = vadd.f32 %v886, %v964
  %v966 = vpop.f32.mrf.mxu0
  %v967 = vadd.f32 %v888, %v966
  %968 = vmatmul.bf16.gmra.mxu0 %v359
  %v969 = vpop.f32.mrf.mxu0
  %v970 = vadd.f32 %v891, %v969
  %v971 = vpop.f32.mrf.mxu0
  %v972 = vadd.f32 %v893, %v971
  %973 = vmatmul.bf16.gmra.mxu0 %v363
  %v974 = vpop.f32.mrf.mxu0
  %v975 = vadd.f32 %v896, %v974
  %v976 = vpop.f32.mrf.mxu0
  %v977 = vadd.f32 %v898, %v976
  %978 = vmatmul.bf16.gmra.mxu0 %v367
  %v979 = vpop.f32.mrf.mxu0
  %v980 = vadd.f32 %v901, %v979
  %v981 = vpop.f32.mrf.mxu0
  %v982 = vadd.f32 %v903, %v981
  %983 = vmatmul.bf16.gmra.mxu0 %v371
  %v984 = vpop.f32.mrf.mxu0
  %v985 = vadd.f32 %v906, %v984
  %v986 = vpop.f32.mrf.mxu0
  %v987 = vadd.f32 %v908, %v986
  %988 = vmatmul.bf16.gmra.mxu0 %v375
  %v989 = vpop.f32.mrf.mxu0
  %v990 = vadd.f32 %v911, %v989
  %v991 = vpop.f32.mrf.mxu0
  %v992 = vadd.f32 %v913, %v991
  %993 = vmatmul.bf16.gmra.mxu0 %v379
  %v994 = vpop.f32.mrf.mxu0
  %v995 = vadd.f32 %v916, %v994
  %v996 = vpop.f32.mrf.mxu0
  %v997 = vadd.f32 %v918, %v996
  %998 = vmatmul.bf16.gmra.mxu0 %v383
  %v999 = vpop.f32.mrf.mxu0
  %v1000 = vadd.f32 %v921, %v999
  %v1001 = vpop.f32.mrf.mxu0
  %v1002 = vadd.f32 %v923, %v1001
  %1003 = vmatmul.bf16.gmra.mxu0 %v387
  %v1004 = vpop.f32.mrf.mxu0
  %v1005 = vadd.f32 %v926, %v1004
  %v1006 = vpop.f32.mrf.mxu0
  %v1007 = vadd.f32 %v928, %v1006
  %1008 = vmatmul.bf16.gmra.mxu0 %v391
  %v1009 = vpop.f32.mrf.mxu0
  %v1010 = vadd.f32 %v931, %v1009
  %v1011 = vpop.f32.mrf.mxu0
  %v1012 = vadd.f32 %v933, %v1011
  %1013 = vmatmul.bf16.gmra.mxu0 %v395
  %v1014 = vpop.f32.mrf.mxu0
  %v1015 = vadd.f32 %v936, %v1014
  %v1016 = vpop.f32.mrf.mxu0
  %v1017 = vadd.f32 %v938, %v1016
  %1018 = vdwg.mxu0
  %1019 = vmatpush.bf16.msra.mxu0 0
  %1020 = vmatpush.bf16.msra.mxu0 0
  %1021 = vmatpush.bf16.msra.mxu0 %v677
  %1022 = vmatpush.bf16.msra.mxu0 %v675
  %1023 = vmatpush.bf16.msra.mxu0 %v673
  %1024 = vmatpush.bf16.msra.mxu0 %v671
  %1025 = vmatpush.bf16.msra.mxu0 %v669
  %1026 = vmatpush.bf16.msra.mxu0 %v667
  %1027 = vmatmul.bf16.gmra.mxu0 %v741
  %v1028 = vpop.f32.mrf.mxu0
  %v1029 = vadd.f32 %v950, %v1028
  %v1030 = vpop.f32.mrf.mxu0
  %v1031 = vadd.f32 %v952, %v1030
  %1032 = vmatmul.bf16.gmra.mxu0 %v744
  %v1033 = vpop.f32.mrf.mxu0
  %v1034 = vadd.f32 %v955, %v1033
  %v1035 = vpop.f32.mrf.mxu0
  %v1036 = vadd.f32 %v957, %v1035
  %1037 = vmatmul.bf16.gmra.mxu0 %v747
  %v1038 = vpop.f32.mrf.mxu0
  %v1039 = vadd.f32 %v960, %v1038
  %v1040 = vpop.f32.mrf.mxu0
  %v1041 = vadd.f32 %v962, %v1040
  %1042 = vmatmul.bf16.gmra.mxu0 %v750
  %v1043 = vpop.f32.mrf.mxu0
  %v1044 = vadd.f32 %v965, %v1043
  %v1045 = vpop.f32.mrf.mxu0
  %v1046 = vadd.f32 %v967, %v1045
  %1047 = vmatmul.bf16.gmra.mxu0 %v753
  %v1048 = vpop.f32.mrf.mxu0
  %v1049 = vadd.f32 %v970, %v1048
  %v1050 = vpop.f32.mrf.mxu0
  %v1051 = vadd.f32 %v972, %v1050
  %1052 = vmatmul.bf16.gmra.mxu0 %v756
  %v1053 = vpop.f32.mrf.mxu0
  %v1054 = vadd.f32 %v975, %v1053
  %v1055 = vpop.f32.mrf.mxu0
  %v1056 = vadd.f32 %v977, %v1055
  %1057 = vmatmul.bf16.gmra.mxu0 %v759
  %v1058 = vpop.f32.mrf.mxu0
  %v1059 = vadd.f32 %v980, %v1058
  %v1060 = vpop.f32.mrf.mxu0
  %v1061 = vadd.f32 %v982, %v1060
  %1062 = vmatmul.bf16.gmra.mxu0 %v762
  %v1063 = vpop.f32.mrf.mxu0
  %v1064 = vadd.f32 %v985, %v1063
  %v1065 = vpop.f32.mrf.mxu0
  %v1066 = vadd.f32 %v987, %v1065
  %1067 = vmatmul.bf16.gmra.mxu0 %v765
  %v1068 = vpop.f32.mrf.mxu0
  %v1069 = vadd.f32 %v990, %v1068
  %v1070 = vpop.f32.mrf.mxu0
  %v1071 = vadd.f32 %v992, %v1070
  %1072 = vmatmul.bf16.gmra.mxu0 %v768
  %v1073 = vpop.f32.mrf.mxu0
  %v1074 = vadd.f32 %v995, %v1073
  %v1075 = vpop.f32.mrf.mxu0
  %v1076 = vadd.f32 %v997, %v1075
  %1077 = vmatmul.bf16.gmra.mxu0 %v771
  %v1078 = vpop.f32.mrf.mxu0
  %v1079 = vadd.f32 %v1000, %v1078
  %v1080 = vpop.f32.mrf.mxu0
  %v1081 = vadd.f32 %v1002, %v1080
  %1082 = vmatmul.bf16.gmra.mxu0 %v774
  %v1083 = vpop.f32.mrf.mxu0
  %v1084 = vadd.f32 %v1005, %v1083
  %v1085 = vpop.f32.mrf.mxu0
  %v1086 = vadd.f32 %v1007, %v1085
  %1087 = vmatmul.bf16.gmra.mxu0 %v777
  %v1088 = vpop.f32.mrf.mxu0
  %v1089 = vadd.f32 %v1010, %v1088
  %v1090 = vpop.f32.mrf.mxu0
  %v1091 = vadd.f32 %v1012, %v1090
  %1092 = vmatmul.bf16.gmra.mxu0 %v780
  %v1093 = vpop.f32.mrf.mxu0
  %v1094 = vadd.f32 %v1015, %v1093
  %v1095 = vpop.f32.mrf.mxu0
  %v1096 = vadd.f32 %v1017, %v1095
  %1097 = vdwg.mxu0
  %1098 = vmatpush.bf16.msra.mxu0 %v634
  %1099 = vmatpush.bf16.msra.mxu0 %v632
  %1100 = vmatpush.bf16.msra.mxu0 %v630
  %1101 = vmatpush.bf16.msra.mxu0 %v628
  %1102 = vmatpush.bf16.msra.mxu0 %v626
  %1103 = vmatpush.bf16.msra.mxu0 %v624
  %1104 = vmatpush.bf16.msra.mxu0 %v622
  %1105 = vmatpush.bf16.msra.mxu0 %v620
  %1106 = vmatmul.bf16.gmra.mxu0 %v341
  %v1107 = vpop.f32.mrf.mxu0
  %v1108 = vadd.f32 %v170, %v1107
  %v1109 = vpop.f32.mrf.mxu0
  %v1110 = vadd.f32 %v170, %v1109
  %1111 = vmatmul.bf16.gmra.mxu0 %v345
  %v1112 = vpop.f32.mrf.mxu0
  %v1113 = vadd.f32 %v170, %v1112
  %v1114 = vpop.f32.mrf.mxu0
  %v1115 = vadd.f32 %v170, %v1114
  %1116 = vmatmul.bf16.gmra.mxu0 %v349
  %v1117 = vpop.f32.mrf.mxu0
  %v1118 = vadd.f32 %v170, %v1117
  %v1119 = vpop.f32.mrf.mxu0
  %v1120 = vadd.f32 %v170, %v1119
  %1121 = vmatmul.bf16.gmra.mxu0 %v353
  %v1122 = vpop.f32.mrf.mxu0
  %v1123 = vadd.f32 %v170, %v1122
  %v1124 = vpop.f32.mrf.mxu0
  %v1125 = vadd.f32 %v170, %v1124
  %1126 = vmatmul.bf16.gmra.mxu0 %v357
  %v1127 = vpop.f32.mrf.mxu0
  %v1128 = vadd.f32 %v170, %v1127
  %v1129 = vpop.f32.mrf.mxu0
  %v1130 = vadd.f32 %v170, %v1129
  %1131 = vmatmul.bf16.gmra.mxu0 %v361
  %v1132 = vpop.f32.mrf.mxu0
  %v1133 = vadd.f32 %v170, %v1132
  %v1134 = vpop.f32.mrf.mxu0
  %v1135 = vadd.f32 %v170, %v1134
  %1136 = vmatmul.bf16.gmra.mxu0 %v365
  %v1137 = vpop.f32.mrf.mxu0
  %v1138 = vadd.f32 %v170, %v1137
  %v1139 = vpop.f32.mrf.mxu0
  %v1140 = vadd.f32 %v170, %v1139
  %1141 = vmatmul.bf16.gmra.mxu0 %v369
  %v1142 = vpop.f32.mrf.mxu0
  %v1143 = vadd.f32 %v170, %v1142
  %v1144 = vpop.f32.mrf.mxu0
  %v1145 = vadd.f32 %v170, %v1144
  %1146 = vmatmul.bf16.gmra.mxu0 %v373
  %v1147 = vpop.f32.mrf.mxu0
  %v1148 = vadd.f32 %v170, %v1147
  %v1149 = vpop.f32.mrf.mxu0
  %v1150 = vadd.f32 %v170, %v1149
  %1151 = vmatmul.bf16.gmra.mxu0 %v377
  %v1152 = vpop.f32.mrf.mxu0
  %v1153 = vadd.f32 %v170, %v1152
  %v1154 = vpop.f32.mrf.mxu0
  %v1155 = vadd.f32 %v170, %v1154
  %1156 = vmatmul.bf16.gmra.mxu0 %v381
  %v1157 = vpop.f32.mrf.mxu0
  %v1158 = vadd.f32 %v170, %v1157
  %v1159 = vpop.f32.mrf.mxu0
  %v1160 = vadd.f32 %v170, %v1159
  %1161 = vmatmul.bf16.gmra.mxu0 %v385
  %v1162 = vpop.f32.mrf.mxu0
  %v1163 = vadd.f32 %v170, %v1162
  %v1164 = vpop.f32.mrf.mxu0
  %v1165 = vadd.f32 %v170, %v1164
  %1166 = vmatmul.bf16.gmra.mxu0 %v389
  %v1167 = vpop.f32.mrf.mxu0
  %v1168 = vadd.f32 %v170, %v1167
  %v1169 = vpop.f32.mrf.mxu0
  %v1170 = vadd.f32 %v170, %v1169
  %1171 = vmatmul.bf16.gmra.mxu0 %v393
  %v1172 = vpop.f32.mrf.mxu0
  %v1173 = vadd.f32 %v170, %v1172
  %v1174 = vpop.f32.mrf.mxu0
  %v1175 = vadd.f32 %v170, %v1174
  %1176 = vdwg.mxu0
  %1177 = vmatpush.bf16.msra.mxu0 %v650
  %1178 = vmatpush.bf16.msra.mxu0 %v648
  %1179 = vmatpush.bf16.msra.mxu0 %v646
  %1180 = vmatpush.bf16.msra.mxu0 %v644
  %1181 = vmatpush.bf16.msra.mxu0 %v642
  %1182 = vmatpush.bf16.msra.mxu0 %v640
  %1183 = vmatpush.bf16.msra.mxu0 %v638
  %1184 = vmatpush.bf16.msra.mxu0 %v636
  %1185 = vmatmul.bf16.gmra.mxu0 %v342
  %v1186 = vpop.f32.mrf.mxu0
  %v1187 = vadd.f32 %v1108, %v1186
  %v1188 = vpop.f32.mrf.mxu0
  %v1189 = vadd.f32 %v1110, %v1188
  %1190 = vmatmul.bf16.gmra.mxu0 %v346
  %v1191 = vpop.f32.mrf.mxu0
  %v1192 = vadd.f32 %v1113, %v1191
  %v1193 = vpop.f32.mrf.mxu0
  %v1194 = vadd.f32 %v1115, %v1193
  %1195 = vmatmul.bf16.gmra.mxu0 %v350
  %v1196 = vpop.f32.mrf.mxu0
  %v1197 = vadd.f32 %v1118, %v1196
  %v1198 = vpop.f32.mrf.mxu0
  %v1199 = vadd.f32 %v1120, %v1198
  %1200 = vmatmul.bf16.gmra.mxu0 %v354
  %v1201 = vpop.f32.mrf.mxu0
  %v1202 = vadd.f32 %v1123, %v1201
  %v1203 = vpop.f32.mrf.mxu0
  %v1204 = vadd.f32 %v1125, %v1203
  %1205 = vmatmul.bf16.gmra.mxu0 %v358
  %v1206 = vpop.f32.mrf.mxu0
  %v1207 = vadd.f32 %v1128, %v1206
  %v1208 = vpop.f32.mrf.mxu0
  %v1209 = vadd.f32 %v1130, %v1208
  %1210 = vmatmul.bf16.gmra.mxu0 %v362
  %v1211 = vpop.f32.mrf.mxu0
  %v1212 = vadd.f32 %v1133, %v1211
  %v1213 = vpop.f32.mrf.mxu0
  %v1214 = vadd.f32 %v1135, %v1213
  %1215 = vmatmul.bf16.gmra.mxu0 %v366
  %v1216 = vpop.f32.mrf.mxu0
  %v1217 = vadd.f32 %v1138, %v1216
  %v1218 = vpop.f32.mrf.mxu0
  %v1219 = vadd.f32 %v1140, %v1218
  %1220 = vmatmul.bf16.gmra.mxu0 %v370
  %v1221 = vpop.f32.mrf.mxu0
  %v1222 = vadd.f32 %v1143, %v1221
  %v1223 = vpop.f32.mrf.mxu0
  %v1224 = vadd.f32 %v1145, %v1223
  %1225 = vmatmul.bf16.gmra.mxu0 %v374
  %v1226 = vpop.f32.mrf.mxu0
  %v1227 = vadd.f32 %v1148, %v1226
  %v1228 = vpop.f32.mrf.mxu0
  %v1229 = vadd.f32 %v1150, %v1228
  %1230 = vmatmul.bf16.gmra.mxu0 %v378
  %v1231 = vpop.f32.mrf.mxu0
  %v1232 = vadd.f32 %v1153, %v1231
  %v1233 = vpop.f32.mrf.mxu0
  %v1234 = vadd.f32 %v1155, %v1233
  %1235 = vmatmul.bf16.gmra.mxu0 %v382
  %v1236 = vpop.f32.mrf.mxu0
  %v1237 = vadd.f32 %v1158, %v1236
  %v1238 = vpop.f32.mrf.mxu0
  %v1239 = vadd.f32 %v1160, %v1238
  %1240 = vmatmul.bf16.gmra.mxu0 %v386
  %v1241 = vpop.f32.mrf.mxu0
  %v1242 = vadd.f32 %v1163, %v1241
  %v1243 = vpop.f32.mrf.mxu0
  %v1244 = vadd.f32 %v1165, %v1243
  %1245 = vmatmul.bf16.gmra.mxu0 %v390
  %v1246 = vpop.f32.mrf.mxu0
  %v1247 = vadd.f32 %v1168, %v1246
  %v1248 = vpop.f32.mrf.mxu0
  %v1249 = vadd.f32 %v1170, %v1248
  %1250 = vmatmul.bf16.gmra.mxu0 %v394
  %v1251 = vpop.f32.mrf.mxu0
  %v1252 = vadd.f32 %v1173, %v1251
  %v1253 = vpop.f32.mrf.mxu0
  %v1254 = vadd.f32 %v1175, %v1253
  %1255 = vdwg.mxu0
  %1256 = vmatpush.bf16.msra.mxu0 %v666
  %1257 = vmatpush.bf16.msra.mxu0 %v664
  %1258 = vmatpush.bf16.msra.mxu0 %v662
  %1259 = vmatpush.bf16.msra.mxu0 %v660
  %1260 = vmatpush.bf16.msra.mxu0 %v658
  %1261 = vmatpush.bf16.msra.mxu0 %v656
  %1262 = vmatpush.bf16.msra.mxu0 %v654
  %1263 = vmatpush.bf16.msra.mxu0 %v652
  %1264 = vmatmul.bf16.gmra.mxu0 %v343
  %v1265 = vpop.f32.mrf.mxu0
  %v1266 = vadd.f32 %v1187, %v1265
  %v1267 = vpop.f32.mrf.mxu0
  %v1268 = vadd.f32 %v1189, %v1267
  %1269 = vmatmul.bf16.gmra.mxu0 %v347
  %v1270 = vpop.f32.mrf.mxu0
  %v1271 = vadd.f32 %v1192, %v1270
  %v1272 = vpop.f32.mrf.mxu0
  %v1273 = vadd.f32 %v1194, %v1272
  %1274 = vmatmul.bf16.gmra.mxu0 %v351
  %v1275 = vpop.f32.mrf.mxu0
  %v1276 = vadd.f32 %v1197, %v1275
  %v1277 = vpop.f32.mrf.mxu0
  %v1278 = vadd.f32 %v1199, %v1277
  %1279 = vmatmul.bf16.gmra.mxu0 %v355
  %v1280 = vpop.f32.mrf.mxu0
  %v1281 = vadd.f32 %v1202, %v1280
  %v1282 = vpop.f32.mrf.mxu0
  %v1283 = vadd.f32 %v1204, %v1282
  %1284 = vmatmul.bf16.gmra.mxu0 %v359
  %v1285 = vpop.f32.mrf.mxu0
  %v1286 = vadd.f32 %v1207, %v1285
  %v1287 = vpop.f32.mrf.mxu0
  %v1288 = vadd.f32 %v1209, %v1287
  %1289 = vmatmul.bf16.gmra.mxu0 %v363
  %v1290 = vpop.f32.mrf.mxu0
  %v1291 = vadd.f32 %v1212, %v1290
  %v1292 = vpop.f32.mrf.mxu0
  %v1293 = vadd.f32 %v1214, %v1292
  %1294 = vmatmul.bf16.gmra.mxu0 %v367
  %v1295 = vpop.f32.mrf.mxu0
  %v1296 = vadd.f32 %v1217, %v1295
  %v1297 = vpop.f32.mrf.mxu0
  %v1298 = vadd.f32 %v1219, %v1297
  %1299 = vmatmul.bf16.gmra.mxu0 %v371
  %v1300 = vpop.f32.mrf.mxu0
  %v1301 = vadd.f32 %v1222, %v1300
  %v1302 = vpop.f32.mrf.mxu0
  %v1303 = vadd.f32 %v1224, %v1302
  %1304 = vmatmul.bf16.gmra.mxu0 %v375
  %v1305 = vpop.f32.mrf.mxu0
  %v1306 = vadd.f32 %v1227, %v1305
  %v1307 = vpop.f32.mrf.mxu0
  %v1308 = vadd.f32 %v1229, %v1307
  %1309 = vmatmul.bf16.gmra.mxu0 %v379
  %v1310 = vpop.f32.mrf.mxu0
  %v1311 = vadd.f32 %v1232, %v1310
  %v1312 = vpop.f32.mrf.mxu0
  %v1313 = vadd.f32 %v1234, %v1312
  %1314 = vmatmul.bf16.gmra.mxu0 %v383
  %v1315 = vpop.f32.mrf.mxu0
  %v1316 = vadd.f32 %v1237, %v1315
  %v1317 = vpop.f32.mrf.mxu0
  %v1318 = vadd.f32 %v1239, %v1317
  %1319 = vmatmul.bf16.gmra.mxu0 %v387
  %v1320 = vpop.f32.mrf.mxu0
  %v1321 = vadd.f32 %v1242, %v1320
  %v1322 = vpop.f32.mrf.mxu0
  %v1323 = vadd.f32 %v1244, %v1322
  %1324 = vmatmul.bf16.gmra.mxu0 %v391
  %v1325 = vpop.f32.mrf.mxu0
  %v1326 = vadd.f32 %v1247, %v1325
  %v1327 = vpop.f32.mrf.mxu0
  %v1328 = vadd.f32 %v1249, %v1327
  %1329 = vmatmul.bf16.gmra.mxu0 %v395
  %v1330 = vpop.f32.mrf.mxu0
  %v1331 = vadd.f32 %v1252, %v1330
  %v1332 = vpop.f32.mrf.mxu0
  %v1333 = vadd.f32 %v1254, %v1332
  %1334 = vdwg.mxu0
  %1335 = vmatpush.bf16.msra.mxu0 0
  %1336 = vmatpush.bf16.msra.mxu0 0
  %1337 = vmatpush.bf16.msra.mxu0 %v678
  %1338 = vmatpush.bf16.msra.mxu0 %v676
  %1339 = vmatpush.bf16.msra.mxu0 %v674
  %1340 = vmatpush.bf16.msra.mxu0 %v672
  %1341 = vmatpush.bf16.msra.mxu0 %v670
  %1342 = vmatpush.bf16.msra.mxu0 %v668
  %1343 = vmatmul.bf16.gmra.mxu0 %v741
  %v1344 = vpop.f32.mrf.mxu0
  %v1345 = vadd.f32 %v1266, %v1344
  %v1346 = vpop.f32.mrf.mxu0
  %v1347 = vadd.f32 %v1268, %v1346
  %1348 = vmatmul.bf16.gmra.mxu0 %v744
  %v1349 = vpop.f32.mrf.mxu0
  %v1350 = vadd.f32 %v1271, %v1349
  %v1351 = vpop.f32.mrf.mxu0
  %v1352 = vadd.f32 %v1273, %v1351
  %1353 = vmatmul.bf16.gmra.mxu0 %v747
  %v1354 = vpop.f32.mrf.mxu0
  %v1355 = vadd.f32 %v1276, %v1354
  %v1356 = vpop.f32.mrf.mxu0
  %v1357 = vadd.f32 %v1278, %v1356
  %1358 = vmatmul.bf16.gmra.mxu0 %v750
  %v1359 = vpop.f32.mrf.mxu0
  %v1360 = vadd.f32 %v1281, %v1359
  %v1361 = vpop.f32.mrf.mxu0
  %v1362 = vadd.f32 %v1283, %v1361
  %1363 = vmatmul.bf16.gmra.mxu0 %v753
  %v1364 = vpop.f32.mrf.mxu0
  %v1365 = vadd.f32 %v1286, %v1364
  %v1366 = vpop.f32.mrf.mxu0
  %v1367 = vadd.f32 %v1288, %v1366
  %1368 = vmatmul.bf16.gmra.mxu0 %v756
  %v1369 = vpop.f32.mrf.mxu0
  %v1370 = vadd.f32 %v1291, %v1369
  %v1371 = vpop.f32.mrf.mxu0
  %v1372 = vadd.f32 %v1293, %v1371
  %1373 = vmatmul.bf16.gmra.mxu0 %v759
  %v1374 = vpop.f32.mrf.mxu0
  %v1375 = vadd.f32 %v1296, %v1374
  %v1376 = vpop.f32.mrf.mxu0
  %v1377 = vadd.f32 %v1298, %v1376
  %1378 = vmatmul.bf16.gmra.mxu0 %v762
  %v1379 = vpop.f32.mrf.mxu0
  %v1380 = vadd.f32 %v1301, %v1379
  %v1381 = vpop.f32.mrf.mxu0
  %v1382 = vadd.f32 %v1303, %v1381
  %1383 = vmatmul.bf16.gmra.mxu0 %v765
  %v1384 = vpop.f32.mrf.mxu0
  %v1385 = vadd.f32 %v1306, %v1384
  %v1386 = vpop.f32.mrf.mxu0
  %v1387 = vadd.f32 %v1308, %v1386
  %1388 = vmatmul.bf16.gmra.mxu0 %v768
  %v1389 = vpop.f32.mrf.mxu0
  %v1390 = vadd.f32 %v1311, %v1389
  %v1391 = vpop.f32.mrf.mxu0
  %v1392 = vadd.f32 %v1313, %v1391
  %1393 = vmatmul.bf16.gmra.mxu0 %v771
  %v1394 = vpop.f32.mrf.mxu0
  %v1395 = vadd.f32 %v1316, %v1394
  %v1396 = vpop.f32.mrf.mxu0
  %v1397 = vadd.f32 %v1318, %v1396
  %1398 = vmatmul.bf16.gmra.mxu0 %v774
  %v1399 = vpop.f32.mrf.mxu0
  %v1400 = vadd.f32 %v1321, %v1399
  %v1401 = vpop.f32.mrf.mxu0
  %v1402 = vadd.f32 %v1323, %v1401
  %1403 = vmatmul.bf16.gmra.mxu0 %v777
  %v1404 = vpop.f32.mrf.mxu0
  %v1405 = vadd.f32 %v1326, %v1404
  %v1406 = vpop.f32.mrf.mxu0
  %v1407 = vadd.f32 %v1328, %v1406
  %1408 = vmatmul.bf16.gmra.mxu0 %v780
  %v1409 = vpop.f32.mrf.mxu0
  %v1410 = vadd.f32 %v1331, %v1409
  %v1411 = vpop.f32.mrf.mxu0
  %v1412 = vadd.f32 %v1333, %v1411
  %1413 = vdwg.mxu0
  %v1414 = vmax.f32 %v1029, 0.0
  %v1415 = vmax.f32 %v1345, 0.0
  %v1416 = vmax.f32 %v1031, 0.0
  %v1417 = vmax.f32 %v1347, 0.0
  %v1418 = vmax.f32 %v1034, 0.0
  %v1419 = vmax.f32 %v1350, 0.0
  %v1420 = vmax.f32 %v1036, 0.0
  %v1421 = vmax.f32 %v1352, 0.0
  %v1422 = vmax.f32 %v1039, 0.0
  %v1423 = vmax.f32 %v1355, 0.0
  %v1424 = vmax.f32 %v1041, 0.0
  %v1425 = vmax.f32 %v1357, 0.0
  %v1426 = vmax.f32 %v1044, 0.0
  %v1427 = vmax.f32 %v1360, 0.0
  %v1428 = vmax.f32 %v1046, 0.0
  %v1429 = vmax.f32 %v1362, 0.0
  %v1430 = vmax.f32 %v1049, 0.0
  %v1431 = vmax.f32 %v1365, 0.0
  %v1432 = vmax.f32 %v1051, 0.0
  %v1433 = vmax.f32 %v1367, 0.0
  %v1434 = vmax.f32 %v1054, 0.0
  %v1435 = vmax.f32 %v1370, 0.0
  %v1436 = vmax.f32 %v1056, 0.0
  %v1437 = vmax.f32 %v1372, 0.0
  %v1438 = vmax.f32 %v1059, 0.0
  %v1439 = vmax.f32 %v1375, 0.0
  %v1440 = vmax.f32 %v1061, 0.0
  %v1441 = vmax.f32 %v1377, 0.0
  %v1442 = vmax.f32 %v1064, 0.0
  %v1443 = vmax.f32 %v1380, 0.0
  %v1444 = vmax.f32 %v1066, 0.0
  %v1445 = vmax.f32 %v1382, 0.0
  %v1446 = vmax.f32 %v1069, 0.0
  %v1447 = vmax.f32 %v1385, 0.0
  %v1448 = vmax.f32 %v1071, 0.0
  %v1449 = vmax.f32 %v1387, 0.0
  %v1450 = vmax.f32 %v1074, 0.0
  %v1451 = vmax.f32 %v1390, 0.0
  %v1452 = vmax.f32 %v1076, 0.0
  %v1453 = vmax.f32 %v1392, 0.0
  %v1454 = vmax.f32 %v1079, 0.0
  %v1455 = vmax.f32 %v1395, 0.0
  %v1456 = vmax.f32 %v1081, 0.0
  %v1457 = vmax.f32 %v1397, 0.0
  %v1458 = vmax.f32 %v1084, 0.0
  %v1459 = vmax.f32 %v1400, 0.0
  %v1460 = vmax.f32 %v1086, 0.0
  %v1461 = vmax.f32 %v1402, 0.0
  %v1462 = vmax.f32 %v1089, 0.0
  %v1463 = vmax.f32 %v1405, 0.0
  %v1464 = vmax.f32 %v1091, 0.0
  %v1465 = vmax.f32 %v1407, 0.0
  %v1466 = vmax.f32 %v1094, 0.0
  %v1467 = vmax.f32 %v1410, 0.0
  %v1468 = vmax.f32 %v1096, 0.0
  %v1469 = vmax.f32 %v1412, 0.0
  %v1470 = vpack.c.bf16 %v1416, %v1414
  %v1471 = vpack.c.bf16 %v1417, %v1415
  %v1472 = vpack.c.bf16 %v1420, %v1418
  %v1473 = vpack.c.bf16 %v1421, %v1419
  %v1474 = vpack.c.bf16 %v1424, %v1422
  %v1475 = vpack.c.bf16 %v1425, %v1423
  %v1476 = vpack.c.bf16 %v1428, %v1426
  %v1477 = vpack.c.bf16 %v1429, %v1427
  %v1478 = vpack.c.bf16 %v1432, %v1430
  %v1479 = vpack.c.bf16 %v1433, %v1431
  %v1480 = vpack.c.bf16 %v1436, %v1434
  %v1481 = vpack.c.bf16 %v1437, %v1435
  %v1482 = vpack.c.bf16 %v1440, %v1438
  %v1483 = vpack.c.bf16 %v1441, %v1439
  %v1484 = vpack.c.bf16 %v1444, %v1442
  %v1485 = vpack.c.bf16 %v1445, %v1443
  %v1486 = vpack.c.bf16 %v1448, %v1446
  %v1487 = vpack.c.bf16 %v1449, %v1447
  %v1488 = vpack.c.bf16 %v1452, %v1450
  %v1489 = vpack.c.bf16 %v1453, %v1451
  %v1490 = vpack.c.bf16 %v1456, %v1454
  %v1491 = vpack.c.bf16 %v1457, %v1455
  %v1492 = vpack.c.bf16 %v1460, %v1458
  %v1493 = vpack.c.bf16 %v1461, %v1459
  %v1494 = vpack.c.bf16 %v1464, %v1462
  %v1495 = vpack.c.bf16 %v1465, %v1463
  %v1496 = vpack.c.bf16 %v1468, %v1466
  %v1497 = vpack.c.bf16 %v1469, %v1467
  %v1498 = vld [vmem:[%s3] sm:$0xff]
  %v1499 = vld [vmem:[%s3 + $0x8] sm:$0xff]
  %v1500 = vld [vmem:[%s3 + $0x10] sm:$0xff]
  %v1501 = vld [vmem:[%s3 + $0x18] sm:$0xff]
  %v1502 = vld [vmem:[%s3 + $0x20] sm:$0xff]
  %v1503 = vld [vmem:[%s3 + $0x28] sm:$0xff]
  %v1504 = vld [vmem:[%s3 + $0x30] sm:$0xff]
  %v1505 = vld [vmem:[%s3 + $0x38] sm:$0xff]
  %v1506 = vld [vmem:[%s3 + $0x40] sm:$0xff]
  %v1507 = vld [vmem:[%s3 + $0x48] sm:$0xff]
  %v1508 = vld [vmem:[%s3 + $0x50] sm:$0xff]
  %v1509 = vld [vmem:[%s3 + $0x58] sm:$0xff]
  %v1510 = vld [vmem:[%s3 + $0x60] sm:$0xff]
  %v1511 = vld [vmem:[%s3 + $0x68] sm:$0xff]
  %v1526 = vunpack.c.l.b16 %v1498
  %v1527 = vunpack.c.h.b16 %v1498
  %v1528 = vunpack.c.l.b16 %v1499
  %v1529 = vunpack.c.h.b16 %v1499
  %v1530 = vunpack.c.l.b16 %v1500
  %v1531 = vunpack.c.h.b16 %v1500
  %v1532 = vunpack.c.l.b16 %v1501
  %v1533 = vunpack.c.h.b16 %v1501
  %v1534 = vunpack.c.l.b16 %v1502
  %v1535 = vunpack.c.h.b16 %v1502
  %v1536 = vunpack.c.l.b16 %v1503
  %v1537 = vunpack.c.h.b16 %v1503
  %v1538 = vunpack.c.l.b16 %v1504
  %v1539 = vunpack.c.h.b16 %v1504
  %v1540 = vunpack.c.l.b16 %v1505
  %v1541 = vunpack.c.h.b16 %v1505
  %v1542 = vunpack.c.l.b16 %v1506
  %v1543 = vunpack.c.h.b16 %v1506
  %v1544 = vunpack.c.l.b16 %v1507
  %v1545 = vunpack.c.h.b16 %v1507
  %v1546 = vunpack.c.l.b16 %v1508
  %v1547 = vunpack.c.h.b16 %v1508
  %v1548 = vunpack.c.l.b16 %v1509
  %v1549 = vunpack.c.h.b16 %v1509
  %v1550 = vunpack.c.l.b16 %v1510
  %v1551 = vunpack.c.h.b16 %v1510
  %v1552 = vunpack.c.l.b16 %v1511
  %v1553 = vunpack.c.h.b16 %v1511
  %v1554 = vpack.c.b16 %v1528, %v1526
  %v1555 = vpack.c.b16 %v1529, %v1527
  %v1556 = vpack.c.b16 %v1532, %v1530
  %v1557 = vpack.c.b16 %v1533, %v1531
  %v1558 = vpack.c.b16 %v1536, %v1534
  %v1559 = vpack.c.b16 %v1537, %v1535
  %v1560 = vpack.c.b16 %v1540, %v1538
  %v1561 = vpack.c.b16 %v1541, %v1539
  %v1562 = vpack.c.b16 %v1544, %v1542
  %v1563 = vpack.c.b16 %v1545, %v1543
  %v1564 = vpack.c.b16 %v1548, %v1546
  %v1565 = vpack.c.b16 %v1549, %v1547
  %v1566 = vpack.c.b16 %v1552, %v1550
  %v1567 = vpack.c.b16 %v1553, %v1551
  %v1576 = vsel %vm739, %v1555, 0
  %v1579 = vsel %vm739, %v1557, 0
  %v1582 = vsel %vm739, %v1559, 0
  %v1585 = vsel %vm739, %v1561, 0
  %v1588 = vsel %vm739, %v1563, 0
  %v1591 = vsel %vm739, %v1565, 0
  %v1594 = vsel %vm739, %v1567, 0
  %1596 = vmatpush.bf16.msra.mxu0 %v1484
  %1597 = vmatpush.bf16.msra.mxu0 %v1482
  %1598 = vmatpush.bf16.msra.mxu0 %v1480
  %1599 = vmatpush.bf16.msra.mxu0 %v1478
  %1600 = vmatpush.bf16.msra.mxu0 %v1476
  %1601 = vmatpush.bf16.msra.mxu0 %v1474
  %1602 = vmatpush.bf16.msra.mxu0 %v1472
  %1603 = vmatpush.bf16.msra.mxu0 %v1470
  %1604 = vmatmul.bf16.gmra.mxu0 %v1554
  %v1605 = vpop.f32.mrf.mxu0
  %v1606 = vadd.f32 0.0, %v1605
  %v1607 = vpop.f32.mrf.mxu0
  %v1608 = vadd.f32 0.0, %v1607
  %1609 = vmatmul.bf16.gmra.mxu0 %v1556
  %v1610 = vpop.f32.mrf.mxu0
  %v1611 = vadd.f32 0.0, %v1610
  %v1612 = vpop.f32.mrf.mxu0
  %v1613 = vadd.f32 0.0, %v1612
  %1614 = vmatmul.bf16.gmra.mxu0 %v1558
  %v1615 = vpop.f32.mrf.mxu0
  %v1616 = vadd.f32 0.0, %v1615
  %v1617 = vpop.f32.mrf.mxu0
  %v1618 = vadd.f32 0.0, %v1617
  %1619 = vmatmul.bf16.gmra.mxu0 %v1560
  %v1620 = vpop.f32.mrf.mxu0
  %v1621 = vadd.f32 0.0, %v1620
  %v1622 = vpop.f32.mrf.mxu0
  %v1623 = vadd.f32 0.0, %v1622
  %1624 = vmatmul.bf16.gmra.mxu0 %v1562
  %v1625 = vpop.f32.mrf.mxu0
  %v1626 = vadd.f32 0.0, %v1625
  %v1627 = vpop.f32.mrf.mxu0
  %v1628 = vadd.f32 0.0, %v1627
  %1629 = vmatmul.bf16.gmra.mxu0 %v1564
  %v1630 = vpop.f32.mrf.mxu0
  %v1631 = vadd.f32 0.0, %v1630
  %v1632 = vpop.f32.mrf.mxu0
  %v1633 = vadd.f32 0.0, %v1632
  %1634 = vmatmul.bf16.gmra.mxu0 %v1566
  %v1635 = vpop.f32.mrf.mxu0
  %v1636 = vadd.f32 0.0, %v1635
  %v1637 = vpop.f32.mrf.mxu0
  %v1638 = vadd.f32 0.0, %v1637
  %1639 = vdwg.mxu0
  %1640 = vmatpush.bf16.msra.mxu0 0
  %1641 = vmatpush.bf16.msra.mxu0 0
  %1642 = vmatpush.bf16.msra.mxu0 %v1496
  %1643 = vmatpush.bf16.msra.mxu0 %v1494
  %1644 = vmatpush.bf16.msra.mxu0 %v1492
  %1645 = vmatpush.bf16.msra.mxu0 %v1490
  %1646 = vmatpush.bf16.msra.mxu0 %v1488
  %1647 = vmatpush.bf16.msra.mxu0 %v1486
  %1648 = vmatmul.bf16.gmra.mxu0 %v1576
  %v1649 = vpop.f32.mrf.mxu0
  %v1650 = vadd.f32 %v1606, %v1649
  %v1651 = vpop.f32.mrf.mxu0
  %v1652 = vadd.f32 %v1608, %v1651
  %1653 = vmatmul.bf16.gmra.mxu0 %v1579
  %v1654 = vpop.f32.mrf.mxu0
  %v1655 = vadd.f32 %v1611, %v1654
  %v1656 = vpop.f32.mrf.mxu0
  %v1657 = vadd.f32 %v1613, %v1656
  %1658 = vmatmul.bf16.gmra.mxu0 %v1582
  %v1659 = vpop.f32.mrf.mxu0
  %v1660 = vadd.f32 %v1616, %v1659
  %v1661 = vpop.f32.mrf.mxu0
  %v1662 = vadd.f32 %v1618, %v1661
  %1663 = vmatmul.bf16.gmra.mxu0 %v1585
  %v1664 = vpop.f32.mrf.mxu0
  %v1665 = vadd.f32 %v1621, %v1664
  %v1666 = vpop.f32.mrf.mxu0
  %v1667 = vadd.f32 %v1623, %v1666
  %1668 = vmatmul.bf16.gmra.mxu0 %v1588
  %v1669 = vpop.f32.mrf.mxu0
  %v1670 = vadd.f32 %v1626, %v1669
  %v1671 = vpop.f32.mrf.mxu0
  %v1672 = vadd.f32 %v1628, %v1671
  %1673 = vmatmul.bf16.gmra.mxu0 %v1591
  %v1674 = vpop.f32.mrf.mxu0
  %v1675 = vadd.f32 %v1631, %v1674
  %v1676 = vpop.f32.mrf.mxu0
  %v1677 = vadd.f32 %v1633, %v1676
  %1678 = vmatmul.bf16.gmra.mxu0 %v1594
  %v1679 = vpop.f32.mrf.mxu0
  %v1680 = vadd.f32 %v1636, %v1679
  %v1681 = vpop.f32.mrf.mxu0
  %v1682 = vadd.f32 %v1638, %v1681
  %1683 = vdwg.mxu0
  %1684 = vmatpush.bf16.msra.mxu0 %v1485
  %1685 = vmatpush.bf16.msra.mxu0 %v1483
  %1686 = vmatpush.bf16.msra.mxu0 %v1481
  %1687 = vmatpush.bf16.msra.mxu0 %v1479
  %1688 = vmatpush.bf16.msra.mxu0 %v1477
  %1689 = vmatpush.bf16.msra.mxu0 %v1475
  %1690 = vmatpush.bf16.msra.mxu0 %v1473
  %1691 = vmatpush.bf16.msra.mxu0 %v1471
  %1692 = vmatmul.bf16.gmra.mxu0 %v1554
  %v1693 = vpop.f32.mrf.mxu0
  %v1694 = vadd.f32 0.0, %v1693
  %v1695 = vpop.f32.mrf.mxu0
  %v1696 = vadd.f32 0.0, %v1695
  %1697 = vmatmul.bf16.gmra.mxu0 %v1556
  %v1698 = vpop.f32.mrf.mxu0
  %v1699 = vadd.f32 0.0, %v1698
  %v1700 = vpop.f32.mrf.mxu0
  %v1701 = vadd.f32 0.0, %v1700
  %1702 = vmatmul.bf16.gmra.mxu0 %v1558
  %v1703 = vpop.f32.mrf.mxu0
  %v1704 = vadd.f32 0.0, %v1703
  %v1705 = vpop.f32.mrf.mxu0
  %v1706 = vadd.f32 0.0, %v1705
  %1707 = vmatmul.bf16.gmra.mxu0 %v1560
  %v1708 = vpop.f32.mrf.mxu0
  %v1709 = vadd.f32 0.0, %v1708
  %v1710 = vpop.f32.mrf.mxu0
  %v1711 = vadd.f32 0.0, %v1710
  %1712 = vmatmul.bf16.gmra.mxu0 %v1562
  %v1713 = vpop.f32.mrf.mxu0
  %v1714 = vadd.f32 0.0, %v1713
  %v1715 = vpop.f32.mrf.mxu0
  %v1716 = vadd.f32 0.0, %v1715
  %1717 = vmatmul.bf16.gmra.mxu0 %v1564
  %v1718 = vpop.f32.mrf.mxu0
  %v1719 = vadd.f32 0.0, %v1718
  %v1720 = vpop.f32.mrf.mxu0
  %v1721 = vadd.f32 0.0, %v1720
  %1722 = vmatmul.bf16.gmra.mxu0 %v1566
  %v1723 = vpop.f32.mrf.mxu0
  %v1724 = vadd.f32 0.0, %v1723
  %v1725 = vpop.f32.mrf.mxu0
  %v1726 = vadd.f32 0.0, %v1725
  %1727 = vdwg.mxu0
  %1728 = vmatpush.bf16.msra.mxu0 0
  %1729 = vmatpush.bf16.msra.mxu0 0
  %1730 = vmatpush.bf16.msra.mxu0 %v1497
  %1731 = vmatpush.bf16.msra.mxu0 %v1495
  %1732 = vmatpush.bf16.msra.mxu0 %v1493
  %1733 = vmatpush.bf16.msra.mxu0 %v1491
  %1734 = vmatpush.bf16.msra.mxu0 %v1489
  %1735 = vmatpush.bf16.msra.mxu0 %v1487
  %1736 = vmatmul.bf16.gmra.mxu0 %v1576
  %v1737 = vpop.f32.mrf.mxu0
  %v1738 = vadd.f32 %v1694, %v1737
  %v1739 = vpop.f32.mrf.mxu0
  %v1740 = vadd.f32 %v1696, %v1739
  %1741 = vmatmul.bf16.gmra.mxu0 %v1579
  %v1742 = vpop.f32.mrf.mxu0
  %v1743 = vadd.f32 %v1699, %v1742
  %v1744 = vpop.f32.mrf.mxu0
  %v1745 = vadd.f32 %v1701, %v1744
  %1746 = vmatmul.bf16.gmra.mxu0 %v1582
  %v1747 = vpop.f32.mrf.mxu0
  %v1748 = vadd.f32 %v1704, %v1747
  %v1749 = vpop.f32.mrf.mxu0
  %v1750 = vadd.f32 %v1706, %v1749
  %1751 = vmatmul.bf16.gmra.mxu0 %v1585
  %v1752 = vpop.f32.mrf.mxu0
  %v1753 = vadd.f32 %v1709, %v1752
  %v1754 = vpop.f32.mrf.mxu0
  %v1755 = vadd.f32 %v1711, %v1754
  %1756 = vmatmul.bf16.gmra.mxu0 %v1588
  %v1757 = vpop.f32.mrf.mxu0
  %v1758 = vadd.f32 %v1714, %v1757
  %v1759 = vpop.f32.mrf.mxu0
  %v1760 = vadd.f32 %v1716, %v1759
  %1761 = vmatmul.bf16.gmra.mxu0 %v1591
  %v1762 = vpop.f32.mrf.mxu0
  %v1763 = vadd.f32 %v1719, %v1762
  %v1764 = vpop.f32.mrf.mxu0
  %v1765 = vadd.f32 %v1721, %v1764
  %1766 = vmatmul.bf16.gmra.mxu0 %v1594
  %v1767 = vpop.f32.mrf.mxu0
  %v1768 = vadd.f32 %v1724, %v1767
  %v1769 = vpop.f32.mrf.mxu0
  %v1770 = vadd.f32 %v1726, %v1769
  %1771 = vdwg.mxu0
  %s1772 = scalar_lea.vmem %s3, 112
  %v1773 = vld [vmem:[%s1772] sm:$0xff]
  %v1774 = vld [vmem:[%s1772 + $0x8] sm:$0xff]
  %v1775 = vld [vmem:[%s1772 + $0x10] sm:$0xff]
  %v1776 = vld [vmem:[%s1772 + $0x18] sm:$0xff]
  %v1777 = vld [vmem:[%s1772 + $0x20] sm:$0xff]
  %v1778 = vld [vmem:[%s1772 + $0x28] sm:$0xff]
  %v1779 = vld [vmem:[%s1772 + $0x30] sm:$0xff]
  %v1780 = vld [vmem:[%s1772 + $0x38] sm:$0xff]
  %v1781 = vld [vmem:[%s1772 + $0x40] sm:$0xff]
  %v1782 = vld [vmem:[%s1772 + $0x48] sm:$0xff]
  %v1783 = vld [vmem:[%s1772 + $0x50] sm:$0xff]
  %v1784 = vld [vmem:[%s1772 + $0x58] sm:$0xff]
  %v1785 = vld [vmem:[%s1772 + $0x60] sm:$0xff]
  %v1786 = vld [vmem:[%s1772 + $0x68] sm:$0xff]
  %v1801 = vunpack.c.l.b16 %v1773
  %v1802 = vunpack.c.h.b16 %v1773
  %v1803 = vunpack.c.l.b16 %v1774
  %v1804 = vunpack.c.h.b16 %v1774
  %v1805 = vunpack.c.l.b16 %v1775
  %v1806 = vunpack.c.h.b16 %v1775
  %v1807 = vunpack.c.l.b16 %v1776
  %v1808 = vunpack.c.h.b16 %v1776
  %v1809 = vunpack.c.l.b16 %v1777
  %v1810 = vunpack.c.h.b16 %v1777
  %v1811 = vunpack.c.l.b16 %v1778
  %v1812 = vunpack.c.h.b16 %v1778
  %v1813 = vunpack.c.l.b16 %v1779
  %v1814 = vunpack.c.h.b16 %v1779
  %v1815 = vunpack.c.l.b16 %v1780
  %v1816 = vunpack.c.h.b16 %v1780
  %v1817 = vunpack.c.l.b16 %v1781
  %v1818 = vunpack.c.h.b16 %v1781
  %v1819 = vunpack.c.l.b16 %v1782
  %v1820 = vunpack.c.h.b16 %v1782
  %v1821 = vunpack.c.l.b16 %v1783
  %v1822 = vunpack.c.h.b16 %v1783
  %v1823 = vunpack.c.l.b16 %v1784
  %v1824 = vunpack.c.h.b16 %v1784
  %v1825 = vunpack.c.l.b16 %v1785
  %v1826 = vunpack.c.h.b16 %v1785
  %v1827 = vunpack.c.l.b16 %v1786
  %v1828 = vunpack.c.h.b16 %v1786
  %v1829 = vpack.c.b16 %v1803, %v1801
  %v1830 = vpack.c.b16 %v1804, %v1802
  %v1831 = vpack.c.b16 %v1807, %v1805
  %v1832 = vpack.c.b16 %v1808, %v1806
  %v1833 = vpack.c.b16 %v1811, %v1809
  %v1834 = vpack.c.b16 %v1812, %v1810
  %v1835 = vpack.c.b16 %v1815, %v1813
  %v1836 = vpack.c.b16 %v1816, %v1814
  %v1837 = vpack.c.b16 %v1819, %v1817
  %v1838 = vpack.c.b16 %v1820, %v1818
  %v1839 = vpack.c.b16 %v1823, %v1821
  %v1840 = vpack.c.b16 %v1824, %v1822
  %v1841 = vpack.c.b16 %v1827, %v1825
  %v1842 = vpack.c.b16 %v1828, %v1826
  %v1851 = vsel %vm739, %v1830, 0
  %v1854 = vsel %vm739, %v1832, 0
  %v1857 = vsel %vm739, %v1834, 0
  %v1860 = vsel %vm739, %v1836, 0
  %v1863 = vsel %vm739, %v1838, 0
  %v1866 = vsel %vm739, %v1840, 0
  %v1869 = vsel %vm739, %v1842, 0
  %1871 = vmatpush.bf16.msra.mxu0 %v1484
  %1872 = vmatpush.bf16.msra.mxu0 %v1482
  %1873 = vmatpush.bf16.msra.mxu0 %v1480
  %1874 = vmatpush.bf16.msra.mxu0 %v1478
  %1875 = vmatpush.bf16.msra.mxu0 %v1476
  %1876 = vmatpush.bf16.msra.mxu0 %v1474
  %1877 = vmatpush.bf16.msra.mxu0 %v1472
  %1878 = vmatpush.bf16.msra.mxu0 %v1470
  %1879 = vmatmul.bf16.gmra.mxu0 %v1829
  %v1880 = vpop.f32.mrf.mxu0
  %v1881 = vadd.f32 0.0, %v1880
  %v1882 = vpop.f32.mrf.mxu0
  %v1883 = vadd.f32 0.0, %v1882
  %1884 = vmatmul.bf16.gmra.mxu0 %v1831
  %v1885 = vpop.f32.mrf.mxu0
  %v1886 = vadd.f32 0.0, %v1885
  %v1887 = vpop.f32.mrf.mxu0
  %v1888 = vadd.f32 0.0, %v1887
  %1889 = vmatmul.bf16.gmra.mxu0 %v1833
  %v1890 = vpop.f32.mrf.mxu0
  %v1891 = vadd.f32 0.0, %v1890
  %v1892 = vpop.f32.mrf.mxu0
  %v1893 = vadd.f32 0.0, %v1892
  %1894 = vmatmul.bf16.gmra.mxu0 %v1835
  %v1895 = vpop.f32.mrf.mxu0
  %v1896 = vadd.f32 0.0, %v1895
  %v1897 = vpop.f32.mrf.mxu0
  %v1898 = vadd.f32 0.0, %v1897
  %1899 = vmatmul.bf16.gmra.mxu0 %v1837
  %v1900 = vpop.f32.mrf.mxu0
  %v1901 = vadd.f32 0.0, %v1900
  %v1902 = vpop.f32.mrf.mxu0
  %v1903 = vadd.f32 0.0, %v1902
  %1904 = vmatmul.bf16.gmra.mxu0 %v1839
  %v1905 = vpop.f32.mrf.mxu0
  %v1906 = vadd.f32 0.0, %v1905
  %v1907 = vpop.f32.mrf.mxu0
  %v1908 = vadd.f32 0.0, %v1907
  %1909 = vmatmul.bf16.gmra.mxu0 %v1841
  %v1910 = vpop.f32.mrf.mxu0
  %v1911 = vadd.f32 0.0, %v1910
  %v1912 = vpop.f32.mrf.mxu0
  %v1913 = vadd.f32 0.0, %v1912
  %1914 = vdwg.mxu0
  %1915 = vmatpush.bf16.msra.mxu0 0
  %1916 = vmatpush.bf16.msra.mxu0 0
  %1917 = vmatpush.bf16.msra.mxu0 %v1496
  %1918 = vmatpush.bf16.msra.mxu0 %v1494
  %1919 = vmatpush.bf16.msra.mxu0 %v1492
  %1920 = vmatpush.bf16.msra.mxu0 %v1490
  %1921 = vmatpush.bf16.msra.mxu0 %v1488
  %1922 = vmatpush.bf16.msra.mxu0 %v1486
  %1923 = vmatmul.bf16.gmra.mxu0 %v1851
  %v1924 = vpop.f32.mrf.mxu0
  %v1925 = vadd.f32 %v1881, %v1924
  %v1926 = vpop.f32.mrf.mxu0
  %v1927 = vadd.f32 %v1883, %v1926
  %1928 = vmatmul.bf16.gmra.mxu0 %v1854
  %v1929 = vpop.f32.mrf.mxu0
  %v1930 = vadd.f32 %v1886, %v1929
  %v1931 = vpop.f32.mrf.mxu0
  %v1932 = vadd.f32 %v1888, %v1931
  %1933 = vmatmul.bf16.gmra.mxu0 %v1857
  %v1934 = vpop.f32.mrf.mxu0
  %v1935 = vadd.f32 %v1891, %v1934
  %v1936 = vpop.f32.mrf.mxu0
  %v1937 = vadd.f32 %v1893, %v1936
  %1938 = vmatmul.bf16.gmra.mxu0 %v1860
  %v1939 = vpop.f32.mrf.mxu0
  %v1940 = vadd.f32 %v1896, %v1939
  %v1941 = vpop.f32.mrf.mxu0
  %v1942 = vadd.f32 %v1898, %v1941
  %1943 = vmatmul.bf16.gmra.mxu0 %v1863
  %v1944 = vpop.f32.mrf.mxu0
  %v1945 = vadd.f32 %v1901, %v1944
  %v1946 = vpop.f32.mrf.mxu0
  %v1947 = vadd.f32 %v1903, %v1946
  %1948 = vmatmul.bf16.gmra.mxu0 %v1866
  %v1949 = vpop.f32.mrf.mxu0
  %v1950 = vadd.f32 %v1906, %v1949
  %v1951 = vpop.f32.mrf.mxu0
  %v1952 = vadd.f32 %v1908, %v1951
  %1953 = vmatmul.bf16.gmra.mxu0 %v1869
  %v1954 = vpop.f32.mrf.mxu0
  %v1955 = vadd.f32 %v1911, %v1954
  %v1956 = vpop.f32.mrf.mxu0
  %v1957 = vadd.f32 %v1913, %v1956
  %1958 = vdwg.mxu0
  %1959 = vmatpush.bf16.msra.mxu0 %v1485
  %1960 = vmatpush.bf16.msra.mxu0 %v1483
  %1961 = vmatpush.bf16.msra.mxu0 %v1481
  %1962 = vmatpush.bf16.msra.mxu0 %v1479
  %1963 = vmatpush.bf16.msra.mxu0 %v1477
  %1964 = vmatpush.bf16.msra.mxu0 %v1475
  %1965 = vmatpush.bf16.msra.mxu0 %v1473
  %1966 = vmatpush.bf16.msra.mxu0 %v1471
  %1967 = vmatmul.bf16.gmra.mxu0 %v1829
  %v1968 = vpop.f32.mrf.mxu0
  %v1969 = vadd.f32 0.0, %v1968
  %v1970 = vpop.f32.mrf.mxu0
  %v1971 = vadd.f32 0.0, %v1970
  %1972 = vmatmul.bf16.gmra.mxu0 %v1831
  %v1973 = vpop.f32.mrf.mxu0
  %v1974 = vadd.f32 0.0, %v1973
  %v1975 = vpop.f32.mrf.mxu0
  %v1976 = vadd.f32 0.0, %v1975
  %1977 = vmatmul.bf16.gmra.mxu0 %v1833
  %v1978 = vpop.f32.mrf.mxu0
  %v1979 = vadd.f32 0.0, %v1978
  %v1980 = vpop.f32.mrf.mxu0
  %v1981 = vadd.f32 0.0, %v1980
  %1982 = vmatmul.bf16.gmra.mxu0 %v1835
  %v1983 = vpop.f32.mrf.mxu0
  %v1984 = vadd.f32 0.0, %v1983
  %v1985 = vpop.f32.mrf.mxu0
  %v1986 = vadd.f32 0.0, %v1985
  %1987 = vmatmul.bf16.gmra.mxu0 %v1837
  %v1988 = vpop.f32.mrf.mxu0
  %v1989 = vadd.f32 0.0, %v1988
  %v1990 = vpop.f32.mrf.mxu0
  %v1991 = vadd.f32 0.0, %v1990
  %1992 = vmatmul.bf16.gmra.mxu0 %v1839
  %v1993 = vpop.f32.mrf.mxu0
  %v1994 = vadd.f32 0.0, %v1993
  %v1995 = vpop.f32.mrf.mxu0
  %v1996 = vadd.f32 0.0, %v1995
  %1997 = vmatmul.bf16.gmra.mxu0 %v1841
  %v1998 = vpop.f32.mrf.mxu0
  %v1999 = vadd.f32 0.0, %v1998
  %v2000 = vpop.f32.mrf.mxu0
  %v2001 = vadd.f32 0.0, %v2000
  %2002 = vdwg.mxu0
  %2003 = vmatpush.bf16.msra.mxu0 0
  %2004 = vmatpush.bf16.msra.mxu0 0
  %2005 = vmatpush.bf16.msra.mxu0 %v1497
  %2006 = vmatpush.bf16.msra.mxu0 %v1495
  %2007 = vmatpush.bf16.msra.mxu0 %v1493
  %2008 = vmatpush.bf16.msra.mxu0 %v1491
  %2009 = vmatpush.bf16.msra.mxu0 %v1489
  %2010 = vmatpush.bf16.msra.mxu0 %v1487
  %2011 = vmatmul.bf16.gmra.mxu0 %v1851
  %v2012 = vpop.f32.mrf.mxu0
  %v2013 = vadd.f32 %v1969, %v2012
  %v2014 = vpop.f32.mrf.mxu0
  %v2015 = vadd.f32 %v1971, %v2014
  %2016 = vmatmul.bf16.gmra.mxu0 %v1854
  %v2017 = vpop.f32.mrf.mxu0
  %v2018 = vadd.f32 %v1974, %v2017
  %v2019 = vpop.f32.mrf.mxu0
  %v2020 = vadd.f32 %v1976, %v2019
  %2021 = vmatmul.bf16.gmra.mxu0 %v1857
  %v2022 = vpop.f32.mrf.mxu0
  %v2023 = vadd.f32 %v1979, %v2022
  %v2024 = vpop.f32.mrf.mxu0
  %v2025 = vadd.f32 %v1981, %v2024
  %2026 = vmatmul.bf16.gmra.mxu0 %v1860
  %v2027 = vpop.f32.mrf.mxu0
  %v2028 = vadd.f32 %v1984, %v2027
  %v2029 = vpop.f32.mrf.mxu0
  %v2030 = vadd.f32 %v1986, %v2029
  %2031 = vmatmul.bf16.gmra.mxu0 %v1863
  %v2032 = vpop.f32.mrf.mxu0
  %v2033 = vadd.f32 %v1989, %v2032
  %v2034 = vpop.f32.mrf.mxu0
  %v2035 = vadd.f32 %v1991, %v2034
  %2036 = vmatmul.bf16.gmra.mxu0 %v1866
  %v2037 = vpop.f32.mrf.mxu0
  %v2038 = vadd.f32 %v1994, %v2037
  %v2039 = vpop.f32.mrf.mxu0
  %v2040 = vadd.f32 %v1996, %v2039
  %2041 = vmatmul.bf16.gmra.mxu0 %v1869
  %v2042 = vpop.f32.mrf.mxu0
  %v2043 = vadd.f32 %v1999, %v2042
  %v2044 = vpop.f32.mrf.mxu0
  %v2045 = vadd.f32 %v2001, %v2044
  %2046 = vdwg.mxu0
  %v2047 = vmax.f32 %v1650, %v1925
  %v2048 = vmax.f32 %v1738, %v2013
  %v2049 = vmax.f32 %v1652, %v1927
  %v2050 = vmax.f32 %v1740, %v2015
  %v2051 = vmax.f32 %v1655, %v1930
  %v2052 = vmax.f32 %v1743, %v2018
  %v2053 = vmax.f32 %v1657, %v1932
  %v2054 = vmax.f32 %v1745, %v2020
  %v2055 = vmax.f32 %v1660, %v1935
  %v2056 = vmax.f32 %v1748, %v2023
  %v2057 = vmax.f32 %v1662, %v1937
  %v2058 = vmax.f32 %v1750, %v2025
  %v2059 = vmax.f32 %v1665, %v1940
  %v2060 = vmax.f32 %v1753, %v2028
  %v2061 = vmax.f32 %v1667, %v1942
  %v2062 = vmax.f32 %v1755, %v2030
  %v2063 = vmax.f32 %v1670, %v1945
  %v2064 = vmax.f32 %v1758, %v2033
  %v2065 = vmax.f32 %v1672, %v1947
  %v2066 = vmax.f32 %v1760, %v2035
  %v2067 = vmax.f32 %v1675, %v1950
  %v2068 = vmax.f32 %v1763, %v2038
  %v2069 = vmax.f32 %v1677, %v1952
  %v2070 = vmax.f32 %v1765, %v2040
  %v2071 = vmax.f32 %v1680, %v1955
  %v2072 = vmax.f32 %v1768, %v2043
  %v2073 = vmax.f32 %v1682, %v1957
  %v2074 = vmax.f32 %v1770, %v2045
  %v2075 = vpack.c.bf16 %v2049, %v2047
  %v2076 = vpack.c.bf16 %v2050, %v2048
  %v2077 = vpack.c.bf16 %v2053, %v2051
  %v2078 = vpack.c.bf16 %v2054, %v2052
  %v2079 = vpack.c.bf16 %v2057, %v2055
  %v2080 = vpack.c.bf16 %v2058, %v2056
  %v2081 = vpack.c.bf16 %v2061, %v2059
  %v2082 = vpack.c.bf16 %v2062, %v2060
  %v2083 = vpack.c.bf16 %v2065, %v2063
  %v2084 = vpack.c.bf16 %v2066, %v2064
  %v2085 = vpack.c.bf16 %v2069, %v2067
  %v2086 = vpack.c.bf16 %v2070, %v2068
  %v2087 = vpack.c.bf16 %v2073, %v2071
  %v2088 = vpack.c.bf16 %v2074, %v2072
  %v2089 = vld [vmem:[%s4] sm:$0xf]
  %v2090 = vld [vmem:[%s4 + $0x4] sm:$0xf]
  %v2091 = vld [vmem:[%s4 + $0x8] sm:$0xf]
  %v2092 = vld [vmem:[%s4 + $0xc] sm:$0xf]
  %v2093 = vld [vmem:[%s4 + $0x10] sm:$0xf]
  %v2094 = vld [vmem:[%s4 + $0x14] sm:$0xf]
  %v2095 = vld [vmem:[%s4 + $0x18] sm:$0xf]
  %v2096 = vld [vmem:[%s4 + $0x1c] sm:$0xf]
  %v2097 = vld [vmem:[%s4 + $0x20] sm:$0xf]
  %v2098 = vld [vmem:[%s4 + $0x24] sm:$0xf]
  %v2099 = vld [vmem:[%s4 + $0x28] sm:$0xf]
  %v2100 = vld [vmem:[%s4 + $0x2c] sm:$0xf]
  %v2101 = vld [vmem:[%s4 + $0x30] sm:$0xf]
  %v2102 = vld [vmem:[%s4 + $0x34] sm:$0xf]
  %v2103 = vld [vmem:[%s4 + $0x38] sm:$0xf]
  %v2104 = vld [vmem:[%s4 + $0x3c] sm:$0xf]
  %v2105 = vld [vmem:[%s4 + $0x40] sm:$0xf]
  %v2106 = vld [vmem:[%s4 + $0x44] sm:$0xf]
  %v2107 = vld [vmem:[%s4 + $0x48] sm:$0xf]
  %v2108 = vld [vmem:[%s4 + $0x4c] sm:$0xf]
  %v2109 = vld [vmem:[%s4 + $0x50] sm:$0xf]
  %v2131 = vunpack.c.l.b16 %v2089
  %v2132 = vunpack.c.l.b16 %v2090
  %v2133 = vunpack.c.l.b16 %v2091
  %v2134 = vunpack.c.l.b16 %v2092
  %v2135 = vunpack.c.l.b16 %v2093
  %v2136 = vunpack.c.l.b16 %v2094
  %v2137 = vunpack.c.l.b16 %v2095
  %v2138 = vunpack.c.l.b16 %v2096
  %v2139 = vunpack.c.l.b16 %v2097
  %v2140 = vunpack.c.l.b16 %v2098
  %v2141 = vunpack.c.l.b16 %v2099
  %v2142 = vunpack.c.l.b16 %v2100
  %v2143 = vunpack.c.l.b16 %v2101
  %v2144 = vunpack.c.l.b16 %v2102
  %v2145 = vunpack.c.l.b16 %v2103
  %v2146 = vunpack.c.l.b16 %v2104
  %v2147 = vunpack.c.l.b16 %v2105
  %v2148 = vunpack.c.l.b16 %v2106
  %v2149 = vunpack.c.l.b16 %v2107
  %v2150 = vunpack.c.l.b16 %v2108
  %v2151 = vunpack.c.l.b16 %v2109
  %v2152 = vpack.c.b16 %v2132, %v2131
  %v2153 = vpack.c.b16 %v2134, %v2133
  %v2154 = vpack.c.b16 %v2136, %v2135
  %v2155 = vpack.c.b16 %v2138, %v2137
  %v2156 = vpack.c.b16 %v2140, %v2139
  %v2157 = vpack.c.b16 %v2142, %v2141
  %v2158 = vpack.c.b16 %v2144, %v2143
  %v2159 = vpack.c.b16 %v2146, %v2145
  %v2160 = vpack.c.b16 %v2148, %v2147
  %v2161 = vpack.c.b16 %v2150, %v2149
  %v2162 = vpack.c.b16 %v2151, %v2151
  %vm2173 = vcmask 326656
  %v2175 = vsel %vm2173, %v2076, 0
  %v2178 = vsel %vm2173, %v2078, 0
  %v2181 = vsel %vm2173, %v2080, 0
  %v2184 = vsel %vm2173, %v2082, 0
  %v2187 = vsel %vm2173, %v2084, 0
  %v2190 = vsel %vm2173, %v2086, 0
  %v2193 = vsel %vm2173, %v2088, 0
  %vm2195 = vcmask 1043456
  %v2197 = vsel %vm2195, %v2162, 0
  %2199 = vmatpush.bf16.msra.mxu0 %v2159
  %2200 = vmatpush.bf16.msra.mxu0 %v2158
  %2201 = vmatpush.bf16.msra.mxu0 %v2157
  %2202 = vmatpush.bf16.msra.mxu0 %v2156
  %2203 = vmatpush.bf16.msra.mxu0 %v2155
  %2204 = vmatpush.bf16.msra.mxu0 %v2154
  %2205 = vmatpush.bf16.msra.mxu0 %v2153
  %2206 = vmatpush.bf16.msra.mxu0 %v2152
  %2207 = vmatmul.bf16.gmra.mxu0 %v2075
  %v2208 = vpop.f32.mrf.mxu0
  %v2209 = vadd.f32 0.0, %v2208
  %v2210 = vpop.f32.mrf.mxu0
  %v2211 = vadd.f32 0.0, %v2210
  %2212 = vmatmul.bf16.gmra.mxu0 %v2077
  %v2213 = vpop.f32.mrf.mxu0
  %v2214 = vadd.f32 0.0, %v2213
  %v2215 = vpop.f32.mrf.mxu0
  %v2216 = vadd.f32 0.0, %v2215
  %2217 = vmatmul.bf16.gmra.mxu0 %v2079
  %v2218 = vpop.f32.mrf.mxu0
  %v2219 = vadd.f32 0.0, %v2218
  %v2220 = vpop.f32.mrf.mxu0
  %v2221 = vadd.f32 0.0, %v2220
  %2222 = vmatmul.bf16.gmra.mxu0 %v2081
  %v2223 = vpop.f32.mrf.mxu0
  %v2224 = vadd.f32 0.0, %v2223
  %v2225 = vpop.f32.mrf.mxu0
  %v2226 = vadd.f32 0.0, %v2225
  %2227 = vmatmul.bf16.gmra.mxu0 %v2083
  %v2228 = vpop.f32.mrf.mxu0
  %v2229 = vadd.f32 0.0, %v2228
  %v2230 = vpop.f32.mrf.mxu0
  %v2231 = vadd.f32 0.0, %v2230
  %2232 = vmatmul.bf16.gmra.mxu0 %v2085
  %v2233 = vpop.f32.mrf.mxu0
  %v2234 = vadd.f32 0.0, %v2233
  %v2235 = vpop.f32.mrf.mxu0
  %v2236 = vadd.f32 0.0, %v2235
  %2237 = vmatmul.bf16.gmra.mxu0 %v2087
  %v2238 = vpop.f32.mrf.mxu0
  %v2239 = vadd.f32 0.0, %v2238
  %v2240 = vpop.f32.mrf.mxu0
  %v2241 = vadd.f32 0.0, %v2240
  %2242 = vdwg.mxu0
  %2243 = vmatpush.bf16.msra.mxu0 0
  %2244 = vmatpush.bf16.msra.mxu0 0
  %2245 = vmatpush.bf16.msra.mxu0 0
  %2246 = vmatpush.bf16.msra.mxu0 0
  %2247 = vmatpush.bf16.msra.mxu0 0
  %2248 = vmatpush.bf16.msra.mxu0 %v2197
  %2249 = vmatpush.bf16.msra.mxu0 %v2161
  %2250 = vmatpush.bf16.msra.mxu0 %v2160
  %2251 = vmatmul.bf16.gmra.mxu0 %v2175
  %v2252 = vpop.f32.mrf.mxu0
  %v2253 = vadd.f32 %v2209, %v2252
  %v2254 = vpop.f32.mrf.mxu0
  %v2255 = vadd.f32 %v2211, %v2254
  %2256 = vmatmul.bf16.gmra.mxu0 %v2178
  %v2257 = vpop.f32.mrf.mxu0
  %v2258 = vadd.f32 %v2214, %v2257
  %v2259 = vpop.f32.mrf.mxu0
  %v2260 = vadd.f32 %v2216, %v2259
  %2261 = vmatmul.bf16.gmra.mxu0 %v2181
  %v2262 = vpop.f32.mrf.mxu0
  %v2263 = vadd.f32 %v2219, %v2262
  %v2264 = vpop.f32.mrf.mxu0
  %v2265 = vadd.f32 %v2221, %v2264
  %2266 = vmatmul.bf16.gmra.mxu0 %v2184
  %v2267 = vpop.f32.mrf.mxu0
  %v2268 = vadd.f32 %v2224, %v2267
  %v2269 = vpop.f32.mrf.mxu0
  %v2270 = vadd.f32 %v2226, %v2269
  %2271 = vmatmul.bf16.gmra.mxu0 %v2187
  %v2272 = vpop.f32.mrf.mxu0
  %v2273 = vadd.f32 %v2229, %v2272
  %v2274 = vpop.f32.mrf.mxu0
  %v2275 = vadd.f32 %v2231, %v2274
  %2276 = vmatmul.bf16.gmra.mxu0 %v2190
  %v2277 = vpop.f32.mrf.mxu0
  %v2278 = vadd.f32 %v2234, %v2277
  %v2279 = vpop.f32.mrf.mxu0
  %v2280 = vadd.f32 %v2236, %v2279
  %2281 = vmatmul.bf16.gmra.mxu0 %v2193
  %v2282 = vpop.f32.mrf.mxu0
  %v2283 = vadd.f32 %v2239, %v2282
  %v2284 = vpop.f32.mrf.mxu0
  %v2285 = vadd.f32 %v2241, %v2284
  %2286 = vdwg.mxu0
  %s2287 = scalar_lea.vmem %s4, 84
  %v2288 = vld [vmem:[%s2287] sm:$0xf]
  %v2289 = vld [vmem:[%s2287 + $0x4] sm:$0xf]
  %v2290 = vld [vmem:[%s2287 + $0x8] sm:$0xf]
  %v2291 = vld [vmem:[%s2287 + $0xc] sm:$0xf]
  %v2292 = vld [vmem:[%s2287 + $0x10] sm:$0xf]
  %v2293 = vld [vmem:[%s2287 + $0x14] sm:$0xf]
  %v2294 = vld [vmem:[%s2287 + $0x18] sm:$0xf]
  %v2295 = vld [vmem:[%s2287 + $0x1c] sm:$0xf]
  %v2296 = vld [vmem:[%s2287 + $0x20] sm:$0xf]
  %v2297 = vld [vmem:[%s2287 + $0x24] sm:$0xf]
  %v2298 = vld [vmem:[%s2287 + $0x28] sm:$0xf]
  %v2299 = vld [vmem:[%s2287 + $0x2c] sm:$0xf]
  %v2300 = vld [vmem:[%s2287 + $0x30] sm:$0xf]
  %v2301 = vld [vmem:[%s2287 + $0x34] sm:$0xf]
  %v2302 = vld [vmem:[%s2287 + $0x38] sm:$0xf]
  %v2303 = vld [vmem:[%s2287 + $0x3c] sm:$0xf]
  %v2304 = vld [vmem:[%s2287 + $0x40] sm:$0xf]
  %v2305 = vld [vmem:[%s2287 + $0x44] sm:$0xf]
  %v2306 = vld [vmem:[%s2287 + $0x48] sm:$0xf]
  %v2307 = vld [vmem:[%s2287 + $0x4c] sm:$0xf]
  %v2308 = vld [vmem:[%s2287 + $0x50] sm:$0xf]
  %v2330 = vunpack.c.l.b16 %v2288
  %v2331 = vunpack.c.l.b16 %v2289
  %v2332 = vunpack.c.l.b16 %v2290
  %v2333 = vunpack.c.l.b16 %v2291
  %v2334 = vunpack.c.l.b16 %v2292
  %v2335 = vunpack.c.l.b16 %v2293
  %v2336 = vunpack.c.l.b16 %v2294
  %v2337 = vunpack.c.l.b16 %v2295
  %v2338 = vunpack.c.l.b16 %v2296
  %v2339 = vunpack.c.l.b16 %v2297
  %v2340 = vunpack.c.l.b16 %v2298
  %v2341 = vunpack.c.l.b16 %v2299
  %v2342 = vunpack.c.l.b16 %v2300
  %v2343 = vunpack.c.l.b16 %v2301
  %v2344 = vunpack.c.l.b16 %v2302
  %v2345 = vunpack.c.l.b16 %v2303
  %v2346 = vunpack.c.l.b16 %v2304
  %v2347 = vunpack.c.l.b16 %v2305
  %v2348 = vunpack.c.l.b16 %v2306
  %v2349 = vunpack.c.l.b16 %v2307
  %v2350 = vunpack.c.l.b16 %v2308
  %v2351 = vpack.c.b16 %v2331, %v2330
  %v2352 = vpack.c.b16 %v2333, %v2332
  %v2353 = vpack.c.b16 %v2335, %v2334
  %v2354 = vpack.c.b16 %v2337, %v2336
  %v2355 = vpack.c.b16 %v2339, %v2338
  %v2356 = vpack.c.b16 %v2341, %v2340
  %v2357 = vpack.c.b16 %v2343, %v2342
  %v2358 = vpack.c.b16 %v2345, %v2344
  %v2359 = vpack.c.b16 %v2347, %v2346
  %v2360 = vpack.c.b16 %v2349, %v2348
  %v2361 = vpack.c.b16 %v2350, %v2350
  %v2373 = vsel %vm2195, %v2361, 0
  %2375 = vmatpush.bf16.msra.mxu0 %v2358
  %2376 = vmatpush.bf16.msra.mxu0 %v2357
  %2377 = vmatpush.bf16.msra.mxu0 %v2356
  %2378 = vmatpush.bf16.msra.mxu0 %v2355
  %2379 = vmatpush.bf16.msra.mxu0 %v2354
  %2380 = vmatpush.bf16.msra.mxu0 %v2353
  %2381 = vmatpush.bf16.msra.mxu0 %v2352
  %2382 = vmatpush.bf16.msra.mxu0 %v2351
  %2383 = vmatmul.bf16.gmra.mxu0 %v2075
  %v2384 = vpop.f32.mrf.mxu0
  %v2385 = vadd.f32 0.0, %v2384
  %v2386 = vpop.f32.mrf.mxu0
  %v2387 = vadd.f32 0.0, %v2386
  %2388 = vmatmul.bf16.gmra.mxu0 %v2077
  %v2389 = vpop.f32.mrf.mxu0
  %v2390 = vadd.f32 0.0, %v2389
  %v2391 = vpop.f32.mrf.mxu0
  %v2392 = vadd.f32 0.0, %v2391
  %2393 = vmatmul.bf16.gmra.mxu0 %v2079
  %v2394 = vpop.f32.mrf.mxu0
  %v2395 = vadd.f32 0.0, %v2394
  %v2396 = vpop.f32.mrf.mxu0
  %v2397 = vadd.f32 0.0, %v2396
  %2398 = vmatmul.bf16.gmra.mxu0 %v2081
  %v2399 = vpop.f32.mrf.mxu0
  %v2400 = vadd.f32 0.0, %v2399
  %v2401 = vpop.f32.mrf.mxu0
  %v2402 = vadd.f32 0.0, %v2401
  %2403 = vmatmul.bf16.gmra.mxu0 %v2083
  %v2404 = vpop.f32.mrf.mxu0
  %v2405 = vadd.f32 0.0, %v2404
  %v2406 = vpop.f32.mrf.mxu0
  %v2407 = vadd.f32 0.0, %v2406
  %2408 = vmatmul.bf16.gmra.mxu0 %v2085
  %v2409 = vpop.f32.mrf.mxu0
  %v2410 = vadd.f32 0.0, %v2409
  %v2411 = vpop.f32.mrf.mxu0
  %v2412 = vadd.f32 0.0, %v2411
  %2413 = vmatmul.bf16.gmra.mxu0 %v2087
  %v2414 = vpop.f32.mrf.mxu0
  %v2415 = vadd.f32 0.0, %v2414
  %v2416 = vpop.f32.mrf.mxu0
  %v2417 = vadd.f32 0.0, %v2416
  %2418 = vdwg.mxu0
  %2419 = vmatpush.bf16.msra.mxu0 0
  %2420 = vmatpush.bf16.msra.mxu0 0
  %2421 = vmatpush.bf16.msra.mxu0 0
  %2422 = vmatpush.bf16.msra.mxu0 0
  %2423 = vmatpush.bf16.msra.mxu0 0
  %2424 = vmatpush.bf16.msra.mxu0 %v2373
  %2425 = vmatpush.bf16.msra.mxu0 %v2360
  %2426 = vmatpush.bf16.msra.mxu0 %v2359
  %2427 = vmatmul.bf16.gmra.mxu0 %v2175
  %v2428 = vpop.f32.mrf.mxu0
  %v2429 = vadd.f32 %v2385, %v2428
  %v2430 = vpop.f32.mrf.mxu0
  %v2431 = vadd.f32 %v2387, %v2430
  %2432 = vmatmul.bf16.gmra.mxu0 %v2178
  %v2433 = vpop.f32.mrf.mxu0
  %v2434 = vadd.f32 %v2390, %v2433
  %v2435 = vpop.f32.mrf.mxu0
  %v2436 = vadd.f32 %v2392, %v2435
  %2437 = vmatmul.bf16.gmra.mxu0 %v2181
  %v2438 = vpop.f32.mrf.mxu0
  %v2439 = vadd.f32 %v2395, %v2438
  %v2440 = vpop.f32.mrf.mxu0
  %v2441 = vadd.f32 %v2397, %v2440
  %2442 = vmatmul.bf16.gmra.mxu0 %v2184
  %v2443 = vpop.f32.mrf.mxu0
  %v2444 = vadd.f32 %v2400, %v2443
  %v2445 = vpop.f32.mrf.mxu0
  %v2446 = vadd.f32 %v2402, %v2445
  %2447 = vmatmul.bf16.gmra.mxu0 %v2187
  %v2448 = vpop.f32.mrf.mxu0
  %v2449 = vadd.f32 %v2405, %v2448
  %v2450 = vpop.f32.mrf.mxu0
  %v2451 = vadd.f32 %v2407, %v2450
  %2452 = vmatmul.bf16.gmra.mxu0 %v2190
  %v2453 = vpop.f32.mrf.mxu0
  %v2454 = vadd.f32 %v2410, %v2453
  %v2455 = vpop.f32.mrf.mxu0
  %v2456 = vadd.f32 %v2412, %v2455
  %2457 = vmatmul.bf16.gmra.mxu0 %v2193
  %v2458 = vpop.f32.mrf.mxu0
  %v2459 = vadd.f32 %v2415, %v2458
  %v2460 = vpop.f32.mrf.mxu0
  %v2461 = vadd.f32 %v2417, %v2460
  %2462 = vdwg.mxu0
  %v2463 = vmax.f32 %v2253, %v2429
  %v2464 = vmax.f32 %v2255, %v2431
  %v2465 = vmax.f32 %v2258, %v2434
  %v2466 = vmax.f32 %v2260, %v2436
  %v2467 = vmax.f32 %v2263, %v2439
  %v2468 = vmax.f32 %v2265, %v2441
  %v2469 = vmax.f32 %v2268, %v2444
  %v2470 = vmax.f32 %v2270, %v2446
  %v2471 = vmax.f32 %v2273, %v2449
  %v2472 = vmax.f32 %v2275, %v2451
  %v2473 = vmax.f32 %v2278, %v2454
  %v2474 = vmax.f32 %v2280, %v2456
  %v2475 = vmax.f32 %v2283, %v2459
  %v2476 = vmax.f32 %v2285, %v2461
  %v2477 = vpack.c.bf16 %v2464, %v2463
  %v2478 = vpack.c.bf16 %v2466, %v2465
  %v2479 = vpack.c.bf16 %v2468, %v2467
  %v2480 = vpack.c.bf16 %v2470, %v2469
  %v2481 = vpack.c.bf16 %v2472, %v2471
  %v2482 = vld [vmem:[%s5] sm:$0xff]
  %v2483 = vld [vmem:[%s5 + $0x8] sm:$0xff]
  %v2484 = vld [vmem:[%s5 + $0x10] sm:$0xff]
  %v2485 = vld [vmem:[%s5 + $0x18] sm:$0xff]
  %v2486 = vld [vmem:[%s5 + $0x20] sm:$0xff]
  %v2487 = vld [vmem:[%s5 + $0x28] sm:$0xff]
  %v2488 = vld [vmem:[%s5 + $0x30] sm:$0xff]
  %v2489 = vld [vmem:[%s5 + $0x38] sm:$0xff]
  %v2490 = vld [vmem:[%s5 + $0x40] sm:$0xff]
  %v2491 = vld [vmem:[%s5 + $0x48] sm:$0xff]
  %v2492 = vld [vmem:[%s5 + $0x50] sm:$0x33]
  %v2493 = vpack.c.bf16 %v2465, %v2464
  %v2494 = vpack.c.bf16 %v2467, %v2466
  %v2495 = vpack.c.bf16 %v2469, %v2468
  %v2496 = vpack.c.bf16 %v2471, %v2470
  %v2497 = vpack.c.bf16 %v2473, %v2472
  %s2498 = scalar_lea.vmem %s5, 88
  %v2499 = vld [vmem:[%s2498] sm:$0xff]
  %v2500 = vld [vmem:[%s2498 + $0x8] sm:$0xff]
  %v2501 = vld [vmem:[%s2498 + $0x10] sm:$0xff]
  %v2502 = vld [vmem:[%s2498 + $0x18] sm:$0xff]
  %v2503 = vld [vmem:[%s2498 + $0x20] sm:$0xff]
  %v2504 = vld [vmem:[%s2498 + $0x28] sm:$0xff]
  %v2505 = vld [vmem:[%s2498 + $0x30] sm:$0xff]
  %v2506 = vld [vmem:[%s2498 + $0x38] sm:$0xff]
  %v2507 = vld [vmem:[%s2498 + $0x40] sm:$0xff]
  %v2508 = vld [vmem:[%s2498 + $0x48] sm:$0xff]
  %v2509 = vld [vmem:[%s2498 + $0x50] sm:$0x33]
  %v2521 = vunpack.c.l.b16 %v2499
  %v2522 = vunpack.c.h.b16 %v2499
  %v2523 = vunpack.c.l.b16 %v2500
  %v2524 = vunpack.c.h.b16 %v2500
  %v2525 = vunpack.c.l.b16 %v2501
  %v2526 = vunpack.c.h.b16 %v2501
  %v2527 = vunpack.c.l.b16 %v2502
  %v2528 = vunpack.c.h.b16 %v2502
  %v2529 = vunpack.c.l.b16 %v2503
  %v2530 = vunpack.c.h.b16 %v2503
  %v2531 = vunpack.c.l.b16 %v2504
  %v2532 = vunpack.c.h.b16 %v2504
  %v2533 = vunpack.c.l.b16 %v2505
  %v2534 = vunpack.c.h.b16 %v2505
  %v2535 = vunpack.c.l.b16 %v2506
  %v2536 = vunpack.c.h.b16 %v2506
  %v2537 = vunpack.c.l.b16 %v2507
  %v2538 = vunpack.c.h.b16 %v2507
  %v2539 = vunpack.c.l.b16 %v2508
  %v2540 = vunpack.c.h.b16 %v2508
  %v2541 = vunpack.c.l.b16 %v2509
  %v2542 = vunpack.c.h.b16 %v2509
  %v2543 = vpack.c.b16 %v2523, %v2521
  %v2544 = vpack.c.b16 %v2524, %v2522
  %v2545 = vpack.c.b16 %v2527, %v2525
  %v2546 = vpack.c.b16 %v2528, %v2526
  %v2547 = vpack.c.b16 %v2531, %v2529
  %v2548 = vpack.c.b16 %v2532, %v2530
  %v2549 = vpack.c.b16 %v2535, %v2533
  %v2550 = vpack.c.b16 %v2536, %v2534
  %v2551 = vpack.c.b16 %v2539, %v2537
  %v2552 = vpack.c.b16 %v2540, %v2538
  %v2553 = vpack.c.b16 %v2541, %v2541
  %v2554 = vpack.c.b16 %v2542, %v2542
  %vm2565 = vcmask 687104
  %v2567 = vsel %vm2565, %v2493, 0
  %v2570 = vsel %vm2565, %v2494, 0
  %v2573 = vsel %vm2565, %v2495, 0
  %v2576 = vsel %vm2565, %v2496, 0
  %v2579 = vsel %vm2565, %v2497, 0
  %vm2581 = vcmask 1041408
  %v2583 = vsel %vm2581, %v2553, 0
  %v2586 = vsel %vm2581, %v2554, 0
  %2588 = vmatpush.bf16.msra.mxu0 0
  %2589 = vmatpush.bf16.msra.mxu0 0
  %2590 = vmatpush.bf16.msra.mxu0 %v2583
  %2591 = vmatpush.bf16.msra.mxu0 %v2551
  %2592 = vmatpush.bf16.msra.mxu0 %v2549
  %2593 = vmatpush.bf16.msra.mxu0 %v2547
  %2594 = vmatpush.bf16.msra.mxu0 %v2545
  %2595 = vmatpush.bf16.msra.mxu0 %v2543
  %2596 = vmatmul.bf16.gmra.mxu0 %v2567
  %v2597 = vpop.f32.mrf.mxu0
  %v2598 = vadd.f32 0.0, %v2597
  %v2599 = vpop.f32.mrf.mxu0
  %v2600 = vadd.f32 0.0, %v2599
  %2601 = vmatmul.bf16.gmra.mxu0 %v2570
  %v2602 = vpop.f32.mrf.mxu0
  %v2603 = vadd.f32 0.0, %v2602
  %v2604 = vpop.f32.mrf.mxu0
  %v2605 = vadd.f32 0.0, %v2604
  %2606 = vmatmul.bf16.gmra.mxu0 %v2573
  %v2607 = vpop.f32.mrf.mxu0
  %v2608 = vadd.f32 0.0, %v2607
  %v2609 = vpop.f32.mrf.mxu0
  %v2610 = vadd.f32 0.0, %v2609
  %2611 = vmatmul.bf16.gmra.mxu0 %v2576
  %v2612 = vpop.f32.mrf.mxu0
  %v2613 = vadd.f32 0.0, %v2612
  %v2614 = vpop.f32.mrf.mxu0
  %v2615 = vadd.f32 0.0, %v2614
  %2616 = vmatmul.bf16.gmra.mxu0 %v2579
  %v2617 = vpop.f32.mrf.mxu0
  %v2618 = vadd.f32 0.0, %v2617
  %v2619 = vpop.f32.mrf.mxu0
  %v2620 = vadd.f32 0.0, %v2619
  %2621 = vdwg.mxu0
  %2622 = vmatpush.bf16.msra.mxu0 0
  %2623 = vmatpush.bf16.msra.mxu0 0
  %2624 = vmatpush.bf16.msra.mxu0 %v2586
  %2625 = vmatpush.bf16.msra.mxu0 %v2552
  %2626 = vmatpush.bf16.msra.mxu0 %v2550
  %2627 = vmatpush.bf16.msra.mxu0 %v2548
  %2628 = vmatpush.bf16.msra.mxu0 %v2546
  %2629 = vmatpush.bf16.msra.mxu0 %v2544
  %2630 = vmatmul.bf16.gmra.mxu0 %v2567
  %v2631 = vpop.f32.mrf.mxu0
  %v2632 = vadd.f32 0.0, %v2631
  %v2633 = vpop.f32.mrf.mxu0
  %v2634 = vadd.f32 0.0, %v2633
  %2635 = vmatmul.bf16.gmra.mxu0 %v2570
  %v2636 = vpop.f32.mrf.mxu0
  %v2637 = vadd.f32 0.0, %v2636
  %v2638 = vpop.f32.mrf.mxu0
  %v2639 = vadd.f32 0.0, %v2638
  %2640 = vmatmul.bf16.gmra.mxu0 %v2573
  %v2641 = vpop.f32.mrf.mxu0
  %v2642 = vadd.f32 0.0, %v2641
  %v2643 = vpop.f32.mrf.mxu0
  %v2644 = vadd.f32 0.0, %v2643
  %2645 = vmatmul.bf16.gmra.mxu0 %v2576
  %v2646 = vpop.f32.mrf.mxu0
  %v2647 = vadd.f32 0.0, %v2646
  %v2648 = vpop.f32.mrf.mxu0
  %v2649 = vadd.f32 0.0, %v2648
  %2650 = vmatmul.bf16.gmra.mxu0 %v2579
  %v2651 = vpop.f32.mrf.mxu0
  %v2652 = vadd.f32 0.0, %v2651
  %v2653 = vpop.f32.mrf.mxu0
  %v2654 = vadd.f32 0.0, %v2653
  %2655 = vdwg.mxu0
  %v2667 = vunpack.c.l.b16 %v2482
  %v2668 = vunpack.c.h.b16 %v2482
  %v2669 = vunpack.c.l.b16 %v2483
  %v2670 = vunpack.c.h.b16 %v2483
  %v2671 = vunpack.c.l.b16 %v2484
  %v2672 = vunpack.c.h.b16 %v2484
  %v2673 = vunpack.c.l.b16 %v2485
  %v2674 = vunpack.c.h.b16 %v2485
  %v2675 = vunpack.c.l.b16 %v2486
  %v2676 = vunpack.c.h.b16 %v2486
  %v2677 = vunpack.c.l.b16 %v2487
  %v2678 = vunpack.c.h.b16 %v2487
  %v2679 = vunpack.c.l.b16 %v2488
  %v2680 = vunpack.c.h.b16 %v2488
  %v2681 = vunpack.c.l.b16 %v2489
  %v2682 = vunpack.c.h.b16 %v2489
  %v2683 = vunpack.c.l.b16 %v2490
  %v2684 = vunpack.c.h.b16 %v2490
  %v2685 = vunpack.c.l.b16 %v2491
  %v2686 = vunpack.c.h.b16 %v2491
  %v2687 = vunpack.c.l.b16 %v2492
  %v2688 = vunpack.c.h.b16 %v2492
  %v2689 = vpack.c.b16 %v2669, %v2667
  %v2690 = vpack.c.b16 %v2670, %v2668
  %v2691 = vpack.c.b16 %v2673, %v2671
  %v2692 = vpack.c.b16 %v2674, %v2672
  %v2693 = vpack.c.b16 %v2677, %v2675
  %v2694 = vpack.c.b16 %v2678, %v2676
  %v2695 = vpack.c.b16 %v2681, %v2679
  %v2696 = vpack.c.b16 %v2682, %v2680
  %v2697 = vpack.c.b16 %v2685, %v2683
  %v2698 = vpack.c.b16 %v2686, %v2684
  %v2699 = vpack.c.b16 %v2687, %v2687
  %v2700 = vpack.c.b16 %v2688, %v2688
  %v2712 = vsel %vm2565, %v2477, 0
  %v2715 = vsel %vm2565, %v2478, 0
  %v2718 = vsel %vm2565, %v2479, 0
  %v2721 = vsel %vm2565, %v2480, 0
  %v2724 = vsel %vm2565, %v2481, 0
  %v2727 = vsel %vm2581, %v2699, 0
  %v2730 = vsel %vm2581, %v2700, 0
  %2732 = vmatpush.bf16.msra.mxu0 0
  %2733 = vmatpush.bf16.msra.mxu0 0
  %2734 = vmatpush.bf16.msra.mxu0 %v2727
  %2735 = vmatpush.bf16.msra.mxu0 %v2697
  %2736 = vmatpush.bf16.msra.mxu0 %v2695
  %2737 = vmatpush.bf16.msra.mxu0 %v2693
  %2738 = vmatpush.bf16.msra.mxu0 %v2691
  %2739 = vmatpush.bf16.msra.mxu0 %v2689
  %2740 = vmatmul.bf16.gmra.mxu0 %v2712
  %v2741 = vpop.f32.mrf.mxu0
  %v2742 = vadd.f32 %v2598, %v2741
  %v2743 = vpop.f32.mrf.mxu0
  %v2744 = vadd.f32 %v2600, %v2743
  %2745 = vmatmul.bf16.gmra.mxu0 %v2715
  %v2746 = vpop.f32.mrf.mxu0
  %v2747 = vadd.f32 %v2603, %v2746
  %v2748 = vpop.f32.mrf.mxu0
  %v2749 = vadd.f32 %v2605, %v2748
  %2750 = vmatmul.bf16.gmra.mxu0 %v2718
  %v2751 = vpop.f32.mrf.mxu0
  %v2752 = vadd.f32 %v2608, %v2751
  %v2753 = vpop.f32.mrf.mxu0
  %v2754 = vadd.f32 %v2610, %v2753
  %2755 = vmatmul.bf16.gmra.mxu0 %v2721
  %v2756 = vpop.f32.mrf.mxu0
  %v2757 = vadd.f32 %v2613, %v2756
  %v2758 = vpop.f32.mrf.mxu0
  %v2759 = vadd.f32 %v2615, %v2758
  %2760 = vmatmul.bf16.gmra.mxu0 %v2724
  %v2761 = vpop.f32.mrf.mxu0
  %v2762 = vadd.f32 %v2618, %v2761
  %v2763 = vpop.f32.mrf.mxu0
  %v2764 = vadd.f32 %v2620, %v2763
  %2765 = vdwg.mxu0
  %2766 = vmatpush.bf16.msra.mxu0 0
  %2767 = vmatpush.bf16.msra.mxu0 0
  %2768 = vmatpush.bf16.msra.mxu0 %v2730
  %2769 = vmatpush.bf16.msra.mxu0 %v2698
  %2770 = vmatpush.bf16.msra.mxu0 %v2696
  %2771 = vmatpush.bf16.msra.mxu0 %v2694
  %2772 = vmatpush.bf16.msra.mxu0 %v2692
  %2773 = vmatpush.bf16.msra.mxu0 %v2690
  %2774 = vmatmul.bf16.gmra.mxu0 %v2712
  %v2775 = vpop.f32.mrf.mxu0
  %v2776 = vadd.f32 %v2632, %v2775
  %v2777 = vpop.f32.mrf.mxu0
  %v2778 = vadd.f32 %v2634, %v2777
  %2779 = vmatmul.bf16.gmra.mxu0 %v2715
  %v2780 = vpop.f32.mrf.mxu0
  %v2781 = vadd.f32 %v2637, %v2780
  %v2782 = vpop.f32.mrf.mxu0
  %v2783 = vadd.f32 %v2639, %v2782
  %2784 = vmatmul.bf16.gmra.mxu0 %v2718
  %v2785 = vpop.f32.mrf.mxu0
  %v2786 = vadd.f32 %v2642, %v2785
  %v2787 = vpop.f32.mrf.mxu0
  %v2788 = vadd.f32 %v2644, %v2787
  %2789 = vmatmul.bf16.gmra.mxu0 %v2721
  %v2790 = vpop.f32.mrf.mxu0
  %v2791 = vadd.f32 %v2647, %v2790
  %v2792 = vpop.f32.mrf.mxu0
  %v2793 = vadd.f32 %v2649, %v2792
  %2794 = vmatmul.bf16.gmra.mxu0 %v2724
  %v2795 = vpop.f32.mrf.mxu0
  %v2796 = vadd.f32 %v2652, %v2795
  %v2797 = vpop.f32.mrf.mxu0
  %v2798 = vadd.f32 %v2654, %v2797
  %2799 = vdwg.mxu0
  %v2800 = vpack.c.bf16 %v2474, %v2473
  %s2801 = scalar_lea.vmem %s5, 176
  %v2802 = vld [vmem:[%s2801] sm:$0xff]
  %v2803 = vld [vmem:[%s2801 + $0x8] sm:$0xff]
  %v2804 = vld [vmem:[%s2801 + $0x10] sm:$0xff]
  %v2805 = vld [vmem:[%s2801 + $0x18] sm:$0xff]
  %v2806 = vld [vmem:[%s2801 + $0x20] sm:$0xff]
  %v2807 = vld [vmem:[%s2801 + $0x28] sm:$0xff]
  %v2808 = vld [vmem:[%s2801 + $0x30] sm:$0xff]
  %v2809 = vld [vmem:[%s2801 + $0x38] sm:$0xff]
  %v2810 = vld [vmem:[%s2801 + $0x40] sm:$0xff]
  %v2811 = vld [vmem:[%s2801 + $0x48] sm:$0xff]
  %v2812 = vld [vmem:[%s2801 + $0x50] sm:$0x33]
  %v2824 = vunpack.c.l.b16 %v2802
  %v2825 = vunpack.c.h.b16 %v2802
  %v2826 = vunpack.c.l.b16 %v2803
  %v2827 = vunpack.c.h.b16 %v2803
  %v2828 = vunpack.c.l.b16 %v2804
  %v2829 = vunpack.c.h.b16 %v2804
  %v2830 = vunpack.c.l.b16 %v2805
  %v2831 = vunpack.c.h.b16 %v2805
  %v2832 = vunpack.c.l.b16 %v2806
  %v2833 = vunpack.c.h.b16 %v2806
  %v2834 = vunpack.c.l.b16 %v2807
  %v2835 = vunpack.c.h.b16 %v2807
  %v2836 = vunpack.c.l.b16 %v2808
  %v2837 = vunpack.c.h.b16 %v2808
  %v2838 = vunpack.c.l.b16 %v2809
  %v2839 = vunpack.c.h.b16 %v2809
  %v2840 = vunpack.c.l.b16 %v2810
  %v2841 = vunpack.c.h.b16 %v2810
  %v2842 = vunpack.c.l.b16 %v2811
  %v2843 = vunpack.c.h.b16 %v2811
  %v2844 = vunpack.c.l.b16 %v2812
  %v2845 = vunpack.c.h.b16 %v2812
  %v2846 = vpack.c.b16 %v2826, %v2824
  %v2847 = vpack.c.b16 %v2827, %v2825
  %v2848 = vpack.c.b16 %v2830, %v2828
  %v2849 = vpack.c.b16 %v2831, %v2829
  %v2850 = vpack.c.b16 %v2834, %v2832
  %v2851 = vpack.c.b16 %v2835, %v2833
  %v2852 = vpack.c.b16 %v2838, %v2836
  %v2853 = vpack.c.b16 %v2839, %v2837
  %v2854 = vpack.c.b16 %v2842, %v2840
  %v2855 = vpack.c.b16 %v2843, %v2841
  %v2856 = vpack.c.b16 %v2844, %v2844
  %v2857 = vpack.c.b16 %v2845, %v2845
  %v2869 = vsel %vm2565, %v2800, 0
  %v2872 = vsel %vm2581, %v2856, 0
  %v2875 = vsel %vm2581, %v2857, 0
  %2877 = vmatpush.bf16.msra.mxu0 0
  %2878 = vmatpush.bf16.msra.mxu0 0
  %2879 = vmatpush.bf16.msra.mxu0 %v2872
  %2880 = vmatpush.bf16.msra.mxu0 %v2854
  %2881 = vmatpush.bf16.msra.mxu0 %v2852
  %2882 = vmatpush.bf16.msra.mxu0 %v2850
  %2883 = vmatpush.bf16.msra.mxu0 %v2848
  %2884 = vmatpush.bf16.msra.mxu0 %v2846
  %2885 = vmatmul.bf16.gmra.mxu0 %v2715
  %v2886 = vpop.f32.mrf.mxu0
  %v2887 = vadd.f32 0.0, %v2886
  %v2888 = vpop.f32.mrf.mxu0
  %v2889 = vadd.f32 0.0, %v2888
  %2890 = vmatmul.bf16.gmra.mxu0 %v2718
  %v2891 = vpop.f32.mrf.mxu0
  %v2892 = vadd.f32 0.0, %v2891
  %v2893 = vpop.f32.mrf.mxu0
  %v2894 = vadd.f32 0.0, %v2893
  %2895 = vmatmul.bf16.gmra.mxu0 %v2721
  %v2896 = vpop.f32.mrf.mxu0
  %v2897 = vadd.f32 0.0, %v2896
  %v2898 = vpop.f32.mrf.mxu0
  %v2899 = vadd.f32 0.0, %v2898
  %2900 = vmatmul.bf16.gmra.mxu0 %v2724
  %v2901 = vpop.f32.mrf.mxu0
  %v2902 = vadd.f32 0.0, %v2901
  %v2903 = vpop.f32.mrf.mxu0
  %v2904 = vadd.f32 0.0, %v2903
  %2905 = vmatmul.bf16.gmra.mxu0 %v2869
  %v2906 = vpop.f32.mrf.mxu0
  %v2907 = vadd.f32 0.0, %v2906
  %v2908 = vpop.f32.mrf.mxu0
  %v2909 = vadd.f32 0.0, %v2908
  %2910 = vdwg.mxu0
  %2911 = vmatpush.bf16.msra.mxu0 0
  %2912 = vmatpush.bf16.msra.mxu0 0
  %2913 = vmatpush.bf16.msra.mxu0 %v2875
  %2914 = vmatpush.bf16.msra.mxu0 %v2855
  %2915 = vmatpush.bf16.msra.mxu0 %v2853
  %2916 = vmatpush.bf16.msra.mxu0 %v2851
  %2917 = vmatpush.bf16.msra.mxu0 %v2849
  %2918 = vmatpush.bf16.msra.mxu0 %v2847
  %2919 = vmatmul.bf16.gmra.mxu0 %v2715
  %v2920 = vpop.f32.mrf.mxu0
  %v2921 = vadd.f32 0.0, %v2920
  %v2922 = vpop.f32.mrf.mxu0
  %v2923 = vadd.f32 0.0, %v2922
  %2924 = vmatmul.bf16.gmra.mxu0 %v2718
  %v2925 = vpop.f32.mrf.mxu0
  %v2926 = vadd.f32 0.0, %v2925
  %v2927 = vpop.f32.mrf.mxu0
  %v2928 = vadd.f32 0.0, %v2927
  %2929 = vmatmul.bf16.gmra.mxu0 %v2721
  %v2930 = vpop.f32.mrf.mxu0
  %v2931 = vadd.f32 0.0, %v2930
  %v2932 = vpop.f32.mrf.mxu0
  %v2933 = vadd.f32 0.0, %v2932
  %2934 = vmatmul.bf16.gmra.mxu0 %v2724
  %v2935 = vpop.f32.mrf.mxu0
  %v2936 = vadd.f32 0.0, %v2935
  %v2937 = vpop.f32.mrf.mxu0
  %v2938 = vadd.f32 0.0, %v2937
  %2939 = vmatmul.bf16.gmra.mxu0 %v2869
  %v2940 = vpop.f32.mrf.mxu0
  %v2941 = vadd.f32 0.0, %v2940
  %v2942 = vpop.f32.mrf.mxu0
  %v2943 = vadd.f32 0.0, %v2942
  %2944 = vdwg.mxu0
  %v2945 = vadd.f32 %v2742, %v2887
  %v2946 = vadd.f32 %v2776, %v2921
  %v2947 = vadd.f32 %v2744, %v2889
  %v2948 = vadd.f32 %v2778, %v2923
  %v2949 = vadd.f32 %v2747, %v2892
  %v2950 = vadd.f32 %v2781, %v2926
  %v2951 = vadd.f32 %v2749, %v2894
  %v2952 = vadd.f32 %v2783, %v2928
  %v2953 = vadd.f32 %v2752, %v2897
  %v2954 = vadd.f32 %v2786, %v2931
  %v2955 = vadd.f32 %v2754, %v2899
  %v2956 = vadd.f32 %v2788, %v2933
  %v2957 = vadd.f32 %v2757, %v2902
  %v2958 = vadd.f32 %v2791, %v2936
  %v2959 = vadd.f32 %v2759, %v2904
  %v2960 = vadd.f32 %v2793, %v2938
  %v2961 = vadd.f32 %v2762, %v2907
  %v2962 = vadd.f32 %v2796, %v2941
  %v2963 = vadd.f32 %v2764, %v2909
  %v2964 = vadd.f32 %v2798, %v2943
  %v2965 = vpack.c.bf16 %v2475, %v2474
  %s2966 = scalar_lea.vmem %s5, 264
  %v2967 = vld [vmem:[%s2966] sm:$0xff]
  %v2968 = vld [vmem:[%s2966 + $0x8] sm:$0xff]
  %v2969 = vld [vmem:[%s2966 + $0x10] sm:$0xff]
  %v2970 = vld [vmem:[%s2966 + $0x18] sm:$0xff]
  %v2971 = vld [vmem:[%s2966 + $0x20] sm:$0xff]
  %v2972 = vld [vmem:[%s2966 + $0x28] sm:$0xff]
  %v2973 = vld [vmem:[%s2966 + $0x30] sm:$0xff]
  %v2974 = vld [vmem:[%s2966 + $0x38] sm:$0xff]
  %v2975 = vld [vmem:[%s2966 + $0x40] sm:$0xff]
  %v2976 = vld [vmem:[%s2966 + $0x48] sm:$0xff]
  %v2977 = vld [vmem:[%s2966 + $0x50] sm:$0x33]
  %v2989 = vunpack.c.l.b16 %v2967
  %v2990 = vunpack.c.h.b16 %v2967
  %v2991 = vunpack.c.l.b16 %v2968
  %v2992 = vunpack.c.h.b16 %v2968
  %v2993 = vunpack.c.l.b16 %v2969
  %v2994 = vunpack.c.h.b16 %v2969
  %v2995 = vunpack.c.l.b16 %v2970
  %v2996 = vunpack.c.h.b16 %v2970
  %v2997 = vunpack.c.l.b16 %v2971
  %v2998 = vunpack.c.h.b16 %v2971
  %v2999 = vunpack.c.l.b16 %v2972
  %v3000 = vunpack.c.h.b16 %v2972
  %v3001 = vunpack.c.l.b16 %v2973
  %v3002 = vunpack.c.h.b16 %v2973
  %v3003 = vunpack.c.l.b16 %v2974
  %v3004 = vunpack.c.h.b16 %v2974
  %v3005 = vunpack.c.l.b16 %v2975
  %v3006 = vunpack.c.h.b16 %v2975
  %v3007 = vunpack.c.l.b16 %v2976
  %v3008 = vunpack.c.h.b16 %v2976
  %v3009 = vunpack.c.l.b16 %v2977
  %v3010 = vunpack.c.h.b16 %v2977
  %v3011 = vpack.c.b16 %v2991, %v2989
  %v3012 = vpack.c.b16 %v2992, %v2990
  %v3013 = vpack.c.b16 %v2995, %v2993
  %v3014 = vpack.c.b16 %v2996, %v2994
  %v3015 = vpack.c.b16 %v2999, %v2997
  %v3016 = vpack.c.b16 %v3000, %v2998
  %v3017 = vpack.c.b16 %v3003, %v3001
  %v3018 = vpack.c.b16 %v3004, %v3002
  %v3019 = vpack.c.b16 %v3007, %v3005
  %v3020 = vpack.c.b16 %v3008, %v3006
  %v3021 = vpack.c.b16 %v3009, %v3009
  %v3022 = vpack.c.b16 %v3010, %v3010
  %v3034 = vsel %vm2565, %v2965, 0
  %v3037 = vsel %vm2581, %v3021, 0
  %v3040 = vsel %vm2581, %v3022, 0
  %3042 = vmatpush.bf16.msra.mxu0 0
  %3043 = vmatpush.bf16.msra.mxu0 0
  %3044 = vmatpush.bf16.msra.mxu0 %v3037
  %3045 = vmatpush.bf16.msra.mxu0 %v3019
  %3046 = vmatpush.bf16.msra.mxu0 %v3017
  %3047 = vmatpush.bf16.msra.mxu0 %v3015
  %3048 = vmatpush.bf16.msra.mxu0 %v3013
  %3049 = vmatpush.bf16.msra.mxu0 %v3011
  %3050 = vmatmul.bf16.gmra.mxu0 %v2570
  %v3051 = vpop.f32.mrf.mxu0
  %v3052 = vadd.f32 0.0, %v3051
  %v3053 = vpop.f32.mrf.mxu0
  %v3054 = vadd.f32 0.0, %v3053
  %3055 = vmatmul.bf16.gmra.mxu0 %v2573
  %v3056 = vpop.f32.mrf.mxu0
  %v3057 = vadd.f32 0.0, %v3056
  %v3058 = vpop.f32.mrf.mxu0
  %v3059 = vadd.f32 0.0, %v3058
  %3060 = vmatmul.bf16.gmra.mxu0 %v2576
  %v3061 = vpop.f32.mrf.mxu0
  %v3062 = vadd.f32 0.0, %v3061
  %v3063 = vpop.f32.mrf.mxu0
  %v3064 = vadd.f32 0.0, %v3063
  %3065 = vmatmul.bf16.gmra.mxu0 %v2579
  %v3066 = vpop.f32.mrf.mxu0
  %v3067 = vadd.f32 0.0, %v3066
  %v3068 = vpop.f32.mrf.mxu0
  %v3069 = vadd.f32 0.0, %v3068
  %3070 = vmatmul.bf16.gmra.mxu0 %v3034
  %v3071 = vpop.f32.mrf.mxu0
  %v3072 = vadd.f32 0.0, %v3071
  %v3073 = vpop.f32.mrf.mxu0
  %v3074 = vadd.f32 0.0, %v3073
  %3075 = vdwg.mxu0
  %3076 = vmatpush.bf16.msra.mxu0 0
  %3077 = vmatpush.bf16.msra.mxu0 0
  %3078 = vmatpush.bf16.msra.mxu0 %v3040
  %3079 = vmatpush.bf16.msra.mxu0 %v3020
  %3080 = vmatpush.bf16.msra.mxu0 %v3018
  %3081 = vmatpush.bf16.msra.mxu0 %v3016
  %3082 = vmatpush.bf16.msra.mxu0 %v3014
  %3083 = vmatpush.bf16.msra.mxu0 %v3012
  %3084 = vmatmul.bf16.gmra.mxu0 %v2570
  %v3085 = vpop.f32.mrf.mxu0
  %v3086 = vadd.f32 0.0, %v3085
  %v3087 = vpop.f32.mrf.mxu0
  %v3088 = vadd.f32 0.0, %v3087
  %3089 = vmatmul.bf16.gmra.mxu0 %v2573
  %v3090 = vpop.f32.mrf.mxu0
  %v3091 = vadd.f32 0.0, %v3090
  %v3092 = vpop.f32.mrf.mxu0
  %v3093 = vadd.f32 0.0, %v3092
  %3094 = vmatmul.bf16.gmra.mxu0 %v2576
  %v3095 = vpop.f32.mrf.mxu0
  %v3096 = vadd.f32 0.0, %v3095
  %v3097 = vpop.f32.mrf.mxu0
  %v3098 = vadd.f32 0.0, %v3097
  %3099 = vmatmul.bf16.gmra.mxu0 %v2579
  %v3100 = vpop.f32.mrf.mxu0
  %v3101 = vadd.f32 0.0, %v3100
  %v3102 = vpop.f32.mrf.mxu0
  %v3103 = vadd.f32 0.0, %v3102
  %3104 = vmatmul.bf16.gmra.mxu0 %v3034
  %v3105 = vpop.f32.mrf.mxu0
  %v3106 = vadd.f32 0.0, %v3105
  %v3107 = vpop.f32.mrf.mxu0
  %v3108 = vadd.f32 0.0, %v3107
  %3109 = vdwg.mxu0
  %v3110 = vadd.f32 %v2945, %v3052
  %v3111 = vadd.f32 %v2946, %v3086
  %v3112 = vadd.f32 %v2947, %v3054
  %v3113 = vadd.f32 %v2948, %v3088
  %v3114 = vadd.f32 %v2949, %v3057
  %v3115 = vadd.f32 %v2950, %v3091
  %v3116 = vadd.f32 %v2951, %v3059
  %v3117 = vadd.f32 %v2952, %v3093
  %v3118 = vadd.f32 %v2953, %v3062
  %v3119 = vadd.f32 %v2954, %v3096
  %v3120 = vadd.f32 %v2955, %v3064
  %v3121 = vadd.f32 %v2956, %v3098
  %v3122 = vadd.f32 %v2957, %v3067
  %v3123 = vadd.f32 %v2958, %v3101
  %v3124 = vadd.f32 %v2959, %v3069
  %v3125 = vadd.f32 %v2960, %v3103
  %v3126 = vadd.f32 %v2961, %v3072
  %v3127 = vadd.f32 %v2962, %v3106
  %v3128 = vadd.f32 %v2963, %v3074
  %v3129 = vadd.f32 %v2964, %v3108
  %v3130 = vpack.c.bf16 %v2476, %v2475
  %s3131 = scalar_lea.vmem %s5, 352
  %v3132 = vld [vmem:[%s3131] sm:$0xff]
  %v3133 = vld [vmem:[%s3131 + $0x8] sm:$0xff]
  %v3134 = vld [vmem:[%s3131 + $0x10] sm:$0xff]
  %v3135 = vld [vmem:[%s3131 + $0x18] sm:$0xff]
  %v3136 = vld [vmem:[%s3131 + $0x20] sm:$0xff]
  %v3137 = vld [vmem:[%s3131 + $0x28] sm:$0xff]
  %v3138 = vld [vmem:[%s3131 + $0x30] sm:$0xff]
  %v3139 = vld [vmem:[%s3131 + $0x38] sm:$0xff]
  %v3140 = vld [vmem:[%s3131 + $0x40] sm:$0xff]
  %v3141 = vld [vmem:[%s3131 + $0x48] sm:$0xff]
  %v3142 = vld [vmem:[%s3131 + $0x50] sm:$0x33]
  %v3154 = vunpack.c.l.b16 %v3132
  %v3155 = vunpack.c.h.b16 %v3132
  %v3156 = vunpack.c.l.b16 %v3133
  %v3157 = vunpack.c.h.b16 %v3133
  %v3158 = vunpack.c.l.b16 %v3134
  %v3159 = vunpack.c.h.b16 %v3134
  %v3160 = vunpack.c.l.b16 %v3135
  %v3161 = vunpack.c.h.b16 %v3135
  %v3162 = vunpack.c.l.b16 %v3136
  %v3163 = vunpack.c.h.b16 %v3136
  %v3164 = vunpack.c.l.b16 %v3137
  %v3165 = vunpack.c.h.b16 %v3137
  %v3166 = vunpack.c.l.b16 %v3138
  %v3167 = vunpack.c.h.b16 %v3138
  %v3168 = vunpack.c.l.b16 %v3139
  %v3169 = vunpack.c.h.b16 %v3139
  %v3170 = vunpack.c.l.b16 %v3140
  %v3171 = vunpack.c.h.b16 %v3140
  %v3172 = vunpack.c.l.b16 %v3141
  %v3173 = vunpack.c.h.b16 %v3141
  %v3174 = vunpack.c.l.b16 %v3142
  %v3175 = vunpack.c.h.b16 %v3142
  %v3176 = vpack.c.b16 %v3156, %v3154
  %v3177 = vpack.c.b16 %v3157, %v3155
  %v3178 = vpack.c.b16 %v3160, %v3158
  %v3179 = vpack.c.b16 %v3161, %v3159
  %v3180 = vpack.c.b16 %v3164, %v3162
  %v3181 = vpack.c.b16 %v3165, %v3163
  %v3182 = vpack.c.b16 %v3168, %v3166
  %v3183 = vpack.c.b16 %v3169, %v3167
  %v3184 = vpack.c.b16 %v3172, %v3170
  %v3185 = vpack.c.b16 %v3173, %v3171
  %v3186 = vpack.c.b16 %v3174, %v3174
  %v3187 = vpack.c.b16 %v3175, %v3175
  %v3199 = vsel %vm2565, %v3130, 0
  %v3202 = vsel %vm2581, %v3186, 0
  %v3205 = vsel %vm2581, %v3187, 0
  %3207 = vmatpush.bf16.msra.mxu0 0
  %3208 = vmatpush.bf16.msra.mxu0 0
  %3209 = vmatpush.bf16.msra.mxu0 %v3202
  %3210 = vmatpush.bf16.msra.mxu0 %v3184
  %3211 = vmatpush.bf16.msra.mxu0 %v3182
  %3212 = vmatpush.bf16.msra.mxu0 %v3180
  %3213 = vmatpush.bf16.msra.mxu0 %v3178
  %3214 = vmatpush.bf16.msra.mxu0 %v3176
  %3215 = vmatmul.bf16.gmra.mxu0 %v2718
  %v3216 = vpop.f32.mrf.mxu0
  %v3217 = vadd.f32 0.0, %v3216
  %v3218 = vpop.f32.mrf.mxu0
  %v3219 = vadd.f32 0.0, %v3218
  %3220 = vmatmul.bf16.gmra.mxu0 %v2721
  %v3221 = vpop.f32.mrf.mxu0
  %v3222 = vadd.f32 0.0, %v3221
  %v3223 = vpop.f32.mrf.mxu0
  %v3224 = vadd.f32 0.0, %v3223
  %3225 = vmatmul.bf16.gmra.mxu0 %v2724
  %v3226 = vpop.f32.mrf.mxu0
  %v3227 = vadd.f32 0.0, %v3226
  %v3228 = vpop.f32.mrf.mxu0
  %v3229 = vadd.f32 0.0, %v3228
  %3230 = vmatmul.bf16.gmra.mxu0 %v2869
  %v3231 = vpop.f32.mrf.mxu0
  %v3232 = vadd.f32 0.0, %v3231
  %v3233 = vpop.f32.mrf.mxu0
  %v3234 = vadd.f32 0.0, %v3233
  %3235 = vmatmul.bf16.gmra.mxu0 %v3199
  %v3236 = vpop.f32.mrf.mxu0
  %v3237 = vadd.f32 0.0, %v3236
  %v3238 = vpop.f32.mrf.mxu0
  %v3239 = vadd.f32 0.0, %v3238
  %3240 = vdwg.mxu0
  %3241 = vmatpush.bf16.msra.mxu0 0
  %3242 = vmatpush.bf16.msra.mxu0 0
  %3243 = vmatpush.bf16.msra.mxu0 %v3205
  %3244 = vmatpush.bf16.msra.mxu0 %v3185
  %3245 = vmatpush.bf16.msra.mxu0 %v3183
  %3246 = vmatpush.bf16.msra.mxu0 %v3181
  %3247 = vmatpush.bf16.msra.mxu0 %v3179
  %3248 = vmatpush.bf16.msra.mxu0 %v3177
  %3249 = vmatmul.bf16.gmra.mxu0 %v2718
  %v3250 = vpop.f32.mrf.mxu0
  %v3251 = vadd.f32 0.0, %v3250
  %v3252 = vpop.f32.mrf.mxu0
  %v3253 = vadd.f32 0.0, %v3252
  %3254 = vmatmul.bf16.gmra.mxu0 %v2721
  %v3255 = vpop.f32.mrf.mxu0
  %v3256 = vadd.f32 0.0, %v3255
  %v3257 = vpop.f32.mrf.mxu0
  %v3258 = vadd.f32 0.0, %v3257
  %3259 = vmatmul.bf16.gmra.mxu0 %v2724
  %v3260 = vpop.f32.mrf.mxu0
  %v3261 = vadd.f32 0.0, %v3260
  %v3262 = vpop.f32.mrf.mxu0
  %v3263 = vadd.f32 0.0, %v3262
  %3264 = vmatmul.bf16.gmra.mxu0 %v2869
  %v3265 = vpop.f32.mrf.mxu0
  %v3266 = vadd.f32 0.0, %v3265
  %v3267 = vpop.f32.mrf.mxu0
  %v3268 = vadd.f32 0.0, %v3267
  %3269 = vmatmul.bf16.gmra.mxu0 %v3199
  %v3270 = vpop.f32.mrf.mxu0
  %v3271 = vadd.f32 0.0, %v3270
  %v3272 = vpop.f32.mrf.mxu0
  %v3273 = vadd.f32 0.0, %v3272
  %3274 = vdwg.mxu0
  %v3275 = vadd.f32 %v3110, %v3217
  %v3276 = vadd.f32 %v3111, %v3251
  %v3277 = vadd.f32 %v3112, %v3219
  %v3278 = vadd.f32 %v3113, %v3253
  %v3279 = vadd.f32 %v3114, %v3222
  %v3280 = vadd.f32 %v3115, %v3256
  %v3281 = vadd.f32 %v3116, %v3224
  %v3282 = vadd.f32 %v3117, %v3258
  %v3283 = vadd.f32 %v3118, %v3227
  %v3284 = vadd.f32 %v3119, %v3261
  %v3285 = vadd.f32 %v3120, %v3229
  %v3286 = vadd.f32 %v3121, %v3263
  %v3287 = vadd.f32 %v3122, %v3232
  %v3288 = vadd.f32 %v3123, %v3266
  %v3289 = vadd.f32 %v3124, %v3234
  %v3290 = vadd.f32 %v3125, %v3268
  %v3291 = vadd.f32 %v3126, %v3237
  %v3292 = vadd.f32 %v3127, %v3271
  %v3293 = vadd.f32 %v3128, %v3239
  %v3294 = vadd.f32 %v3129, %v3273
  %v3295 = vld [vmem:[%s6] sm:$0x3]
  %v3297 = vperm.slane %v3295, 0
  %v3298 = vperm.slane %v3295, 1
  %v3301 = vadd.f32 %v3275, %v3297
  %v3302 = vadd.f32 %v3276, %v3298
  %v3303 = vadd.f32 %v3277, %v3297
  %v3304 = vadd.f32 %v3278, %v3298
  %v3305 = vadd.f32 %v3279, %v3297
  %v3306 = vadd.f32 %v3280, %v3298
  %v3307 = vadd.f32 %v3281, %v3297
  %v3308 = vadd.f32 %v3282, %v3298
  %v3309 = vadd.f32 %v3283, %v3297
  %v3310 = vadd.f32 %v3284, %v3298
  %v3311 = vadd.f32 %v3285, %v3297
  %v3312 = vadd.f32 %v3286, %v3298
  %v3313 = vadd.f32 %v3287, %v3297
  %v3314 = vadd.f32 %v3288, %v3298
  %v3315 = vadd.f32 %v3289, %v3297
  %v3316 = vadd.f32 %v3290, %v3298
  %v3317 = vadd.f32 %v3291, %v3297
  %v3318 = vadd.f32 %v3292, %v3298
  %v3319 = vadd.f32 %v3293, %v3297
  %v3320 = vadd.f32 %v3294, %v3298
  %v3321 = vmax.f32 %v3301, 0.0
  %v3322 = vmax.f32 %v3302, 0.0
  %v3323 = vmax.f32 %v3303, 0.0
  %v3324 = vmax.f32 %v3304, 0.0
  %v3325 = vmax.f32 %v3305, 0.0
  %v3326 = vmax.f32 %v3306, 0.0
  %v3327 = vmax.f32 %v3307, 0.0
  %v3328 = vmax.f32 %v3308, 0.0
  %v3329 = vmax.f32 %v3309, 0.0
  %v3330 = vmax.f32 %v3310, 0.0
  %v3331 = vmax.f32 %v3311, 0.0
  %v3332 = vmax.f32 %v3312, 0.0
  %v3333 = vmax.f32 %v3313, 0.0
  %v3334 = vmax.f32 %v3314, 0.0
  %v3335 = vmax.f32 %v3315, 0.0
  %v3336 = vmax.f32 %v3316, 0.0
  %v3337 = vmax.f32 %v3317, 0.0
  %v3338 = vmax.f32 %v3318, 0.0
  %v3339 = vmax.f32 %v3319, 0.0
  %v3340 = vmax.f32 %v3320, 0.0
  %v3341 = vpack.c.bf16 %v3323, %v3321
  %v3342 = vpack.c.bf16 %v3324, %v3322
  %v3343 = vpack.c.bf16 %v3327, %v3325
  %v3344 = vpack.c.bf16 %v3328, %v3326
  %v3345 = vpack.c.bf16 %v3331, %v3329
  %v3346 = vpack.c.bf16 %v3332, %v3330
  %v3347 = vpack.c.bf16 %v3335, %v3333
  %v3348 = vpack.c.bf16 %v3336, %v3334
  %v3349 = vpack.c.bf16 %v3339, %v3337
  %v3350 = vpack.c.bf16 %v3340, %v3338
  %v3351 = vld [vmem:[%s7] sm:$0xf]
  %v3352 = vld [vmem:[%s7 + $0x4] sm:$0xf]
  %v3353 = vld [vmem:[%s7 + $0x8] sm:$0xf]
  %v3354 = vld [vmem:[%s7 + $0xc] sm:$0xf]
  %v3355 = vld [vmem:[%s7 + $0x10] sm:$0xf]
  %v3361 = vunpack.c.l.b16 %v3351
  %v3362 = vunpack.c.l.b16 %v3352
  %v3363 = vunpack.c.l.b16 %v3353
  %v3364 = vunpack.c.l.b16 %v3354
  %v3365 = vunpack.c.l.b16 %v3355
  %v3366 = vpack.c.b16 %v3362, %v3361
  %v3367 = vpack.c.b16 %v3364, %v3363
  %v3368 = vpack.c.b16 %v3365, %v3365
  %vm3369 = vcmask 654336
  %v3371 = vsel %vm3369, %v3366, 0
  %v3374 = vsel %vm3369, %v3367, 0
  %v3377 = vsel %vm3369, %v3368, 0
  %3379 = vmatpush.bf16.msra.mxu0 0
  %3380 = vmatpush.bf16.msra.mxu0 0
  %3381 = vmatpush.bf16.msra.mxu0 0
  %3382 = vmatpush.bf16.msra.mxu0 %v3349
  %3383 = vmatpush.bf16.msra.mxu0 %v3347
  %3384 = vmatpush.bf16.msra.mxu0 %v3345
  %3385 = vmatpush.bf16.msra.mxu0 %v3343
  %3386 = vmatpush.bf16.msra.mxu0 %v3341
  %3387 = vmatmul.bf16.gmra.mxu0 %v3371
  %v3388 = vpop.f32.mrf.mxu0
  %v3389 = vadd.f32 0.0, %v3388
  %v3390 = vpop.f32.mrf.mxu0
  %v3391 = vadd.f32 0.0, %v3390
  %3392 = vmatmul.bf16.gmra.mxu0 %v3374
  %v3393 = vpop.f32.mrf.mxu0
  %v3394 = vadd.f32 0.0, %v3393
  %v3395 = vpop.f32.mrf.mxu0
  %v3396 = vadd.f32 0.0, %v3395
  %3397 = vmatmul.bf16.gmra.mxu0 %v3377
  %v3398 = vpop.f32.mrf.mxu0
  %v3399 = vadd.f32 0.0, %v3398
  %v3400 = vpop.f32.mrf.mxu0
  %3401 = vdwg.mxu0
  %3402 = vmatpush.bf16.msra.mxu0 0
  %3403 = vmatpush.bf16.msra.mxu0 0
  %3404 = vmatpush.bf16.msra.mxu0 0
  %3405 = vmatpush.bf16.msra.mxu0 %v3350
  %3406 = vmatpush.bf16.msra.mxu0 %v3348
  %3407 = vmatpush.bf16.msra.mxu0 %v3346
  %3408 = vmatpush.bf16.msra.mxu0 %v3344
  %3409 = vmatpush.bf16.msra.mxu0 %v3342
  %3410 = vmatmul.bf16.gmra.mxu0 %v3371
  %v3411 = vpop.f32.mrf.mxu0
  %v3412 = vadd.f32 0.0, %v3411
  %v3413 = vpop.f32.mrf.mxu0
  %v3414 = vadd.f32 0.0, %v3413
  %3415 = vmatmul.bf16.gmra.mxu0 %v3374
  %v3416 = vpop.f32.mrf.mxu0
  %v3417 = vadd.f32 0.0, %v3416
  %v3418 = vpop.f32.mrf.mxu0
  %v3419 = vadd.f32 0.0, %v3418
  %3420 = vmatmul.bf16.gmra.mxu0 %v3377
  %v3421 = vpop.f32.mrf.mxu0
  %v3422 = vadd.f32 0.0, %v3421
  %v3423 = vpop.f32.mrf.mxu0
  %3424 = vdwg.mxu0
  %s3425 = scalar_lea.vmem %s7, 20
  %v3426 = vld [vmem:[%s3425] sm:$0xf]
  %v3427 = vld [vmem:[%s3425 + $0x4] sm:$0xf]
  %v3428 = vld [vmem:[%s3425 + $0x8] sm:$0xf]
  %v3429 = vld [vmem:[%s3425 + $0xc] sm:$0xf]
  %v3430 = vld [vmem:[%s3425 + $0x10] sm:$0xf]
  %v3436 = vunpack.c.l.b16 %v3426
  %v3437 = vunpack.c.l.b16 %v3427
  %v3438 = vunpack.c.l.b16 %v3428
  %v3439 = vunpack.c.l.b16 %v3429
  %v3440 = vunpack.c.l.b16 %v3430
  %v3441 = vpack.c.b16 %v3437, %v3436
  %v3442 = vpack.c.b16 %v3439, %v3438
  %v3443 = vpack.c.b16 %v3440, %v3440
  %v3445 = vsel %vm3369, %v3441, 0
  %v3448 = vsel %vm3369, %v3442, 0
  %v3451 = vsel %vm3369, %v3443, 0
  %3453 = vmatpush.bf16.msra.mxu0 0
  %3454 = vmatpush.bf16.msra.mxu0 0
  %3455 = vmatpush.bf16.msra.mxu0 0
  %3456 = vmatpush.bf16.msra.mxu0 %v3349
  %3457 = vmatpush.bf16.msra.mxu0 %v3347
  %3458 = vmatpush.bf16.msra.mxu0 %v3345
  %3459 = vmatpush.bf16.msra.mxu0 %v3343
  %3460 = vmatpush.bf16.msra.mxu0 %v3341
  %3461 = vmatmul.bf16.gmra.mxu0 %v3445
  %v3462 = vpop.f32.mrf.mxu0
  %v3463 = vadd.f32 0.0, %v3462
  %v3464 = vpop.f32.mrf.mxu0
  %v3465 = vadd.f32 0.0, %v3464
  %3466 = vmatmul.bf16.gmra.mxu0 %v3448
  %v3467 = vpop.f32.mrf.mxu0
  %v3468 = vadd.f32 0.0, %v3467
  %v3469 = vpop.f32.mrf.mxu0
  %v3470 = vadd.f32 0.0, %v3469
  %3471 = vmatmul.bf16.gmra.mxu0 %v3451
  %v3472 = vpop.f32.mrf.mxu0
  %v3473 = vadd.f32 0.0, %v3472
  %v3474 = vpop.f32.mrf.mxu0
  %3475 = vdwg.mxu0
  %3476 = vmatpush.bf16.msra.mxu0 0
  %3477 = vmatpush.bf16.msra.mxu0 0
  %3478 = vmatpush.bf16.msra.mxu0 0
  %3479 = vmatpush.bf16.msra.mxu0 %v3350
  %3480 = vmatpush.bf16.msra.mxu0 %v3348
  %3481 = vmatpush.bf16.msra.mxu0 %v3346
  %3482 = vmatpush.bf16.msra.mxu0 %v3344
  %3483 = vmatpush.bf16.msra.mxu0 %v3342
  %3484 = vmatmul.bf16.gmra.mxu0 %v3445
  %v3485 = vpop.f32.mrf.mxu0
  %v3486 = vadd.f32 0.0, %v3485
  %v3487 = vpop.f32.mrf.mxu0
  %v3488 = vadd.f32 0.0, %v3487
  %3489 = vmatmul.bf16.gmra.mxu0 %v3448
  %v3490 = vpop.f32.mrf.mxu0
  %v3491 = vadd.f32 0.0, %v3490
  %v3492 = vpop.f32.mrf.mxu0
  %v3493 = vadd.f32 0.0, %v3492
  %3494 = vmatmul.bf16.gmra.mxu0 %v3451
  %v3495 = vpop.f32.mrf.mxu0
  %v3496 = vadd.f32 0.0, %v3495
  %v3497 = vpop.f32.mrf.mxu0
  %3498 = vdwg.mxu0
  %v3499 = vmax.f32 %v3389, %v3463
  %v3500 = vmax.f32 %v3412, %v3486
  %v3501 = vmax.f32 %v3391, %v3465
  %v3502 = vmax.f32 %v3414, %v3488
  %v3503 = vmax.f32 %v3394, %v3468
  %v3504 = vmax.f32 %v3417, %v3491
  %v3505 = vmax.f32 %v3396, %v3470
  %v3506 = vmax.f32 %v3419, %v3493
  %v3507 = vmax.f32 %v3399, %v3473
  %v3508 = vmax.f32 %v3422, %v3496
  %v3509 = vpack.c.bf16 %v3501, %v3499
  %v3510 = vpack.c.bf16 %v3502, %v3500
  %v3511 = vpack.c.bf16 %v3505, %v3503
  %v3512 = vpack.c.bf16 %v3506, %v3504
  %v3513 = vpack.c.bf16 %v3507, %v3507
  %v3514 = vpack.c.bf16 %v3508, %v3508
  %v3515 = vld [vmem:[%s8] sm:$0xf]
  %v3516 = vld [vmem:[%s8 + $0x4] sm:$0xf]
  %v3517 = vld [vmem:[%s8 + $0x8] sm:$0xf]
  %v3518 = vld [vmem:[%s8 + $0xc] sm:$0xf]
  %v3519 = vld [vmem:[%s8 + $0x10] sm:$0xf]
  %v3520 = vld [vmem:[%s8 + $0x14] sm:$0xf]
  %v3521 = vld [vmem:[%s8 + $0x18] sm:$0xf]
  %v3522 = vld [vmem:[%s8 + $0x1c] sm:$0xf]
  %v3523 = vld [vmem:[%s8 + $0x20] sm:$0xf]
  %v3524 = vld [vmem:[%s8 + $0x24] sm:$0xf]
  %v3525 = vld [vmem:[%s8 + $0x28] sm:$0xf]
  %v3526 = vld [vmem:[%s8 + $0x2c] sm:$0xf]
  %v3527 = vld [vmem:[%s8 + $0x30] sm:$0xf]
  %v3528 = vld [vmem:[%s8 + $0x34] sm:$0xf]
  %v3529 = vld [vmem:[%s8 + $0x38] sm:$0xf]
  %v3530 = vld [vmem:[%s8 + $0x3c] sm:$0xf]
  %v3531 = vld [vmem:[%s8 + $0x40] sm:$0xf]
  %v3532 = vld [vmem:[%s8 + $0x44] sm:$0xf]
  %v3533 = vld [vmem:[%s8 + $0x48] sm:$0xf]
  %v3534 = vld [vmem:[%s8 + $0x4c] sm:$0xf]
  %v3555 = vunpack.c.l.b16 %v3515
  %v3556 = vunpack.c.l.b16 %v3516
  %v3557 = vunpack.c.l.b16 %v3517
  %v3558 = vunpack.c.l.b16 %v3518
  %v3559 = vunpack.c.l.b16 %v3519
  %v3560 = vunpack.c.l.b16 %v3520
  %v3561 = vunpack.c.l.b16 %v3521
  %v3562 = vunpack.c.l.b16 %v3522
  %v3563 = vunpack.c.l.b16 %v3523
  %v3564 = vunpack.c.l.b16 %v3524
  %v3565 = vunpack.c.l.b16 %v3525
  %v3566 = vunpack.c.l.b16 %v3526
  %v3567 = vunpack.c.l.b16 %v3527
  %v3568 = vunpack.c.l.b16 %v3528
  %v3569 = vunpack.c.l.b16 %v3529
  %v3570 = vunpack.c.l.b16 %v3530
  %v3571 = vunpack.c.l.b16 %v3531
  %v3572 = vunpack.c.l.b16 %v3532
  %v3573 = vunpack.c.l.b16 %v3533
  %v3574 = vunpack.c.l.b16 %v3534
  %v3575 = vpack.c.b16 %v3556, %v3555
  %v3576 = vpack.c.b16 %v3558, %v3557
  %v3577 = vpack.c.b16 %v3560, %v3559
  %v3578 = vpack.c.b16 %v3562, %v3561
  %v3579 = vpack.c.b16 %v3564, %v3563
  %v3580 = vpack.c.b16 %v3566, %v3565
  %v3581 = vpack.c.b16 %v3568, %v3567
  %v3582 = vpack.c.b16 %v3570, %v3569
  %v3583 = vpack.c.b16 %v3572, %v3571
  %v3584 = vpack.c.b16 %v3574, %v3573
  %vm3595 = vcmask 261120
  %v3597 = vsel %vm3595, %v3510, 0
  %v3600 = vsel %vm3595, %v3512, 0
  %v3603 = vsel %vm3595, %v3514, 0
  %3605 = vmatpush.bf16.msra.mxu0 %v3582
  %3606 = vmatpush.bf16.msra.mxu0 %v3581
  %3607 = vmatpush.bf16.msra.mxu0 %v3580
  %3608 = vmatpush.bf16.msra.mxu0 %v3579
  %3609 = vmatpush.bf16.msra.mxu0 %v3578
  %3610 = vmatpush.bf16.msra.mxu0 %v3577
  %3611 = vmatpush.bf16.msra.mxu0 %v3576
  %3612 = vmatpush.bf16.msra.mxu0 %v3575
  %3613 = vmatmul.bf16.gmra.mxu0 %v3509
  %v3614 = vpop.f32.mrf.mxu0
  %v3615 = vadd.f32 0.0, %v3614
  %v3616 = vpop.f32.mrf.mxu0
  %v3617 = vadd.f32 0.0, %v3616
  %3618 = vmatmul.bf16.gmra.mxu0 %v3511
  %v3619 = vpop.f32.mrf.mxu0
  %v3620 = vadd.f32 0.0, %v3619
  %v3621 = vpop.f32.mrf.mxu0
  %v3622 = vadd.f32 0.0, %v3621
  %3623 = vmatmul.bf16.gmra.mxu0 %v3513
  %v3624 = vpop.f32.mrf.mxu0
  %v3625 = vadd.f32 0.0, %v3624
  %v3626 = vpop.f32.mrf.mxu0
  %3627 = vdwg.mxu0
  %3628 = vmatpush.bf16.msra.mxu0 0
  %3629 = vmatpush.bf16.msra.mxu0 0
  %3630 = vmatpush.bf16.msra.mxu0 0
  %3631 = vmatpush.bf16.msra.mxu0 0
  %3632 = vmatpush.bf16.msra.mxu0 0
  %3633 = vmatpush.bf16.msra.mxu0 0
  %3634 = vmatpush.bf16.msra.mxu0 %v3584
  %3635 = vmatpush.bf16.msra.mxu0 %v3583
  %3636 = vmatmul.bf16.gmra.mxu0 %v3597
  %v3637 = vpop.f32.mrf.mxu0
  %v3638 = vadd.f32 %v3615, %v3637
  %v3639 = vpop.f32.mrf.mxu0
  %v3640 = vadd.f32 %v3617, %v3639
  %3641 = vmatmul.bf16.gmra.mxu0 %v3600
  %v3642 = vpop.f32.mrf.mxu0
  %v3643 = vadd.f32 %v3620, %v3642
  %v3644 = vpop.f32.mrf.mxu0
  %v3645 = vadd.f32 %v3622, %v3644
  %3646 = vmatmul.bf16.gmra.mxu0 %v3603
  %v3647 = vpop.f32.mrf.mxu0
  %v3648 = vadd.f32 %v3625, %v3647
  %v3649 = vpop.f32.mrf.mxu0
  %3650 = vdwg.mxu0
  %s3651 = scalar_lea.vmem %s8, 80
  %v3652 = vld [vmem:[%s3651] sm:$0xf]
  %v3653 = vld [vmem:[%s3651 + $0x4] sm:$0xf]
  %v3654 = vld [vmem:[%s3651 + $0x8] sm:$0xf]
  %v3655 = vld [vmem:[%s3651 + $0xc] sm:$0xf]
  %v3656 = vld [vmem:[%s3651 + $0x10] sm:$0xf]
  %v3657 = vld [vmem:[%s3651 + $0x14] sm:$0xf]
  %v3658 = vld [vmem:[%s3651 + $0x18] sm:$0xf]
  %v3659 = vld [vmem:[%s3651 + $0x1c] sm:$0xf]
  %v3660 = vld [vmem:[%s3651 + $0x20] sm:$0xf]
  %v3661 = vld [vmem:[%s3651 + $0x24] sm:$0xf]
  %v3662 = vld [vmem:[%s3651 + $0x28] sm:$0xf]
  %v3663 = vld [vmem:[%s3651 + $0x2c] sm:$0xf]
  %v3664 = vld [vmem:[%s3651 + $0x30] sm:$0xf]
  %v3665 = vld [vmem:[%s3651 + $0x34] sm:$0xf]
  %v3666 = vld [vmem:[%s3651 + $0x38] sm:$0xf]
  %v3667 = vld [vmem:[%s3651 + $0x3c] sm:$0xf]
  %v3668 = vld [vmem:[%s3651 + $0x40] sm:$0xf]
  %v3669 = vld [vmem:[%s3651 + $0x44] sm:$0xf]
  %v3670 = vld [vmem:[%s3651 + $0x48] sm:$0xf]
  %v3671 = vld [vmem:[%s3651 + $0x4c] sm:$0xf]
  %v3692 = vunpack.c.l.b16 %v3652
  %v3693 = vunpack.c.l.b16 %v3653
  %v3694 = vunpack.c.l.b16 %v3654
  %v3695 = vunpack.c.l.b16 %v3655
  %v3696 = vunpack.c.l.b16 %v3656
  %v3697 = vunpack.c.l.b16 %v3657
  %v3698 = vunpack.c.l.b16 %v3658
  %v3699 = vunpack.c.l.b16 %v3659
  %v3700 = vunpack.c.l.b16 %v3660
  %v3701 = vunpack.c.l.b16 %v3661
  %v3702 = vunpack.c.l.b16 %v3662
  %v3703 = vunpack.c.l.b16 %v3663
  %v3704 = vunpack.c.l.b16 %v3664
  %v3705 = vunpack.c.l.b16 %v3665
  %v3706 = vunpack.c.l.b16 %v3666
  %v3707 = vunpack.c.l.b16 %v3667
  %v3708 = vunpack.c.l.b16 %v3668
  %v3709 = vunpack.c.l.b16 %v3669
  %v3710 = vunpack.c.l.b16 %v3670
  %v3711 = vunpack.c.l.b16 %v3671
  %v3712 = vpack.c.b16 %v3693, %v3692
  %v3713 = vpack.c.b16 %v3695, %v3694
  %v3714 = vpack.c.b16 %v3697, %v3696
  %v3715 = vpack.c.b16 %v3699, %v3698
  %v3716 = vpack.c.b16 %v3701, %v3700
  %v3717 = vpack.c.b16 %v3703, %v3702
  %v3718 = vpack.c.b16 %v3705, %v3704
  %v3719 = vpack.c.b16 %v3707, %v3706
  %v3720 = vpack.c.b16 %v3709, %v3708
  %v3721 = vpack.c.b16 %v3711, %v3710
  %3732 = vmatpush.bf16.msra.mxu0 %v3719
  %3733 = vmatpush.bf16.msra.mxu0 %v3718
  %3734 = vmatpush.bf16.msra.mxu0 %v3717
  %3735 = vmatpush.bf16.msra.mxu0 %v3716
  %3736 = vmatpush.bf16.msra.mxu0 %v3715
  %3737 = vmatpush.bf16.msra.mxu0 %v3714
  %3738 = vmatpush.bf16.msra.mxu0 %v3713
  %3739 = vmatpush.bf16.msra.mxu0 %v3712
  %3740 = vmatmul.bf16.gmra.mxu0 %v3509
  %v3741 = vpop.f32.mrf.mxu0
  %v3742 = vadd.f32 0.0, %v3741
  %v3743 = vpop.f32.mrf.mxu0
  %v3744 = vadd.f32 0.0, %v3743
  %3745 = vmatmul.bf16.gmra.mxu0 %v3511
  %v3746 = vpop.f32.mrf.mxu0
  %v3747 = vadd.f32 0.0, %v3746
  %v3748 = vpop.f32.mrf.mxu0
  %v3749 = vadd.f32 0.0, %v3748
  %3750 = vmatmul.bf16.gmra.mxu0 %v3513
  %v3751 = vpop.f32.mrf.mxu0
  %v3752 = vadd.f32 0.0, %v3751
  %v3753 = vpop.f32.mrf.mxu0
  %3754 = vdwg.mxu0
  %3755 = vmatpush.bf16.msra.mxu0 0
  %3756 = vmatpush.bf16.msra.mxu0 0
  %3757 = vmatpush.bf16.msra.mxu0 0
  %3758 = vmatpush.bf16.msra.mxu0 0
  %3759 = vmatpush.bf16.msra.mxu0 0
  %3760 = vmatpush.bf16.msra.mxu0 0
  %3761 = vmatpush.bf16.msra.mxu0 %v3721
  %3762 = vmatpush.bf16.msra.mxu0 %v3720
  %3763 = vmatmul.bf16.gmra.mxu0 %v3597
  %v3764 = vpop.f32.mrf.mxu0
  %v3765 = vadd.f32 %v3742, %v3764
  %v3766 = vpop.f32.mrf.mxu0
  %v3767 = vadd.f32 %v3744, %v3766
  %3768 = vmatmul.bf16.gmra.mxu0 %v3600
  %v3769 = vpop.f32.mrf.mxu0
  %v3770 = vadd.f32 %v3747, %v3769
  %v3771 = vpop.f32.mrf.mxu0
  %v3772 = vadd.f32 %v3749, %v3771
  %3773 = vmatmul.bf16.gmra.mxu0 %v3603
  %v3774 = vpop.f32.mrf.mxu0
  %v3775 = vadd.f32 %v3752, %v3774
  %v3776 = vpop.f32.mrf.mxu0
  %3777 = vdwg.mxu0
  %v3778 = vmax.f32 %v3638, %v3765
  %v3779 = vmax.f32 %v3640, %v3767
  %v3780 = vmax.f32 %v3643, %v3770
  %v3781 = vmax.f32 %v3645, %v3772
  %v3782 = vmax.f32 %v3648, %v3775
  %v3783 = vpack.c.bf16 %v3778, %v3778
  %v3784 = vld [vmem:[%s9] sm:$0xf]
  %v3785 = vld [vmem:[%s9 + $0x4] sm:$0xf]
  %v3786 = vld [vmem:[%s9 + $0x8] sm:$0xf]
  %v3787 = vld [vmem:[%s9 + $0xc] sm:$0xf]
  %v3788 = vld [vmem:[%s9 + $0x10] sm:$0xf]
  %v3789 = vld [vmem:[%s9 + $0x14] sm:$0xf]
  %v3790 = vld [vmem:[%s9 + $0x18] sm:$0xf]
  %v3791 = vld [vmem:[%s9 + $0x1c] sm:$0xf]
  %v3792 = vld [vmem:[%s9 + $0x20] sm:$0xf]
  %v3793 = vld [vmem:[%s9 + $0x24] sm:$0xf]
  %v3794 = vpack.c.bf16 %v3779, %v3779
  %s3795 = scalar_lea.vmem %s9, 40
  %v3796 = vld [vmem:[%s3795] sm:$0xf]
  %v3797 = vld [vmem:[%s3795 + $0x4] sm:$0xf]
  %v3798 = vld [vmem:[%s3795 + $0x8] sm:$0xf]
  %v3799 = vld [vmem:[%s3795 + $0xc] sm:$0xf]
  %v3800 = vld [vmem:[%s3795 + $0x10] sm:$0xf]
  %v3801 = vld [vmem:[%s3795 + $0x14] sm:$0xf]
  %v3802 = vld [vmem:[%s3795 + $0x18] sm:$0xf]
  %v3803 = vld [vmem:[%s3795 + $0x1c] sm:$0xf]
  %v3804 = vld [vmem:[%s3795 + $0x20] sm:$0xf]
  %v3805 = vld [vmem:[%s3795 + $0x24] sm:$0xf]
  %v3816 = vunpack.c.l.b16 %v3796
  %v3817 = vunpack.c.l.b16 %v3797
  %v3818 = vunpack.c.l.b16 %v3798
  %v3819 = vunpack.c.l.b16 %v3799
  %v3820 = vunpack.c.l.b16 %v3800
  %v3821 = vunpack.c.l.b16 %v3801
  %v3822 = vunpack.c.l.b16 %v3802
  %v3823 = vunpack.c.l.b16 %v3803
  %v3824 = vunpack.c.l.b16 %v3804
  %v3825 = vunpack.c.l.b16 %v3805
  %v3826 = vpack.c.b16 %v3817, %v3816
  %v3827 = vpack.c.b16 %v3819, %v3818
  %v3828 = vpack.c.b16 %v3821, %v3820
  %v3829 = vpack.c.b16 %v3823, %v3822
  %v3830 = vpack.c.b16 %v3825, %v3824
  %v3837 = vsel %vm3369, %v3794, 0
  %3839 = vmatpush.bf16.msra.mxu0 0
  %3840 = vmatpush.bf16.msra.mxu0 0
  %3841 = vmatpush.bf16.msra.mxu0 0
  %3842 = vmatpush.bf16.msra.mxu0 %v3830
  %3843 = vmatpush.bf16.msra.mxu0 %v3829
  %3844 = vmatpush.bf16.msra.mxu0 %v3828
  %3845 = vmatpush.bf16.msra.mxu0 %v3827
  %3846 = vmatpush.bf16.msra.mxu0 %v3826
  %3847 = vmatmul.bf16.gmra.mxu0 %v3837
  %v3848 = vpop.f32.mrf.mxu0
  %v3849 = vadd.f32 0.0, %v3848
  %v3850 = vpop.f32.mrf.mxu0
  %3851 = vdwg.mxu0
  %v3862 = vunpack.c.l.b16 %v3784
  %v3863 = vunpack.c.l.b16 %v3785
  %v3864 = vunpack.c.l.b16 %v3786
  %v3865 = vunpack.c.l.b16 %v3787
  %v3866 = vunpack.c.l.b16 %v3788
  %v3867 = vunpack.c.l.b16 %v3789
  %v3868 = vunpack.c.l.b16 %v3790
  %v3869 = vunpack.c.l.b16 %v3791
  %v3870 = vunpack.c.l.b16 %v3792
  %v3871 = vunpack.c.l.b16 %v3793
  %v3872 = vpack.c.b16 %v3863, %v3862
  %v3873 = vpack.c.b16 %v3865, %v3864
  %v3874 = vpack.c.b16 %v3867, %v3866
  %v3875 = vpack.c.b16 %v3869, %v3868
  %v3876 = vpack.c.b16 %v3871, %v3870
  %v3883 = vsel %vm3369, %v3783, 0
  %3885 = vmatpush.bf16.msra.mxu0 0
  %3886 = vmatpush.bf16.msra.mxu0 0
  %3887 = vmatpush.bf16.msra.mxu0 0
  %3888 = vmatpush.bf16.msra.mxu0 %v3876
  %3889 = vmatpush.bf16.msra.mxu0 %v3875
  %3890 = vmatpush.bf16.msra.mxu0 %v3874
  %3891 = vmatpush.bf16.msra.mxu0 %v3873
  %3892 = vmatpush.bf16.msra.mxu0 %v3872
  %3893 = vmatmul.bf16.gmra.mxu0 %v3883
  %v3894 = vpop.f32.mrf.mxu0
  %v3895 = vadd.f32 %v3849, %v3894
  %v3896 = vpop.f32.mrf.mxu0
  %3897 = vdwg.mxu0
  %v3898 = vpack.c.bf16 %v3780, %v3780
  %s3899 = scalar_lea.vmem %s9, 80
  %v3900 = vld [vmem:[%s3899] sm:$0xf]
  %v3901 = vld [vmem:[%s3899 + $0x4] sm:$0xf]
  %v3902 = vld [vmem:[%s3899 + $0x8] sm:$0xf]
  %v3903 = vld [vmem:[%s3899 + $0xc] sm:$0xf]
  %v3904 = vld [vmem:[%s3899 + $0x10] sm:$0xf]
  %v3905 = vld [vmem:[%s3899 + $0x14] sm:$0xf]
  %v3906 = vld [vmem:[%s3899 + $0x18] sm:$0xf]
  %v3907 = vld [vmem:[%s3899 + $0x1c] sm:$0xf]
  %v3908 = vld [vmem:[%s3899 + $0x20] sm:$0xf]
  %v3909 = vld [vmem:[%s3899 + $0x24] sm:$0xf]
  %v3920 = vunpack.c.l.b16 %v3900
  %v3921 = vunpack.c.l.b16 %v3901
  %v3922 = vunpack.c.l.b16 %v3902
  %v3923 = vunpack.c.l.b16 %v3903
  %v3924 = vunpack.c.l.b16 %v3904
  %v3925 = vunpack.c.l.b16 %v3905
  %v3926 = vunpack.c.l.b16 %v3906
  %v3927 = vunpack.c.l.b16 %v3907
  %v3928 = vunpack.c.l.b16 %v3908
  %v3929 = vunpack.c.l.b16 %v3909
  %v3930 = vpack.c.b16 %v3921, %v3920
  %v3931 = vpack.c.b16 %v3923, %v3922
  %v3932 = vpack.c.b16 %v3925, %v3924
  %v3933 = vpack.c.b16 %v3927, %v3926
  %v3934 = vpack.c.b16 %v3929, %v3928
  %v3941 = vsel %vm3369, %v3898, 0
  %3943 = vmatpush.bf16.msra.mxu0 0
  %3944 = vmatpush.bf16.msra.mxu0 0
  %3945 = vmatpush.bf16.msra.mxu0 0
  %3946 = vmatpush.bf16.msra.mxu0 %v3934
  %3947 = vmatpush.bf16.msra.mxu0 %v3933
  %3948 = vmatpush.bf16.msra.mxu0 %v3932
  %3949 = vmatpush.bf16.msra.mxu0 %v3931
  %3950 = vmatpush.bf16.msra.mxu0 %v3930
  %3951 = vmatmul.bf16.gmra.mxu0 %v3941
  %v3952 = vpop.f32.mrf.mxu0
  %v3953 = vadd.f32 0.0, %v3952
  %v3954 = vpop.f32.mrf.mxu0
  %3955 = vdwg.mxu0
  %v3956 = vadd.f32 %v3895, %v3953
  %v3957 = vpack.c.bf16 %v3781, %v3781
  %s3958 = scalar_lea.vmem %s9, 120
  %v3959 = vld [vmem:[%s3958] sm:$0xf]
  %v3960 = vld [vmem:[%s3958 + $0x4] sm:$0xf]
  %v3961 = vld [vmem:[%s3958 + $0x8] sm:$0xf]
  %v3962 = vld [vmem:[%s3958 + $0xc] sm:$0xf]
  %v3963 = vld [vmem:[%s3958 + $0x10] sm:$0xf]
  %v3964 = vld [vmem:[%s3958 + $0x14] sm:$0xf]
  %v3965 = vld [vmem:[%s3958 + $0x18] sm:$0xf]
  %v3966 = vld [vmem:[%s3958 + $0x1c] sm:$0xf]
  %v3967 = vld [vmem:[%s3958 + $0x20] sm:$0xf]
  %v3968 = vld [vmem:[%s3958 + $0x24] sm:$0xf]
  %v3979 = vunpack.c.l.b16 %v3959
  %v3980 = vunpack.c.l.b16 %v3960
  %v3981 = vunpack.c.l.b16 %v3961
  %v3982 = vunpack.c.l.b16 %v3962
  %v3983 = vunpack.c.l.b16 %v3963
  %v3984 = vunpack.c.l.b16 %v3964
  %v3985 = vunpack.c.l.b16 %v3965
  %v3986 = vunpack.c.l.b16 %v3966
  %v3987 = vunpack.c.l.b16 %v3967
  %v3988 = vunpack.c.l.b16 %v3968
  %v3989 = vpack.c.b16 %v3980, %v3979
  %v3990 = vpack.c.b16 %v3982, %v3981
  %v3991 = vpack.c.b16 %v3984, %v3983
  %v3992 = vpack.c.b16 %v3986, %v3985
  %v3993 = vpack.c.b16 %v3988, %v3987
  %v4000 = vsel %vm3369, %v3957, 0
  %4002 = vmatpush.bf16.msra.mxu0 0
  %4003 = vmatpush.bf16.msra.mxu0 0
  %4004 = vmatpush.bf16.msra.mxu0 0
  %4005 = vmatpush.bf16.msra.mxu0 %v3993
  %4006 = vmatpush.bf16.msra.mxu0 %v3992
  %4007 = vmatpush.bf16.msra.mxu0 %v3991
  %4008 = vmatpush.bf16.msra.mxu0 %v3990
  %4009 = vmatpush.bf16.msra.mxu0 %v3989
  %4010 = vmatmul.bf16.gmra.mxu0 %v4000
  %v4011 = vpop.f32.mrf.mxu0
  %v4012 = vadd.f32 0.0, %v4011
  %v4013 = vpop.f32.mrf.mxu0
  %4014 = vdwg.mxu0
  %v4015 = vadd.f32 %v3956, %v4012
  %v4016 = vpack.c.bf16 %v3782, %v3782
  %s4017 = scalar_lea.vmem %s9, 160
  %v4018 = vld [vmem:[%s4017] sm:$0xf]
  %v4019 = vld [vmem:[%s4017 + $0x4] sm:$0xf]
  %v4020 = vld [vmem:[%s4017 + $0x8] sm:$0xf]
  %v4021 = vld [vmem:[%s4017 + $0xc] sm:$0xf]
  %v4022 = vld [vmem:[%s4017 + $0x10] sm:$0xf]
  %v4023 = vld [vmem:[%s4017 + $0x14] sm:$0xf]
  %v4024 = vld [vmem:[%s4017 + $0x18] sm:$0xf]
  %v4025 = vld [vmem:[%s4017 + $0x1c] sm:$0xf]
  %v4026 = vld [vmem:[%s4017 + $0x20] sm:$0xf]
  %v4027 = vld [vmem:[%s4017 + $0x24] sm:$0xf]
  %v4038 = vunpack.c.l.b16 %v4018
  %v4039 = vunpack.c.l.b16 %v4019
  %v4040 = vunpack.c.l.b16 %v4020
  %v4041 = vunpack.c.l.b16 %v4021
  %v4042 = vunpack.c.l.b16 %v4022
  %v4043 = vunpack.c.l.b16 %v4023
  %v4044 = vunpack.c.l.b16 %v4024
  %v4045 = vunpack.c.l.b16 %v4025
  %v4046 = vunpack.c.l.b16 %v4026
  %v4047 = vunpack.c.l.b16 %v4027
  %v4048 = vpack.c.b16 %v4039, %v4038
  %v4049 = vpack.c.b16 %v4041, %v4040
  %v4050 = vpack.c.b16 %v4043, %v4042
  %v4051 = vpack.c.b16 %v4045, %v4044
  %v4052 = vpack.c.b16 %v4047, %v4046
  %v4059 = vsel %vm3369, %v4016, 0
  %4061 = vmatpush.bf16.msra.mxu0 0
  %4062 = vmatpush.bf16.msra.mxu0 0
  %4063 = vmatpush.bf16.msra.mxu0 0
  %4064 = vmatpush.bf16.msra.mxu0 %v4052
  %4065 = vmatpush.bf16.msra.mxu0 %v4051
  %4066 = vmatpush.bf16.msra.mxu0 %v4050
  %4067 = vmatpush.bf16.msra.mxu0 %v4049
  %4068 = vmatpush.bf16.msra.mxu0 %v4048
  %4069 = vmatmul.bf16.gmra.mxu0 %v4059
  %v4070 = vpop.f32.mrf.mxu0
  %v4071 = vadd.f32 0.0, %v4070
  %v4072 = vpop.f32.mrf.mxu0
  %4073 = vdwg.mxu0
  %v4074 = vadd.f32 %v4015, %v4071
  %v4075 = vld [vmem:[%s10] sm:$0x1]
  %v4077 = vperm.slane %v4075, 0
  %v4079 = vadd.f32 %v4074, %v4077
  %v4080 = vmax.f32 %v4079, 0.0
  %v4081 = vpack.c.bf16 %v4080, %v4080
  %v4082 = vld [vmem:[%s11] sm:$0xf]
  %v4083 = vld [vmem:[%s11 + $0x4] sm:$0xf]
  %v4084 = vld [vmem:[%s11 + $0x8] sm:$0xf]
  %v4085 = vld [vmem:[%s11 + $0xc] sm:$0xf]
  %v4086 = vld [vmem:[%s11 + $0x10] sm:$0xf]
  %v4087 = vld [vmem:[%s11 + $0x14] sm:$0xf]
  %v4088 = vld [vmem:[%s11 + $0x18] sm:$0xf]
  %v4089 = vld [vmem:[%s11 + $0x1c] sm:$0xf]
  %v4090 = vld [vmem:[%s11 + $0x20] sm:$0xf]
  %v4091 = vld [vmem:[%s11 + $0x24] sm:$0xf]
  %v4092 = vld [vmem:[%s11 + $0x28] sm:$0xf]
  %v4093 = vld [vmem:[%s11 + $0x2c] sm:$0xf]
  %v4094 = vld [vmem:[%s11 + $0x30] sm:$0xf]
  %v4095 = vld [vmem:[%s11 + $0x34] sm:$0xf]
  %v4096 = vld [vmem:[%s11 + $0x38] sm:$0xf]
  %v4097 = vld [vmem:[%s11 + $0x3c] sm:$0xf]
  %v4098 = vld [vmem:[%s12] sm:$0x1]
  %v4100 = vperm.slane %v4098, 0
  %v4118 = vunpack.c.l.b16 %v4082
  %v4119 = vunpack.c.l.b16 %v4083
  %v4120 = vunpack.c.l.b16 %v4084
  %v4121 = vunpack.c.l.b16 %v4085
  %v4122 = vunpack.c.l.b16 %v4086
  %v4123 = vunpack.c.l.b16 %v4087
  %v4124 = vunpack.c.l.b16 %v4088
  %v4125 = vunpack.c.l.b16 %v4089
  %v4126 = vunpack.c.l.b16 %v4090
  %v4127 = vunpack.c.l.b16 %v4091
  %v4128 = vunpack.c.l.b16 %v4092
  %v4129 = vunpack.c.l.b16 %v4093
  %v4130 = vunpack.c.l.b16 %v4094
  %v4131 = vunpack.c.l.b16 %v4095
  %v4132 = vunpack.c.l.b16 %v4096
  %v4133 = vunpack.c.l.b16 %v4097
  %v4134 = vpack.c.b16 %v4119, %v4118
  %v4135 = vpack.c.b16 %v4121, %v4120
  %v4136 = vpack.c.b16 %v4123, %v4122
  %v4137 = vpack.c.b16 %v4125, %v4124
  %v4138 = vpack.c.b16 %v4127, %v4126
  %v4139 = vpack.c.b16 %v4129, %v4128
  %v4140 = vpack.c.b16 %v4131, %v4130
  %v4141 = vpack.c.b16 %v4133, %v4132
  %4150 = vmatpush.bf16.msra.mxu0 %v4141
  %4151 = vmatpush.bf16.msra.mxu0 %v4140
  %4152 = vmatpush.bf16.msra.mxu0 %v4139
  %4153 = vmatpush.bf16.msra.mxu0 %v4138
  %4154 = vmatpush.bf16.msra.mxu0 %v4137
  %4155 = vmatpush.bf16.msra.mxu0 %v4136
  %4156 = vmatpush.bf16.msra.mxu0 %v4135
  %4157 = vmatpush.bf16.msra.mxu0 %v4134
  %4158 = vmatmul.bf16.gmra.mxu0 %v4081
  %v4159 = vpop.f32.mrf.mxu0
  %v4160 = vadd.f32 %v4100, %v4159
  %v4161 = vpop.f32.mrf.mxu0
  %4162 = vdwg.mxu0
  %v4163 = vmax.f32 %v4160, 0.0
  %v4164 = vpack.c.bf16 %v4163, %v4163
  %v4165 = vld [vmem:[%s13] sm:$0xf]
  %v4166 = vld [vmem:[%s13 + $0x4] sm:$0xf]
  %v4167 = vld [vmem:[%s13 + $0x8] sm:$0xf]
  %v4168 = vld [vmem:[%s13 + $0xc] sm:$0xf]
  %v4169 = vld [vmem:[%s13 + $0x10] sm:$0xf]
  %v4170 = vld [vmem:[%s13 + $0x14] sm:$0xf]
  %v4171 = vld [vmem:[%s13 + $0x18] sm:$0xf]
  %v4172 = vld [vmem:[%s13 + $0x1c] sm:$0xf]
  %v4173 = vld [vmem:[%s13 + $0x20] sm:$0xf]
  %v4174 = vld [vmem:[%s13 + $0x24] sm:$0xf]
  %v4175 = vld [vmem:[%s13 + $0x28] sm:$0xf]
  %v4176 = vld [vmem:[%s13 + $0x2c] sm:$0xf]
  %v4177 = vld [vmem:[%s13 + $0x30] sm:$0xf]
  %v4178 = vld [vmem:[%s13 + $0x34] sm:$0xf]
  %v4179 = vld [vmem:[%s13 + $0x38] sm:$0xf]
  %v4180 = vld [vmem:[%s13 + $0x3c] sm:$0xf]
  %v4181 = vld [vmem:[%s14] sm:$0x1]
  %v4183 = vperm.slane %v4181, 0
  %v4201 = vunpack.c.l.b16 %v4165
  %v4202 = vunpack.c.l.b16 %v4166
  %v4203 = vunpack.c.l.b16 %v4167
  %v4204 = vunpack.c.l.b16 %v4168
  %v4205 = vunpack.c.l.b16 %v4169
  %v4206 = vunpack.c.l.b16 %v4170
  %v4207 = vunpack.c.l.b16 %v4171
  %v4208 = vunpack.c.l.b16 %v4172
  %v4209 = vunpack.c.l.b16 %v4173
  %v4210 = vunpack.c.l.b16 %v4174
  %v4211 = vunpack.c.l.b16 %v4175
  %v4212 = vunpack.c.l.b16 %v4176
  %v4213 = vunpack.c.l.b16 %v4177
  %v4214 = vunpack.c.l.b16 %v4178
  %v4215 = vunpack.c.l.b16 %v4179
  %v4216 = vunpack.c.l.b16 %v4180
  %v4217 = vpack.c.b16 %v4202, %v4201
  %v4218 = vpack.c.b16 %v4204, %v4203
  %v4219 = vpack.c.b16 %v4206, %v4205
  %v4220 = vpack.c.b16 %v4208, %v4207
  %v4221 = vpack.c.b16 %v4210, %v4209
  %v4222 = vpack.c.b16 %v4212, %v4211
  %v4223 = vpack.c.b16 %v4214, %v4213
  %v4224 = vpack.c.b16 %v4216, %v4215
  %4233 = vmatpush.bf16.msra.mxu0 %v4224
  %4234 = vmatpush.bf16.msra.mxu0 %v4223
  %4235 = vmatpush.bf16.msra.mxu0 %v4222
  %4236 = vmatpush.bf16.msra.mxu0 %v4221
  %4237 = vmatpush.bf16.msra.mxu0 %v4220
  %4238 = vmatpush.bf16.msra.mxu0 %v4219
  %4239 = vmatpush.bf16.msra.mxu0 %v4218
  %4240 = vmatpush.bf16.msra.mxu0 %v4217
  %4241 = vmatmul.bf16.gmra.mxu0 %v4164
  %v4242 = vpop.f32.mrf.mxu0
  %v4243 = vadd.f32 %v4183, %v4242
  %v4244 = vpop.f32.mrf.mxu0
  %4245 = vdwg.mxu0
  %4246 = vst [vmem:[%s15] sm:$0xff] %v4243
  // Predicated region
  $region62: #{net_forward.1} parent=0 // pred_check
    _
  $region63: #{net_forward.1} parent=0 // pred_check_branch
    %4248 = sbr.rel (0) target = $region65
  $region64: #{net_forward.1} parent=0 // pred_region
    _
  $region65: #{net_forward.1} parent=0 // pred_fallthru
    _
  // Predicated region
  $region66: #{net_forward.1} parent=0 // pred_check
    _
  $region67: #{net_forward.1} parent=0 // pred_check_branch
    %4250 = sbr.rel (0) target = $region69
  $region68: #{net_forward.1} parent=0 // pred_region
    _
  $region69: #{net_forward.1} parent=0 // pred_fallthru
    _

</llo_original>
